<compile_context>
chip_gen: v5e
topology: v5e:2x2
jax: 0.10.0
libtpu: 0.0.40
codegen_flags: <defaults>
</compile_context>

<pallas_src>
import functools
import numpy as np
import jax
import jax.numpy as jnp
from jax.experimental import pallas as pl
from jax.experimental.pallas import tpu as pltpu


# ----------------------------- Model constants ------------------------------

VOCAB = 128           # padded to a lane-dense multiple of 128
DIM = 128             # model width (multiple of 128)
N_LAYERS = 2
N_HEADS = 4
HEAD_DIM = DIM // N_HEADS
FFN_DIM = 256         # multiple of 128
ROPE_THETA = 10000.0
RMS_EPS = 1e-5


# ----------------------------- Fused Pallas kernel ------------------------------

def _ellav_forward_kernel(
    x_ref,          # [T, D]    f32  token embeddings (residual stream seed)
    seg_row_ref,    # [T, 1]    i32  packed-sequence segment id (row view)
    seg_col_ref,    # [1, T]    i32  packed-sequence segment id (col view)
    pos_row_ref,    # [T, 1]    i32  global token index (row view)
    pos_col_ref,    # [1, T]    i32  global token index (col view)
    cos_ref,        # [T, 2D]   f32  RoPE cos tiled across the q|k lanes
    sin_ref,        # [T, 2D]   f32  RoPE sin tiled across the q|k lanes
    attn_g_ref,     # [L, 1, D]       f32
    wqkv_ref,       # [L, D, 5D]      bf16  (wq | wk | wq@R | wk@R | wv)
    wo_ref,         # [L, D, D]       bf16
    ffn_g_ref,      # [L, 1, D]       f32
    w13_ref,        # [L, D, 2F]      bf16  (w1 | w3)
    w2_ref,         # [L, F, D]       bf16
    final_g_ref,    # [1, D]          f32
    w_out_ref,      # [D, V]          bf16
    o_ref,          # [T, V]    f32  logits
    heads_ref,      # VMEM scratch [T, D] f32 (per-head PV outputs, 32-lane offsets)
    *, n_layers, n_heads, head_dim, ffn_dim, eps, scale):

  f32, bf16 = jnp.float32, jnp.bfloat16
  T, D = x_ref.shape
  two_d = 2 * D

  # Block-diagonal causal additive mask built in-kernel from O(T) metadata
  # (no dense [T, T] mask read from HBM).  Diagonal is always allowed, so the
  # row-max / exp path never sees a fully-masked row.
  allowed = jnp.logical_and(pos_row_ref[...] >= pos_col_ref[...],
                            seg_row_ref[...] == seg_col_ref[...])
  mask_add = jnp.where(allowed, 0.0, -1e9).astype(f32)

  cos = cos_ref[...]
  sin = sin_ref[...]

  def mm(a_bf, b_bf):
    # bf16 MXU matmul, f32 accumulation, (last, first) contraction — operands are
    # already bf16 (cast once per layer, not per slice).
    return jax.lax.dot_general(
        a_bf, b_bf,
        dimension_numbers=(((a_bf.ndim - 1,), (0,)), ((), ())),
        preferred_element_type=f32)

  def rms(v, g):
    return v * jax.lax.rsqrt(jnp.mean(v * v, axis=-1, keepdims=True) + eps) * g

  x = x_ref[...]                                             # residual in VMEM (f32)

  for l in range(n_layers):
    # ---------------- attention block ----------------
    h_bf = rms(x, attn_g_ref[l]).astype(bf16)
    qkv = mm(h_bf, wqkv_ref[l])                              # [T, 5D] f32

    # RoPE: rotate-half is pre-folded into the weight columns, so this is pure
    # elementwise f32 math (no MXU / XLU permutation in the kernel).
    qk = qkv[:, :two_d] * cos + qkv[:, two_d:2 * two_d] * sin   # roped q|k, f32

    q_bf = qk[:, :D].astype(bf16)                            # cast once per layer
    k_t_bf = jnp.transpose(qk[:, D:two_d]).astype(bf16)      # [D, T]; one transpose
    v_bf = qkv[:, 2 * two_d:].astype(bf16)                   # [T, D]

    for hh in range(n_heads):
      qs = hh * head_dim
      s = mm(q_bf[:, qs:qs + head_dim],
             k_t_bf[qs:qs + head_dim, :]) * scale + mask_add  # [T, T] f32
      s = s - jnp.max(s, axis=-1, keepdims=True)
      p = jnp.exp(s)
      p = p / jnp.sum(p, axis=-1, keepdims=True)              # exact softmax
      # Per-head PV output lands at its 32-lane offset in the scratch; Wo is then
      # a single K=128 GEMM below (no per-head K=32 pushes, no lane concat).
      heads_ref[:, qs:qs + head_dim] = mm(p.astype(bf16), v_bf[:, qs:qs + head_dim])

    x = x + mm(heads_ref[...].astype(bf16), wo_ref[l])

    # ---------------- SwiGLU FFN block ----------------
    h_bf = rms(x, ffn_g_ref[l]).astype(bf16)
    h13 = mm(h_bf, w13_ref[l])                               # [T, 2F] f32
    h1 = h13[:, :ffn_dim]
    h3 = h13[:, ffn_dim:]
    x = x + mm((h1 * jax.nn.sigmoid(h1) * h3).astype(bf16), w2_ref[l])

  o_ref[...] = mm(rms(x, final_g_ref[...]).astype(bf16), w_out_ref[...])  # [T, V]


def _fs(shape):
  """Full-array BlockSpec for a grid=(1,) kernel."""
  return pl.BlockSpec(shape, lambda i, _n=len(shape): (0,) * _n)


@jax.jit
def forward(packed, input_ids, seg_row, seg_col, pos_row, pos_col, cos2, sin2):
  """Fused forward pass: one pallas_call for the whole transformer."""
  T = input_ids.shape[0]

  # Embedding lookup is glue (XLA gather); everything after it lives in VMEM.
  x_emb = packed["tok_emb"][input_ids]                       # [T, D] f32

  kernel = functools.partial(
      _ellav_forward_kernel,
      n_layers=N_LAYERS, n_heads=N_HEADS, head_dim=HEAD_DIM,
      ffn_dim=FFN_DIM, eps=RMS_EPS, scale=float(1.0 / np.sqrt(HEAD_DIM)))

  args = (x_emb, seg_row, seg_col, pos_row, pos_col, cos2, sin2,
          packed["attn_g"], packed["wqkv"], packed["wo"],
          packed["ffn_g"], packed["w13"], packed["w2"],
          packed["final_g"], packed["w_out"])

  return pl.pallas_call(
      kernel,
      out_shape=jax.ShapeDtypeStruct((T, VOCAB), jnp.float32),
      grid=(1,),
      in_specs=[_fs(a.shape) for a in args],
      out_specs=_fs((T, VOCAB)),
      scratch_shapes=[pltpu.VMEM((T, DIM), jnp.float32)],
      compiler_params=pltpu.CompilerParams(
          dimension_semantics=("arbitrary",),
          vmem_limit_bytes=8 * 1024 * 1024),
  )(*args)


# ----------------------------- Parameters / packing ------------------------------

def init_params(key):
  def nrm(key, shape, scale):
    return (scale * jax.random.normal(key, shape)).astype(jnp.float32)

  keys = iter(jax.random.split(key, 4 + N_LAYERS * 8))
  params = {
      "tok_emb": nrm(next(keys), (VOCAB, DIM), 0.02),
      "final_norm_g": jnp.ones((1, DIM), jnp.float32),
      "w_out": nrm(next(keys), (DIM, VOCAB), 0.02),
      "layers": [],
  }
  for _ in range(N_LAYERS):
    params["layers"].append({
        "attn_norm_g": jnp.ones((1, DIM), jnp.float32),
        "wq": nrm(next(keys), (DIM, DIM), 0.02),
        "wk": nrm(next(keys), (DIM, DIM), 0.02),
        "wv": nrm(next(keys), (DIM, DIM), 0.02),
        "wo": nrm(next(keys), (DIM, DIM), 0.02),
        "ffn_norm_g": jnp.ones((1, DIM), jnp.float32),
        "w1": nrm(next(keys), (DIM, FFN_DIM), 0.02),
        "w3": nrm(next(keys), (DIM, FFN_DIM), 0.02),
        "w2": nrm(next(keys), (FFN_DIM, DIM), 0.02),
    })
  return params


def pack_params(params):
  """Pre-pack weights into the kernel layout ONCE (outside the per-step jit).

  The rotate-half signed permutation is folded into extra QKV columns:
  wqkv = [wq | wk | rot(wq) | rot(wk) | wv]  (exact column permutation + sign,
  so the kernel's roped q/k are bit-equivalent to rotating the computed q/k).
  """
  bf16 = jnp.bfloat16
  d = np.arange(DIM)
  partner = jnp.asarray(d ^ (HEAD_DIM // 2), jnp.int32)        # swap 16-halves / head
  sign = jnp.asarray(np.where((d % HEAD_DIM) < HEAD_DIM // 2, -1.0, 1.0), jnp.float32)

  def rot_cols(w):                                              # rotate-half on cols
    return w[:, partner] * sign

  def qkv5(l):
    wq, wk, wv = l["wq"], l["wk"], l["wv"]
    return jnp.concatenate([wq, wk, rot_cols(wq), rot_cols(wk), wv], axis=1)

  L = params["layers"]
  return {
      "tok_emb": params["tok_emb"],
      "attn_g": jnp.stack([l["attn_norm_g"] for l in L]),
      "wqkv": jnp.stack([qkv5(l) for l in L]).astype(bf16),
      "wo": jnp.stack([l["wo"] for l in L]).astype(bf16),
      "ffn_g": jnp.stack([l["ffn_norm_g"] for l in L]),
      "w13": jnp.stack([jnp.concatenate([l["w1"], l["w3"]], 1) for l in L]).astype(bf16),
      "w2": jnp.stack([l["w2"] for l in L]).astype(bf16),
      "final_g": params["final_norm_g"],
      "w_out": params["w_out"].astype(bf16),
  }


# ----------------------------- Host-side glue ------------------------------

def _packed_metadata(seqlens):
  # Per-token segment ids / indices for packed sequences (O(T) kernel inputs),
  # plus a dense mask used ONLY by the pure-JAX reference.
  T = int(sum(seqlens))
  seg = np.concatenate([np.full(l, i, np.int32) for i, l in enumerate(seqlens)])
  rope_pos = np.concatenate([np.arange(l) for l in seqlens])
  idx = np.arange(T, dtype=np.int32)
  seg_row = jnp.asarray(seg.reshape(T, 1), jnp.int32)
  seg_col = jnp.asarray(seg.reshape(1, T), jnp.int32)
  pos_row = jnp.asarray(idx.reshape(T, 1), jnp.int32)
  pos_col = jnp.asarray(idx.reshape(1, T), jnp.int32)
  i_idx = np.arange(T)[:, None]
  j_idx = np.arange(T)[None, :]
  allowed = (j_idx <= i_idx) & (seg[None, :] == seg[:, None])
  mask = jnp.asarray(np.where(allowed, 0.0, -1e9), jnp.float32)
  return seg_row, seg_col, pos_row, pos_col, mask, rope_pos


def _rope_tables(positions):
  inv_freq = 1.0 / (ROPE_THETA ** (np.arange(0, HEAD_DIM, 2) / HEAD_DIM))
  freqs = positions[:, None].astype(np.float64) * inv_freq[None, :]   # [T, hd/2]
  cos = np.concatenate([np.cos(freqs), np.cos(freqs)], -1).astype(np.float32)
  sin = np.concatenate([np.sin(freqs), np.sin(freqs)], -1).astype(np.float32)
  return cos, sin                                                     # [T, hd]


def _rope_kernel_tables(cos, sin):
  # Tile the per-head tables across the q|k lanes of the fused QKV projection.
  cos2 = jnp.asarray(np.tile(cos, (1, 2 * N_HEADS)), jnp.float32)     # [T, 2D]
  sin2 = jnp.asarray(np.tile(sin, (1, 2 * N_HEADS)), jnp.float32)
  return cos2, sin2


def _apply_rope(x, cos, sin):
  # x: [T, H, hd]  (reference-path rotate-half)
  h = HEAD_DIM // 2
  x1, x2 = x[..., :h], x[..., h:]
  rot = jnp.concatenate([-x2, x1], axis=-1)
  return x * cos[:, None, :] + rot * sin[:, None, :]


# Pure-JAX reference (same math, bf16 matmul operands, no Pallas).
def forward_ref(params, input_ids, mask, cos, sin):
  bf16 = jnp.bfloat16
  scale = float(1.0 / np.sqrt(HEAD_DIM))

  def mmr(a, b):
    return jax.lax.dot_general(a.astype(bf16), b.astype(bf16),
                               (((a.ndim - 1,), (0,)), ((), ())),
                               preferred_element_type=jnp.float32)

  def rms(x, g):
    return x * jax.lax.rsqrt(jnp.mean(x * x, -1, keepdims=True) + RMS_EPS) * g

  T = input_ids.shape[0]
  x = params["tok_emb"][input_ids]
  for lyr in params["layers"]:
    h = rms(x, lyr["attn_norm_g"])
    q = mmr(h, lyr["wq"]).reshape(T, N_HEADS, HEAD_DIM)
    k = mmr(h, lyr["wk"]).reshape(T, N_HEADS, HEAD_DIM)
    v = mmr(h, lyr["wv"]).reshape(T, N_HEADS, HEAD_DIM)
    q, k = _apply_rope(q, cos, sin), _apply_rope(k, cos, sin)
    q, k, v = (jnp.transpose(t, (1, 0, 2)) for t in (q, k, v))
    s = jnp.einsum("htd,hsd->hts", q.astype(bf16), k.astype(bf16),
                   preferred_element_type=jnp.float32) * scale + mask[None]
    p = jax.nn.softmax(s, axis=-1)
    a = jnp.einsum("hts,hsd->htd", p.astype(bf16), v.astype(bf16),
                   preferred_element_type=jnp.float32)
    a = jnp.transpose(a, (1, 0, 2)).reshape(T, DIM)
    x = x + mmr(a, lyr["wo"])
    h = rms(x, lyr["ffn_norm_g"])
    h1, h3 = mmr(h, lyr["w1"]), mmr(h, lyr["w3"])
    x = x + mmr(h1 * jax.nn.sigmoid(h1) * h3, lyr["w2"])
  return mmr(rms(x, params["final_norm_g"]), params["w_out"])


# ----------------------------- Driver ------------------------------

if __name__ == "__main__":
  key = jax.random.PRNGKey(0)
  params = init_params(key)
  packed = pack_params(params)          # weight packing runs ONCE, outside the step

  seqlens = [5, 3]                      # packed sequences, total T = 8 tokens
  T = sum(seqlens)
  input_ids = jax.random.randint(jax.random.PRNGKey(1), (T,), 0, VOCAB, dtype=jnp.int32)

  seg_row, seg_col, pos_row, pos_col, mask, rope_pos = _packed_metadata(seqlens)
  cos_np, sin_np = _rope_tables(rope_pos)
  cos2, sin2 = _rope_kernel_tables(cos_np, sin_np)
  cos, sin = jnp.asarray(cos_np), jnp.asarray(sin_np)

  logits = forward(packed, input_ids, seg_row, seg_col, pos_row, pos_col, cos2, sin2)
  logits = jax.block_until_ready(logits)
  assert logits.shape == (T, VOCAB), logits.shape

  ref = jax.block_until_ready(forward_ref(params, input_ids, mask, cos, sin))
  np.testing.assert_allclose(np.asarray(logits), np.asarray(ref), rtol=2e-2, atol=2e-2)

  print("KERNEL_OK")
</pallas_src>

<mosaic_0001>
module attributes {stable_mosaic.version = 11 : i64} {
  func.func @_ellav_forward_kernel(%arg0: i32, %arg1: memref<8x128xf32, #tpu.memory_space<vmem>>, %arg2: memref<8x1xi32, #tpu.memory_space<vmem>>, %arg3: memref<1x8xi32, #tpu.memory_space<vmem>>, %arg4: memref<8x1xi32, #tpu.memory_space<vmem>>, %arg5: memref<1x8xi32, #tpu.memory_space<vmem>>, %arg6: memref<8x256xf32, #tpu.memory_space<vmem>>, %arg7: memref<8x256xf32, #tpu.memory_space<vmem>>, %arg8: memref<2x1x128xf32, #tpu.memory_space<vmem>>, %arg9: memref<2x128x640xbf16, #tpu.memory_space<vmem>>, %arg10: memref<2x128x128xbf16, #tpu.memory_space<vmem>>, %arg11: memref<2x1x128xf32, #tpu.memory_space<vmem>>, %arg12: memref<2x128x512xbf16, #tpu.memory_space<vmem>>, %arg13: memref<2x256x128xbf16, #tpu.memory_space<vmem>>, %arg14: memref<1x128xf32, #tpu.memory_space<vmem>>, %arg15: memref<128x128xbf16, #tpu.memory_space<vmem>>, %arg16: memref<8x128xf32, #tpu.memory_space<vmem>>, %arg17: memref<8x128xf32, #tpu.memory_space<vmem>>) attributes {dimension_semantics = [#tpu.dimension_semantics<arbitrary>], iteration_bounds = array<i64: 1>, scalar_prefetch = 0 : i64, scratch_operands = 1 : i64, tpu.core_type = #tpu.core_type<tc>, window_params = [{pipeline_mode = #tpu.pipeline_mode<synchronous>, transform_indices = @transform_0, window_bounds = array<i64: 8, 128>}, {pipeline_mode = #tpu.pipeline_mode<synchronous>, transform_indices = @transform_1, window_bounds = array<i64: 8, 1>}, {pipeline_mode = #tpu.pipeline_mode<synchronous>, transform_indices = @transform_2, window_bounds = array<i64: 1, 8>}, {pipeline_mode = #tpu.pipeline_mode<synchronous>, transform_indices = @transform_3, window_bounds = array<i64: 8, 1>}, {pipeline_mode = #tpu.pipeline_mode<synchronous>, transform_indices = @transform_4, window_bounds = array<i64: 1, 8>}, {pipeline_mode = #tpu.pipeline_mode<synchronous>, transform_indices = @transform_5, window_bounds = array<i64: 8, 256>}, {pipeline_mode = #tpu.pipeline_mode<synchronous>, transform_indices = @transform_6, window_bounds = array<i64: 8, 256>}, {pipeline_mode = #tpu.pipeline_mode<synchronous>, transform_indices = @transform_7, window_bounds = array<i64: 2, 1, 128>}, {pipeline_mode = #tpu.pipeline_mode<synchronous>, transform_indices = @transform_8, window_bounds = array<i64: 2, 128, 640>}, {pipeline_mode = #tpu.pipeline_mode<synchronous>, transform_indices = @transform_9, window_bounds = array<i64: 2, 128, 128>}, {pipeline_mode = #tpu.pipeline_mode<synchronous>, transform_indices = @transform_10, window_bounds = array<i64: 2, 1, 128>}, {pipeline_mode = #tpu.pipeline_mode<synchronous>, transform_indices = @transform_11, window_bounds = array<i64: 2, 128, 512>}, {pipeline_mode = #tpu.pipeline_mode<synchronous>, transform_indices = @transform_12, window_bounds = array<i64: 2, 256, 128>}, {pipeline_mode = #tpu.pipeline_mode<synchronous>, transform_indices = @transform_13, window_bounds = array<i64: 1, 128>}, {pipeline_mode = #tpu.pipeline_mode<synchronous>, transform_indices = @transform_14, window_bounds = array<i64: 128, 128>}, {pipeline_mode = #tpu.pipeline_mode<synchronous>, transform_indices = @transform_15, window_bounds = array<i64: 8, 128>}]} {
    %c0 = arith.constant 0 : index
    %c0_0 = arith.constant 0 : index
    %0 = vector.load %arg4[%c0, %c0_0] : memref<8x1xi32, #tpu.memory_space<vmem>>, vector<8x1xi32>
    %c0_1 = arith.constant 0 : index
    %c0_2 = arith.constant 0 : index
    %1 = vector.load %arg5[%c0_1, %c0_2] : memref<1x8xi32, #tpu.memory_space<vmem>>, vector<1x8xi32>
    %2 = vector.broadcast %0 : vector<8x1xi32> to vector<8x8xi32>
    %3 = vector.broadcast %1 : vector<1x8xi32> to vector<8x8xi32>
    %4 = arith.cmpi sge, %2, %3 : vector<8x8xi32>
    %c0_3 = arith.constant 0 : index
    %c0_4 = arith.constant 0 : index
    %5 = vector.load %arg2[%c0_3, %c0_4] : memref<8x1xi32, #tpu.memory_space<vmem>>, vector<8x1xi32>
    %c0_5 = arith.constant 0 : index
    %c0_6 = arith.constant 0 : index
    %6 = vector.load %arg3[%c0_5, %c0_6] : memref<1x8xi32, #tpu.memory_space<vmem>>, vector<1x8xi32>
    %7 = vector.broadcast %5 : vector<8x1xi32> to vector<8x8xi32>
    %8 = vector.broadcast %6 : vector<1x8xi32> to vector<8x8xi32>
    %9 = arith.cmpi eq, %7, %8 : vector<8x8xi32>
    %10 = arith.andi %4, %9 : vector<8x8xi1>
    %cst = arith.constant 0.000000e+00 : f32
    %cst_7 = arith.constant -1.000000e+09 : f32
    %11 = vector.broadcast %cst : f32 to vector<8x8xf32>
    %12 = vector.broadcast %cst_7 : f32 to vector<8x8xf32>
    %13 = arith.select %10, %11, %12 : vector<8x8xi1>, vector<8x8xf32>
    %c0_8 = arith.constant 0 : index
    %c0_9 = arith.constant 0 : index
    %14 = vector.load %arg6[%c0_8, %c0_9] : memref<8x256xf32, #tpu.memory_space<vmem>>, vector<8x256xf32>
    %c0_10 = arith.constant 0 : index
    %c0_11 = arith.constant 0 : index
    %15 = vector.load %arg7[%c0_10, %c0_11] : memref<8x256xf32, #tpu.memory_space<vmem>>, vector<8x256xf32>
    %c0_12 = arith.constant 0 : index
    %c0_13 = arith.constant 0 : index
    %16 = vector.load %arg1[%c0_12, %c0_13] : memref<8x128xf32, #tpu.memory_space<vmem>>, vector<8x128xf32>
    %c0_14 = arith.constant 0 : index
    %c0_15 = arith.constant 0 : index
    %c0_16 = arith.constant 0 : index
    %17 = vector.load %arg8[%c0_14, %c0_15, %c0_16] : memref<2x1x128xf32, #tpu.memory_space<vmem>>, vector<1x1x128xf32>
    %18 = vector.shape_cast %17 : vector<1x1x128xf32> to vector<1x128xf32>
    %19 = arith.mulf %16, %16 : vector<8x128xf32>
    %cst_17 = arith.constant dense<0.000000e+00> : vector<8xf32>
    %20 = vector.multi_reduction <add>, %19, %cst_17 [1] : vector<8x128xf32> to vector<8xf32>
    %21 = vector.shape_cast %20 : vector<8xf32> to vector<8x1xf32>
    %cst_18 = arith.constant 1.280000e+02 : f32
    %22 = vector.broadcast %cst_18 : f32 to vector<8x1xf32>
    %23 = arith.divf %21, %22 : vector<8x1xf32>
    %cst_19 = arith.constant 9.99999974E-6 : f32
    %24 = vector.broadcast %cst_19 : f32 to vector<8x1xf32>
    %25 = arith.addf %23, %24 : vector<8x1xf32>
    %26 = math.rsqrt %25 : vector<8x1xf32>
    %27 = vector.broadcast %26 : vector<8x1xf32> to vector<8x128xf32>
    %28 = arith.mulf %16, %27 : vector<8x128xf32>
    %29 = vector.broadcast %18 : vector<1x128xf32> to vector<8x128xf32>
    %30 = arith.mulf %28, %29 : vector<8x128xf32>
    %31 = arith.truncf %30 : vector<8x128xf32> to vector<8x128xbf16>
    %c0_20 = arith.constant 0 : index
    %c0_21 = arith.constant 0 : index
    %c0_22 = arith.constant 0 : index
    %32 = vector.load %arg9[%c0_20, %c0_21, %c0_22] : memref<2x128x640xbf16, #tpu.memory_space<vmem>>, vector<1x128x640xbf16>
    %33 = vector.shape_cast %32 : vector<1x128x640xbf16> to vector<128x640xbf16>
    %cst_23 = arith.constant dense<0.000000e+00> : vector<8x640xf32>
    %34 = tpu.matmul %31, %33, %cst_23 {dimension_numbers = #tpu.dot_dimension_numbers<[1], [0], [0], [1], [0, 0, 1, 1], [], []>} : vector<8x128xbf16>, vector<128x640xbf16>, vector<8x640xf32> -> vector<8x640xf32>
    %35 = vector.extract_strided_slice %34 {offsets = [0, 0], sizes = [8, 256], strides = [1, 1]} : vector<8x640xf32> to vector<8x256xf32>
    %36 = arith.mulf %35, %14 : vector<8x256xf32>
    %37 = vector.extract_strided_slice %34 {offsets = [0, 256], sizes = [8, 256], strides = [1, 1]} : vector<8x640xf32> to vector<8x256xf32>
    %38 = arith.mulf %37, %15 : vector<8x256xf32>
    %39 = arith.addf %36, %38 : vector<8x256xf32>
    %40 = vector.extract_strided_slice %39 {offsets = [0, 0], sizes = [8, 128], strides = [1, 1]} : vector<8x256xf32> to vector<8x128xf32>
    %41 = arith.truncf %40 : vector<8x128xf32> to vector<8x128xbf16>
    %42 = vector.extract_strided_slice %39 {offsets = [0, 128], sizes = [8, 128], strides = [1, 1]} : vector<8x256xf32> to vector<8x128xf32>
    %43 = tpu.transpose %42, [1, 0] : vector<8x128xf32> -> vector<128x8xf32>
    %44 = arith.truncf %43 : vector<128x8xf32> to vector<128x8xbf16>
    %45 = vector.extract_strided_slice %34 {offsets = [0, 512], sizes = [8, 128], strides = [1, 1]} : vector<8x640xf32> to vector<8x128xf32>
    %46 = arith.truncf %45 : vector<8x128xf32> to vector<8x128xbf16>
    %47 = vector.extract_strided_slice %41 {offsets = [0, 0], sizes = [8, 32], strides = [1, 1]} : vector<8x128xbf16> to vector<8x32xbf16>
    %48 = vector.extract_strided_slice %44 {offsets = [0, 0], sizes = [32, 8], strides = [1, 1]} : vector<128x8xbf16> to vector<32x8xbf16>
    %cst_24 = arith.constant dense<0.000000e+00> : vector<8x8xf32>
    %49 = tpu.matmul %47, %48, %cst_24 {dimension_numbers = #tpu.dot_dimension_numbers<[1], [0], [0], [1], [0, 0, 1, 1], [], []>} : vector<8x32xbf16>, vector<32x8xbf16>, vector<8x8xf32> -> vector<8x8xf32>
    %cst_25 = arith.constant 0.176776692 : f32
    %50 = vector.broadcast %cst_25 : f32 to vector<8x8xf32>
    %51 = arith.mulf %49, %50 : vector<8x8xf32>
    %52 = arith.addf %51, %13 : vector<8x8xf32>
    %cst_26 = arith.constant dense<0xFF800000> : vector<8xf32>
    %53 = vector.multi_reduction <maximumf>, %52, %cst_26 [1] : vector<8x8xf32> to vector<8xf32>
    %54 = vector.shape_cast %53 : vector<8xf32> to vector<8x1xf32>
    %55 = vector.broadcast %54 : vector<8x1xf32> to vector<8x8xf32>
    %56 = arith.subf %52, %55 : vector<8x8xf32>
    %57 = math.exp %56 : vector<8x8xf32>
    %cst_27 = arith.constant dense<0.000000e+00> : vector<8xf32>
    %58 = vector.multi_reduction <add>, %57, %cst_27 [1] : vector<8x8xf32> to vector<8xf32>
    %59 = vector.shape_cast %58 : vector<8xf32> to vector<8x1xf32>
    %60 = vector.broadcast %59 : vector<8x1xf32> to vector<8x8xf32>
    %61 = arith.divf %57, %60 : vector<8x8xf32>
    %62 = arith.truncf %61 : vector<8x8xf32> to vector<8x8xbf16>
    %63 = vector.extract_strided_slice %46 {offsets = [0, 0], sizes = [8, 32], strides = [1, 1]} : vector<8x128xbf16> to vector<8x32xbf16>
    %cst_28 = arith.constant dense<0.000000e+00> : vector<8x32xf32>
    %64 = tpu.matmul %62, %63, %cst_28 {dimension_numbers = #tpu.dot_dimension_numbers<[1], [0], [0], [1], [0, 0, 1, 1], [], []>} : vector<8x8xbf16>, vector<8x32xbf16>, vector<8x32xf32> -> vector<8x32xf32>
    %c0_29 = arith.constant 0 : index
    %c0_30 = arith.constant 0 : index
    %65 = vector.load %arg17[%c0_29, %c0_30] : memref<8x128xf32, #tpu.memory_space<vmem>>, vector<8x32xf32>
    tpu.vector_store %arg17[%c0_29, %c0_30], %64 {strides = array<i32>} : memref<8x128xf32, #tpu.memory_space<vmem>>, vector<8x32xf32>,
    %66 = vector.extract_strided_slice %41 {offsets = [0, 32], sizes = [8, 32], strides = [1, 1]} : vector<8x128xbf16> to vector<8x32xbf16>
    %67 = vector.extract_strided_slice %44 {offsets = [32, 0], sizes = [32, 8], strides = [1, 1]} : vector<128x8xbf16> to vector<32x8xbf16>
    %cst_31 = arith.constant dense<0.000000e+00> : vector<8x8xf32>
    %68 = tpu.matmul %66, %67, %cst_31 {dimension_numbers = #tpu.dot_dimension_numbers<[1], [0], [0], [1], [0, 0, 1, 1], [], []>} : vector<8x32xbf16>, vector<32x8xbf16>, vector<8x8xf32> -> vector<8x8xf32>
    %cst_32 = arith.constant 0.176776692 : f32
    %69 = vector.broadcast %cst_32 : f32 to vector<8x8xf32>
    %70 = arith.mulf %68, %69 : vector<8x8xf32>
    %71 = arith.addf %70, %13 : vector<8x8xf32>
    %cst_33 = arith.constant dense<0xFF800000> : vector<8xf32>
    %72 = vector.multi_reduction <maximumf>, %71, %cst_33 [1] : vector<8x8xf32> to vector<8xf32>
    %73 = vector.shape_cast %72 : vector<8xf32> to vector<8x1xf32>
    %74 = vector.broadcast %73 : vector<8x1xf32> to vector<8x8xf32>
    %75 = arith.subf %71, %74 : vector<8x8xf32>
    %76 = math.exp %75 : vector<8x8xf32>
    %cst_34 = arith.constant dense<0.000000e+00> : vector<8xf32>
    %77 = vector.multi_reduction <add>, %76, %cst_34 [1] : vector<8x8xf32> to vector<8xf32>
    %78 = vector.shape_cast %77 : vector<8xf32> to vector<8x1xf32>
    %79 = vector.broadcast %78 : vector<8x1xf32> to vector<8x8xf32>
    %80 = arith.divf %76, %79 : vector<8x8xf32>
    %81 = arith.truncf %80 : vector<8x8xf32> to vector<8x8xbf16>
    %82 = vector.extract_strided_slice %46 {offsets = [0, 32], sizes = [8, 32], strides = [1, 1]} : vector<8x128xbf16> to vector<8x32xbf16>
    %cst_35 = arith.constant dense<0.000000e+00> : vector<8x32xf32>
    %83 = tpu.matmul %81, %82, %cst_35 {dimension_numbers = #tpu.dot_dimension_numbers<[1], [0], [0], [1], [0, 0, 1, 1], [], []>} : vector<8x8xbf16>, vector<8x32xbf16>, vector<8x32xf32> -> vector<8x32xf32>
    %c0_36 = arith.constant 0 : index
    %c32 = arith.constant 32 : index
    %84 = vector.load %arg17[%c0_36, %c32] : memref<8x128xf32, #tpu.memory_space<vmem>>, vector<8x32xf32>
    tpu.vector_store %arg17[%c0_36, %c32], %83 {strides = array<i32>} : memref<8x128xf32, #tpu.memory_space<vmem>>, vector<8x32xf32>,
    %85 = vector.extract_strided_slice %41 {offsets = [0, 64], sizes = [8, 32], strides = [1, 1]} : vector<8x128xbf16> to vector<8x32xbf16>
    %86 = vector.extract_strided_slice %44 {offsets = [64, 0], sizes = [32, 8], strides = [1, 1]} : vector<128x8xbf16> to vector<32x8xbf16>
    %cst_37 = arith.constant dense<0.000000e+00> : vector<8x8xf32>
    %87 = tpu.matmul %85, %86, %cst_37 {dimension_numbers = #tpu.dot_dimension_numbers<[1], [0], [0], [1], [0, 0, 1, 1], [], []>} : vector<8x32xbf16>, vector<32x8xbf16>, vector<8x8xf32> -> vector<8x8xf32>
    %cst_38 = arith.constant 0.176776692 : f32
    %88 = vector.broadcast %cst_38 : f32 to vector<8x8xf32>
    %89 = arith.mulf %87, %88 : vector<8x8xf32>
    %90 = arith.addf %89, %13 : vector<8x8xf32>
    %cst_39 = arith.constant dense<0xFF800000> : vector<8xf32>
    %91 = vector.multi_reduction <maximumf>, %90, %cst_39 [1] : vector<8x8xf32> to vector<8xf32>
    %92 = vector.shape_cast %91 : vector<8xf32> to vector<8x1xf32>
    %93 = vector.broadcast %92 : vector<8x1xf32> to vector<8x8xf32>
    %94 = arith.subf %90, %93 : vector<8x8xf32>
    %95 = math.exp %94 : vector<8x8xf32>
    %cst_40 = arith.constant dense<0.000000e+00> : vector<8xf32>
    %96 = vector.multi_reduction <add>, %95, %cst_40 [1] : vector<8x8xf32> to vector<8xf32>
    %97 = vector.shape_cast %96 : vector<8xf32> to vector<8x1xf32>
    %98 = vector.broadcast %97 : vector<8x1xf32> to vector<8x8xf32>
    %99 = arith.divf %95, %98 : vector<8x8xf32>
    %100 = arith.truncf %99 : vector<8x8xf32> to vector<8x8xbf16>
    %101 = vector.extract_strided_slice %46 {offsets = [0, 64], sizes = [8, 32], strides = [1, 1]} : vector<8x128xbf16> to vector<8x32xbf16>
    %cst_41 = arith.constant dense<0.000000e+00> : vector<8x32xf32>
    %102 = tpu.matmul %100, %101, %cst_41 {dimension_numbers = #tpu.dot_dimension_numbers<[1], [0], [0], [1], [0, 0, 1, 1], [], []>} : vector<8x8xbf16>, vector<8x32xbf16>, vector<8x32xf32> -> vector<8x32xf32>
    %c0_42 = arith.constant 0 : index
    %c64 = arith.constant 64 : index
    %103 = vector.load %arg17[%c0_42, %c64] : memref<8x128xf32, #tpu.memory_space<vmem>>, vector<8x32xf32>
    tpu.vector_store %arg17[%c0_42, %c64], %102 {strides = array<i32>} : memref<8x128xf32, #tpu.memory_space<vmem>>, vector<8x32xf32>,
    %104 = vector.extract_strided_slice %41 {offsets = [0, 96], sizes = [8, 32], strides = [1, 1]} : vector<8x128xbf16> to vector<8x32xbf16>
    %105 = vector.extract_strided_slice %44 {offsets = [96, 0], sizes = [32, 8], strides = [1, 1]} : vector<128x8xbf16> to vector<32x8xbf16>
    %cst_43 = arith.constant dense<0.000000e+00> : vector<8x8xf32>
    %106 = tpu.matmul %104, %105, %cst_43 {dimension_numbers = #tpu.dot_dimension_numbers<[1], [0], [0], [1], [0, 0, 1, 1], [], []>} : vector<8x32xbf16>, vector<32x8xbf16>, vector<8x8xf32> -> vector<8x8xf32>
    %cst_44 = arith.constant 0.176776692 : f32
    %107 = vector.broadcast %cst_44 : f32 to vector<8x8xf32>
    %108 = arith.mulf %106, %107 : vector<8x8xf32>
    %109 = arith.addf %108, %13 : vector<8x8xf32>
    %cst_45 = arith.constant dense<0xFF800000> : vector<8xf32>
    %110 = vector.multi_reduction <maximumf>, %109, %cst_45 [1] : vector<8x8xf32> to vector<8xf32>
    %111 = vector.shape_cast %110 : vector<8xf32> to vector<8x1xf32>
    %112 = vector.broadcast %111 : vector<8x1xf32> to vector<8x8xf32>
    %113 = arith.subf %109, %112 : vector<8x8xf32>
    %114 = math.exp %113 : vector<8x8xf32>
    %cst_46 = arith.constant dense<0.000000e+00> : vector<8xf32>
    %115 = vector.multi_reduction <add>, %114, %cst_46 [1] : vector<8x8xf32> to vector<8xf32>
    %116 = vector.shape_cast %115 : vector<8xf32> to vector<8x1xf32>
    %117 = vector.broadcast %116 : vector<8x1xf32> to vector<8x8xf32>
    %118 = arith.divf %114, %117 : vector<8x8xf32>
    %119 = arith.truncf %118 : vector<8x8xf32> to vector<8x8xbf16>
    %120 = vector.extract_strided_slice %46 {offsets = [0, 96], sizes = [8, 32], strides = [1, 1]} : vector<8x128xbf16> to vector<8x32xbf16>
    %cst_47 = arith.constant dense<0.000000e+00> : vector<8x32xf32>
    %121 = tpu.matmul %119, %120, %cst_47 {dimension_numbers = #tpu.dot_dimension_numbers<[1], [0], [0], [1], [0, 0, 1, 1], [], []>} : vector<8x8xbf16>, vector<8x32xbf16>, vector<8x32xf32> -> vector<8x32xf32>
    %c0_48 = arith.constant 0 : index
    %c96 = arith.constant 96 : index
    %122 = vector.load %arg17[%c0_48, %c96] : memref<8x128xf32, #tpu.memory_space<vmem>>, vector<8x32xf32>
    tpu.vector_store %arg17[%c0_48, %c96], %121 {strides = array<i32>} : memref<8x128xf32, #tpu.memory_space<vmem>>, vector<8x32xf32>,
    %c0_49 = arith.constant 0 : index
    %c0_50 = arith.constant 0 : index
    %123 = vector.load %arg17[%c0_49, %c0_50] : memref<8x128xf32, #tpu.memory_space<vmem>>, vector<8x128xf32>
    %124 = arith.truncf %123 : vector<8x128xf32> to vector<8x128xbf16>
    %c0_51 = arith.constant 0 : index
    %c0_52 = arith.constant 0 : index
    %c0_53 = arith.constant 0 : index
    %125 = vector.load %arg10[%c0_51, %c0_52, %c0_53] : memref<2x128x128xbf16, #tpu.memory_space<vmem>>, vector<1x128x128xbf16>
    %126 = vector.shape_cast %125 : vector<1x128x128xbf16> to vector<128x128xbf16>
    %cst_54 = arith.constant dense<0.000000e+00> : vector<8x128xf32>
    %127 = tpu.matmul %124, %126, %cst_54 {dimension_numbers = #tpu.dot_dimension_numbers<[1], [0], [0], [1], [0, 0, 1, 1], [], []>} : vector<8x128xbf16>, vector<128x128xbf16>, vector<8x128xf32> -> vector<8x128xf32>
    %128 = arith.addf %16, %127 : vector<8x128xf32>
    %c0_55 = arith.constant 0 : index
    %c0_56 = arith.constant 0 : index
    %c0_57 = arith.constant 0 : index
    %129 = vector.load %arg11[%c0_55, %c0_56, %c0_57] : memref<2x1x128xf32, #tpu.memory_space<vmem>>, vector<1x1x128xf32>
    %130 = vector.shape_cast %129 : vector<1x1x128xf32> to vector<1x128xf32>
    %131 = arith.mulf %128, %128 : vector<8x128xf32>
    %cst_58 = arith.constant dense<0.000000e+00> : vector<8xf32>
    %132 = vector.multi_reduction <add>, %131, %cst_58 [1] : vector<8x128xf32> to vector<8xf32>
    %133 = vector.shape_cast %132 : vector<8xf32> to vector<8x1xf32>
    %cst_59 = arith.constant 1.280000e+02 : f32
    %134 = vector.broadcast %cst_59 : f32 to vector<8x1xf32>
    %135 = arith.divf %133, %134 : vector<8x1xf32>
    %cst_60 = arith.constant 9.99999974E-6 : f32
    %136 = vector.broadcast %cst_60 : f32 to vector<8x1xf32>
    %137 = arith.addf %135, %136 : vector<8x1xf32>
    %138 = math.rsqrt %137 : vector<8x1xf32>
    %139 = vector.broadcast %138 : vector<8x1xf32> to vector<8x128xf32>
    %140 = arith.mulf %128, %139 : vector<8x128xf32>
    %141 = vector.broadcast %130 : vector<1x128xf32> to vector<8x128xf32>
    %142 = arith.mulf %140, %141 : vector<8x128xf32>
    %143 = arith.truncf %142 : vector<8x128xf32> to vector<8x128xbf16>
    %c0_61 = arith.constant 0 : index
    %c0_62 = arith.constant 0 : index
    %c0_63 = arith.constant 0 : index
    %144 = vector.load %arg12[%c0_61, %c0_62, %c0_63] : memref<2x128x512xbf16, #tpu.memory_space<vmem>>, vector<1x128x512xbf16>
    %145 = vector.shape_cast %144 : vector<1x128x512xbf16> to vector<128x512xbf16>
    %cst_64 = arith.constant dense<0.000000e+00> : vector<8x512xf32>
    %146 = tpu.matmul %143, %145, %cst_64 {dimension_numbers = #tpu.dot_dimension_numbers<[1], [0], [0], [1], [0, 0, 1, 1], [], []>} : vector<8x128xbf16>, vector<128x512xbf16>, vector<8x512xf32> -> vector<8x512xf32>
    %147 = vector.extract_strided_slice %146 {offsets = [0, 0], sizes = [8, 256], strides = [1, 1]} : vector<8x512xf32> to vector<8x256xf32>
    %148 = vector.extract_strided_slice %146 {offsets = [0, 256], sizes = [8, 256], strides = [1, 1]} : vector<8x512xf32> to vector<8x256xf32>
    %149 = arith.negf %147 : vector<8x256xf32>
    %150 = math.exp %149 : vector<8x256xf32>
    %cst_65 = arith.constant 1.000000e+00 : f32
    %151 = vector.broadcast %cst_65 : f32 to vector<8x256xf32>
    %152 = arith.addf %151, %150 : vector<8x256xf32>
    %153 = arith.divf %151, %152 : vector<8x256xf32>
    %154 = arith.mulf %147, %153 : vector<8x256xf32>
    %155 = arith.mulf %154, %148 : vector<8x256xf32>
    %156 = arith.truncf %155 : vector<8x256xf32> to vector<8x256xbf16>
    %c0_66 = arith.constant 0 : index
    %c0_67 = arith.constant 0 : index
    %c0_68 = arith.constant 0 : index
    %157 = vector.load %arg13[%c0_66, %c0_67, %c0_68] : memref<2x256x128xbf16, #tpu.memory_space<vmem>>, vector<1x256x128xbf16>
    %158 = vector.shape_cast %157 : vector<1x256x128xbf16> to vector<256x128xbf16>
    %cst_69 = arith.constant dense<0.000000e+00> : vector<8x128xf32>
    %159 = tpu.matmul %156, %158, %cst_69 {dimension_numbers = #tpu.dot_dimension_numbers<[1], [0], [0], [1], [0, 0, 1, 1], [], []>} : vector<8x256xbf16>, vector<256x128xbf16>, vector<8x128xf32> -> vector<8x128xf32>
    %160 = arith.addf %128, %159 : vector<8x128xf32>
    %c1 = arith.constant 1 : index
    %c0_70 = arith.constant 0 : index
    %c0_71 = arith.constant 0 : index
    %161 = vector.load %arg8[%c1, %c0_70, %c0_71] : memref<2x1x128xf32, #tpu.memory_space<vmem>>, vector<1x1x128xf32>
    %162 = vector.shape_cast %161 : vector<1x1x128xf32> to vector<1x128xf32>
    %163 = arith.mulf %160, %160 : vector<8x128xf32>
    %cst_72 = arith.constant dense<0.000000e+00> : vector<8xf32>
    %164 = vector.multi_reduction <add>, %163, %cst_72 [1] : vector<8x128xf32> to vector<8xf32>
    %165 = vector.shape_cast %164 : vector<8xf32> to vector<8x1xf32>
    %cst_73 = arith.constant 1.280000e+02 : f32
    %166 = vector.broadcast %cst_73 : f32 to vector<8x1xf32>
    %167 = arith.divf %165, %166 : vector<8x1xf32>
    %cst_74 = arith.constant 9.99999974E-6 : f32
    %168 = vector.broadcast %cst_74 : f32 to vector<8x1xf32>
    %169 = arith.addf %167, %168 : vector<8x1xf32>
    %170 = math.rsqrt %169 : vector<8x1xf32>
    %171 = vector.broadcast %170 : vector<8x1xf32> to vector<8x128xf32>
    %172 = arith.mulf %160, %171 : vector<8x128xf32>
    %173 = vector.broadcast %162 : vector<1x128xf32> to vector<8x128xf32>
    %174 = arith.mulf %172, %173 : vector<8x128xf32>
    %175 = arith.truncf %174 : vector<8x128xf32> to vector<8x128xbf16>
    %c1_75 = arith.constant 1 : index
    %c0_76 = arith.constant 0 : index
    %c0_77 = arith.constant 0 : index
    %176 = vector.load %arg9[%c1_75, %c0_76, %c0_77] : memref<2x128x640xbf16, #tpu.memory_space<vmem>>, vector<1x128x640xbf16>
    %177 = vector.shape_cast %176 : vector<1x128x640xbf16> to vector<128x640xbf16>
    %cst_78 = arith.constant dense<0.000000e+00> : vector<8x640xf32>
    %178 = tpu.matmul %175, %177, %cst_78 {dimension_numbers = #tpu.dot_dimension_numbers<[1], [0], [0], [1], [0, 0, 1, 1], [], []>} : vector<8x128xbf16>, vector<128x640xbf16>, vector<8x640xf32> -> vector<8x640xf32>
    %179 = vector.extract_strided_slice %178 {offsets = [0, 0], sizes = [8, 256], strides = [1, 1]} : vector<8x640xf32> to vector<8x256xf32>
    %180 = arith.mulf %179, %14 : vector<8x256xf32>
    %181 = vector.extract_strided_slice %178 {offsets = [0, 256], sizes = [8, 256], strides = [1, 1]} : vector<8x640xf32> to vector<8x256xf32>
    %182 = arith.mulf %181, %15 : vector<8x256xf32>
    %183 = arith.addf %180, %182 : vector<8x256xf32>
    %184 = vector.extract_strided_slice %183 {offsets = [0, 0], sizes = [8, 128], strides = [1, 1]} : vector<8x256xf32> to vector<8x128xf32>
    %185 = arith.truncf %184 : vector<8x128xf32> to vector<8x128xbf16>
    %186 = vector.extract_strided_slice %183 {offsets = [0, 128], sizes = [8, 128], strides = [1, 1]} : vector<8x256xf32> to vector<8x128xf32>
    %187 = tpu.transpose %186, [1, 0] : vector<8x128xf32> -> vector<128x8xf32>
    %188 = arith.truncf %187 : vector<128x8xf32> to vector<128x8xbf16>
    %189 = vector.extract_strided_slice %178 {offsets = [0, 512], sizes = [8, 128], strides = [1, 1]} : vector<8x640xf32> to vector<8x128xf32>
    %190 = arith.truncf %189 : vector<8x128xf32> to vector<8x128xbf16>
    %191 = vector.extract_strided_slice %185 {offsets = [0, 0], sizes = [8, 32], strides = [1, 1]} : vector<8x128xbf16> to vector<8x32xbf16>
    %192 = vector.extract_strided_slice %188 {offsets = [0, 0], sizes = [32, 8], strides = [1, 1]} : vector<128x8xbf16> to vector<32x8xbf16>
    %cst_79 = arith.constant dense<0.000000e+00> : vector<8x8xf32>
    %193 = tpu.matmul %191, %192, %cst_79 {dimension_numbers = #tpu.dot_dimension_numbers<[1], [0], [0], [1], [0, 0, 1, 1], [], []>} : vector<8x32xbf16>, vector<32x8xbf16>, vector<8x8xf32> -> vector<8x8xf32>
    %cst_80 = arith.constant 0.176776692 : f32
    %194 = vector.broadcast %cst_80 : f32 to vector<8x8xf32>
    %195 = arith.mulf %193, %194 : vector<8x8xf32>
    %196 = arith.addf %195, %13 : vector<8x8xf32>
    %cst_81 = arith.constant dense<0xFF800000> : vector<8xf32>
    %197 = vector.multi_reduction <maximumf>, %196, %cst_81 [1] : vector<8x8xf32> to vector<8xf32>
    %198 = vector.shape_cast %197 : vector<8xf32> to vector<8x1xf32>
    %199 = vector.broadcast %198 : vector<8x1xf32> to vector<8x8xf32>
    %200 = arith.subf %196, %199 : vector<8x8xf32>
    %201 = math.exp %200 : vector<8x8xf32>
    %cst_82 = arith.constant dense<0.000000e+00> : vector<8xf32>
    %202 = vector.multi_reduction <add>, %201, %cst_82 [1] : vector<8x8xf32> to vector<8xf32>
    %203 = vector.shape_cast %202 : vector<8xf32> to vector<8x1xf32>
    %204 = vector.broadcast %203 : vector<8x1xf32> to vector<8x8xf32>
    %205 = arith.divf %201, %204 : vector<8x8xf32>
    %206 = arith.truncf %205 : vector<8x8xf32> to vector<8x8xbf16>
    %207 = vector.extract_strided_slice %190 {offsets = [0, 0], sizes = [8, 32], strides = [1, 1]} : vector<8x128xbf16> to vector<8x32xbf16>
    %cst_83 = arith.constant dense<0.000000e+00> : vector<8x32xf32>
    %208 = tpu.matmul %206, %207, %cst_83 {dimension_numbers = #tpu.dot_dimension_numbers<[1], [0], [0], [1], [0, 0, 1, 1], [], []>} : vector<8x8xbf16>, vector<8x32xbf16>, vector<8x32xf32> -> vector<8x32xf32>
    %c0_84 = arith.constant 0 : index
    %c0_85 = arith.constant 0 : index
    %209 = vector.load %arg17[%c0_84, %c0_85] : memref<8x128xf32, #tpu.memory_space<vmem>>, vector<8x32xf32>
    tpu.vector_store %arg17[%c0_84, %c0_85], %208 {strides = array<i32>} : memref<8x128xf32, #tpu.memory_space<vmem>>, vector<8x32xf32>,
    %210 = vector.extract_strided_slice %185 {offsets = [0, 32], sizes = [8, 32], strides = [1, 1]} : vector<8x128xbf16> to vector<8x32xbf16>
    %211 = vector.extract_strided_slice %188 {offsets = [32, 0], sizes = [32, 8], strides = [1, 1]} : vector<128x8xbf16> to vector<32x8xbf16>
    %cst_86 = arith.constant dense<0.000000e+00> : vector<8x8xf32>
    %212 = tpu.matmul %210, %211, %cst_86 {dimension_numbers = #tpu.dot_dimension_numbers<[1], [0], [0], [1], [0, 0, 1, 1], [], []>} : vector<8x32xbf16>, vector<32x8xbf16>, vector<8x8xf32> -> vector<8x8xf32>
    %cst_87 = arith.constant 0.176776692 : f32
    %213 = vector.broadcast %cst_87 : f32 to vector<8x8xf32>
    %214 = arith.mulf %212, %213 : vector<8x8xf32>
    %215 = arith.addf %214, %13 : vector<8x8xf32>
    %cst_88 = arith.constant dense<0xFF800000> : vector<8xf32>
    %216 = vector.multi_reduction <maximumf>, %215, %cst_88 [1] : vector<8x8xf32> to vector<8xf32>
    %217 = vector.shape_cast %216 : vector<8xf32> to vector<8x1xf32>
    %218 = vector.broadcast %217 : vector<8x1xf32> to vector<8x8xf32>
    %219 = arith.subf %215, %218 : vector<8x8xf32>
    %220 = math.exp %219 : vector<8x8xf32>
    %cst_89 = arith.constant dense<0.000000e+00> : vector<8xf32>
    %221 = vector.multi_reduction <add>, %220, %cst_89 [1] : vector<8x8xf32> to vector<8xf32>
    %222 = vector.shape_cast %221 : vector<8xf32> to vector<8x1xf32>
    %223 = vector.broadcast %222 : vector<8x1xf32> to vector<8x8xf32>
    %224 = arith.divf %220, %223 : vector<8x8xf32>
    %225 = arith.truncf %224 : vector<8x8xf32> to vector<8x8xbf16>
    %226 = vector.extract_strided_slice %190 {offsets = [0, 32], sizes = [8, 32], strides = [1, 1]} : vector<8x128xbf16> to vector<8x32xbf16>
    %cst_90 = arith.constant dense<0.000000e+00> : vector<8x32xf32>
    %227 = tpu.matmul %225, %226, %cst_90 {dimension_numbers = #tpu.dot_dimension_numbers<[1], [0], [0], [1], [0, 0, 1, 1], [], []>} : vector<8x8xbf16>, vector<8x32xbf16>, vector<8x32xf32> -> vector<8x32xf32>
    %c0_91 = arith.constant 0 : index
    %c32_92 = arith.constant 32 : index
    %228 = vector.load %arg17[%c0_91, %c32_92] : memref<8x128xf32, #tpu.memory_space<vmem>>, vector<8x32xf32>
    tpu.vector_store %arg17[%c0_91, %c32_92], %227 {strides = array<i32>} : memref<8x128xf32, #tpu.memory_space<vmem>>, vector<8x32xf32>,
    %229 = vector.extract_strided_slice %185 {offsets = [0, 64], sizes = [8, 32], strides = [1, 1]} : vector<8x128xbf16> to vector<8x32xbf16>
    %230 = vector.extract_strided_slice %188 {offsets = [64, 0], sizes = [32, 8], strides = [1, 1]} : vector<128x8xbf16> to vector<32x8xbf16>
    %cst_93 = arith.constant dense<0.000000e+00> : vector<8x8xf32>
    %231 = tpu.matmul %229, %230, %cst_93 {dimension_numbers = #tpu.dot_dimension_numbers<[1], [0], [0], [1], [0, 0, 1, 1], [], []>} : vector<8x32xbf16>, vector<32x8xbf16>, vector<8x8xf32> -> vector<8x8xf32>
    %cst_94 = arith.constant 0.176776692 : f32
    %232 = vector.broadcast %cst_94 : f32 to vector<8x8xf32>
    %233 = arith.mulf %231, %232 : vector<8x8xf32>
    %234 = arith.addf %233, %13 : vector<8x8xf32>
    %cst_95 = arith.constant dense<0xFF800000> : vector<8xf32>
    %235 = vector.multi_reduction <maximumf>, %234, %cst_95 [1] : vector<8x8xf32> to vector<8xf32>
    %236 = vector.shape_cast %235 : vector<8xf32> to vector<8x1xf32>
    %237 = vector.broadcast %236 : vector<8x1xf32> to vector<8x8xf32>
    %238 = arith.subf %234, %237 : vector<8x8xf32>
    %239 = math.exp %238 : vector<8x8xf32>
    %cst_96 = arith.constant dense<0.000000e+00> : vector<8xf32>
    %240 = vector.multi_reduction <add>, %239, %cst_96 [1] : vector<8x8xf32> to vector<8xf32>
    %241 = vector.shape_cast %240 : vector<8xf32> to vector<8x1xf32>
    %242 = vector.broadcast %241 : vector<8x1xf32> to vector<8x8xf32>
    %243 = arith.divf %239, %242 : vector<8x8xf32>
    %244 = arith.truncf %243 : vector<8x8xf32> to vector<8x8xbf16>
    %245 = vector.extract_strided_slice %190 {offsets = [0, 64], sizes = [8, 32], strides = [1, 1]} : vector<8x128xbf16> to vector<8x32xbf16>
    %cst_97 = arith.constant dense<0.000000e+00> : vector<8x32xf32>
    %246 = tpu.matmul %244, %245, %cst_97 {dimension_numbers = #tpu.dot_dimension_numbers<[1], [0], [0], [1], [0, 0, 1, 1], [], []>} : vector<8x8xbf16>, vector<8x32xbf16>, vector<8x32xf32> -> vector<8x32xf32>
    %c0_98 = arith.constant 0 : index
    %c64_99 = arith.constant 64 : index
    %247 = vector.load %arg17[%c0_98, %c64_99] : memref<8x128xf32, #tpu.memory_space<vmem>>, vector<8x32xf32>
    tpu.vector_store %arg17[%c0_98, %c64_99], %246 {strides = array<i32>} : memref<8x128xf32, #tpu.memory_space<vmem>>, vector<8x32xf32>,
    %248 = vector.extract_strided_slice %185 {offsets = [0, 96], sizes = [8, 32], strides = [1, 1]} : vector<8x128xbf16> to vector<8x32xbf16>
    %249 = vector.extract_strided_slice %188 {offsets = [96, 0], sizes = [32, 8], strides = [1, 1]} : vector<128x8xbf16> to vector<32x8xbf16>
    %cst_100 = arith.constant dense<0.000000e+00> : vector<8x8xf32>
    %250 = tpu.matmul %248, %249, %cst_100 {dimension_numbers = #tpu.dot_dimension_numbers<[1], [0], [0], [1], [0, 0, 1, 1], [], []>} : vector<8x32xbf16>, vector<32x8xbf16>, vector<8x8xf32> -> vector<8x8xf32>
    %cst_101 = arith.constant 0.176776692 : f32
    %251 = vector.broadcast %cst_101 : f32 to vector<8x8xf32>
    %252 = arith.mulf %250, %251 : vector<8x8xf32>
    %253 = arith.addf %252, %13 : vector<8x8xf32>
    %cst_102 = arith.constant dense<0xFF800000> : vector<8xf32>
    %254 = vector.multi_reduction <maximumf>, %253, %cst_102 [1] : vector<8x8xf32> to vector<8xf32>
    %255 = vector.shape_cast %254 : vector<8xf32> to vector<8x1xf32>
    %256 = vector.broadcast %255 : vector<8x1xf32> to vector<8x8xf32>
    %257 = arith.subf %253, %256 : vector<8x8xf32>
    %258 = math.exp %257 : vector<8x8xf32>
    %cst_103 = arith.constant dense<0.000000e+00> : vector<8xf32>
    %259 = vector.multi_reduction <add>, %258, %cst_103 [1] : vector<8x8xf32> to vector<8xf32>
    %260 = vector.shape_cast %259 : vector<8xf32> to vector<8x1xf32>
    %261 = vector.broadcast %260 : vector<8x1xf32> to vector<8x8xf32>
    %262 = arith.divf %258, %261 : vector<8x8xf32>
    %263 = arith.truncf %262 : vector<8x8xf32> to vector<8x8xbf16>
    %264 = vector.extract_strided_slice %190 {offsets = [0, 96], sizes = [8, 32], strides = [1, 1]} : vector<8x128xbf16> to vector<8x32xbf16>
    %cst_104 = arith.constant dense<0.000000e+00> : vector<8x32xf32>
    %265 = tpu.matmul %263, %264, %cst_104 {dimension_numbers = #tpu.dot_dimension_numbers<[1], [0], [0], [1], [0, 0, 1, 1], [], []>} : vector<8x8xbf16>, vector<8x32xbf16>, vector<8x32xf32> -> vector<8x32xf32>
    %c0_105 = arith.constant 0 : index
    %c96_106 = arith.constant 96 : index
    %266 = vector.load %arg17[%c0_105, %c96_106] : memref<8x128xf32, #tpu.memory_space<vmem>>, vector<8x32xf32>
    tpu.vector_store %arg17[%c0_105, %c96_106], %265 {strides = array<i32>} : memref<8x128xf32, #tpu.memory_space<vmem>>, vector<8x32xf32>,
    %c0_107 = arith.constant 0 : index
    %c0_108 = arith.constant 0 : index
    %267 = vector.load %arg17[%c0_107, %c0_108] : memref<8x128xf32, #tpu.memory_space<vmem>>, vector<8x128xf32>
    %268 = arith.truncf %267 : vector<8x128xf32> to vector<8x128xbf16>
    %c1_109 = arith.constant 1 : index
    %c0_110 = arith.constant 0 : index
    %c0_111 = arith.constant 0 : index
    %269 = vector.load %arg10[%c1_109, %c0_110, %c0_111] : memref<2x128x128xbf16, #tpu.memory_space<vmem>>, vector<1x128x128xbf16>
    %270 = vector.shape_cast %269 : vector<1x128x128xbf16> to vector<128x128xbf16>
    %cst_112 = arith.constant dense<0.000000e+00> : vector<8x128xf32>
    %271 = tpu.matmul %268, %270, %cst_112 {dimension_numbers = #tpu.dot_dimension_numbers<[1], [0], [0], [1], [0, 0, 1, 1], [], []>} : vector<8x128xbf16>, vector<128x128xbf16>, vector<8x128xf32> -> vector<8x128xf32>
    %272 = arith.addf %160, %271 : vector<8x128xf32>
    %c1_113 = arith.constant 1 : index
    %c0_114 = arith.constant 0 : index
    %c0_115 = arith.constant 0 : index
    %273 = vector.load %arg11[%c1_113, %c0_114, %c0_115] : memref<2x1x128xf32, #tpu.memory_space<vmem>>, vector<1x1x128xf32>
    %274 = vector.shape_cast %273 : vector<1x1x128xf32> to vector<1x128xf32>
    %275 = arith.mulf %272, %272 : vector<8x128xf32>
    %cst_116 = arith.constant dense<0.000000e+00> : vector<8xf32>
    %276 = vector.multi_reduction <add>, %275, %cst_116 [1] : vector<8x128xf32> to vector<8xf32>
    %277 = vector.shape_cast %276 : vector<8xf32> to vector<8x1xf32>
    %cst_117 = arith.constant 1.280000e+02 : f32
    %278 = vector.broadcast %cst_117 : f32 to vector<8x1xf32>
    %279 = arith.divf %277, %278 : vector<8x1xf32>
    %cst_118 = arith.constant 9.99999974E-6 : f32
    %280 = vector.broadcast %cst_118 : f32 to vector<8x1xf32>
    %281 = arith.addf %279, %280 : vector<8x1xf32>
    %282 = math.rsqrt %281 : vector<8x1xf32>
    %283 = vector.broadcast %282 : vector<8x1xf32> to vector<8x128xf32>
    %284 = arith.mulf %272, %283 : vector<8x128xf32>
    %285 = vector.broadcast %274 : vector<1x128xf32> to vector<8x128xf32>
    %286 = arith.mulf %284, %285 : vector<8x128xf32>
    %287 = arith.truncf %286 : vector<8x128xf32> to vector<8x128xbf16>
    %c1_119 = arith.constant 1 : index
    %c0_120 = arith.constant 0 : index
    %c0_121 = arith.constant 0 : index
    %288 = vector.load %arg12[%c1_119, %c0_120, %c0_121] : memref<2x128x512xbf16, #tpu.memory_space<vmem>>, vector<1x128x512xbf16>
    %289 = vector.shape_cast %288 : vector<1x128x512xbf16> to vector<128x512xbf16>
    %cst_122 = arith.constant dense<0.000000e+00> : vector<8x512xf32>
    %290 = tpu.matmul %287, %289, %cst_122 {dimension_numbers = #tpu.dot_dimension_numbers<[1], [0], [0], [1], [0, 0, 1, 1], [], []>} : vector<8x128xbf16>, vector<128x512xbf16>, vector<8x512xf32> -> vector<8x512xf32>
    %291 = vector.extract_strided_slice %290 {offsets = [0, 0], sizes = [8, 256], strides = [1, 1]} : vector<8x512xf32> to vector<8x256xf32>
    %292 = vector.extract_strided_slice %290 {offsets = [0, 256], sizes = [8, 256], strides = [1, 1]} : vector<8x512xf32> to vector<8x256xf32>
    %293 = arith.negf %291 : vector<8x256xf32>
    %294 = math.exp %293 : vector<8x256xf32>
    %cst_123 = arith.constant 1.000000e+00 : f32
    %295 = vector.broadcast %cst_123 : f32 to vector<8x256xf32>
    %296 = arith.addf %295, %294 : vector<8x256xf32>
    %297 = arith.divf %295, %296 : vector<8x256xf32>
    %298 = arith.mulf %291, %297 : vector<8x256xf32>
    %299 = arith.mulf %298, %292 : vector<8x256xf32>
    %300 = arith.truncf %299 : vector<8x256xf32> to vector<8x256xbf16>
    %c1_124 = arith.constant 1 : index
    %c0_125 = arith.constant 0 : index
    %c0_126 = arith.constant 0 : index
    %301 = vector.load %arg13[%c1_124, %c0_125, %c0_126] : memref<2x256x128xbf16, #tpu.memory_space<vmem>>, vector<1x256x128xbf16>
    %302 = vector.shape_cast %301 : vector<1x256x128xbf16> to vector<256x128xbf16>
    %cst_127 = arith.constant dense<0.000000e+00> : vector<8x128xf32>
    %303 = tpu.matmul %300, %302, %cst_127 {dimension_numbers = #tpu.dot_dimension_numbers<[1], [0], [0], [1], [0, 0, 1, 1], [], []>} : vector<8x256xbf16>, vector<256x128xbf16>, vector<8x128xf32> -> vector<8x128xf32>
    %304 = arith.addf %272, %303 : vector<8x128xf32>
    %c0_128 = arith.constant 0 : index
    %c0_129 = arith.constant 0 : index
    %305 = vector.load %arg14[%c0_128, %c0_129] : memref<1x128xf32, #tpu.memory_space<vmem>>, vector<1x128xf32>
    %306 = arith.mulf %304, %304 : vector<8x128xf32>
    %cst_130 = arith.constant dense<0.000000e+00> : vector<8xf32>
    %307 = vector.multi_reduction <add>, %306, %cst_130 [1] : vector<8x128xf32> to vector<8xf32>
    %308 = vector.shape_cast %307 : vector<8xf32> to vector<8x1xf32>
    %cst_131 = arith.constant 1.280000e+02 : f32
    %309 = vector.broadcast %cst_131 : f32 to vector<8x1xf32>
    %310 = arith.divf %308, %309 : vector<8x1xf32>
    %cst_132 = arith.constant 9.99999974E-6 : f32
    %311 = vector.broadcast %cst_132 : f32 to vector<8x1xf32>
    %312 = arith.addf %310, %311 : vector<8x1xf32>
    %313 = math.rsqrt %312 : vector<8x1xf32>
    %314 = vector.broadcast %313 : vector<8x1xf32> to vector<8x128xf32>
    %315 = arith.mulf %304, %314 : vector<8x128xf32>
    %316 = vector.broadcast %305 : vector<1x128xf32> to vector<8x128xf32>
    %317 = arith.mulf %315, %316 : vector<8x128xf32>
    %318 = arith.truncf %317 : vector<8x128xf32> to vector<8x128xbf16>
    %c0_133 = arith.constant 0 : index
    %c0_134 = arith.constant 0 : index
    %319 = vector.load %arg15[%c0_133, %c0_134] : memref<128x128xbf16, #tpu.memory_space<vmem>>, vector<128x128xbf16>
    %cst_135 = arith.constant dense<0.000000e+00> : vector<8x128xf32>
    %320 = tpu.matmul %318, %319, %cst_135 {dimension_numbers = #tpu.dot_dimension_numbers<[1], [0], [0], [1], [0, 0, 1, 1], [], []>} : vector<8x128xbf16>, vector<128x128xbf16>, vector<8x128xf32> -> vector<8x128xf32>
    %c0_136 = arith.constant 0 : index
    %c0_137 = arith.constant 0 : index
    %321 = vector.load %arg16[%c0_136, %c0_137] : memref<8x128xf32, #tpu.memory_space<vmem>>, vector<8x128xf32>
    tpu.vector_store %arg16[%c0_136, %c0_137], %320 {strides = array<i32>} : memref<8x128xf32, #tpu.memory_space<vmem>>, vector<8x128xf32>,
    return
  }
  func.func @transform_0(%arg0: i32) -> (i32, i32) {
    %c0_i32 = arith.constant 0 : i32
    %c0_i32_0 = arith.constant 0 : i32
    %c0_i32_1 = arith.constant 0 : i32
    return %c0_i32, %c0_i32_0 : i32, i32
  }
  func.func @transform_1(%arg0: i32) -> (i32, i32) {
    %c0_i32 = arith.constant 0 : i32
    %c0_i32_0 = arith.constant 0 : i32
    %c0_i32_1 = arith.constant 0 : i32
    return %c0_i32, %c0_i32_0 : i32, i32
  }
  func.func @transform_2(%arg0: i32) -> (i32, i32) {
    %c0_i32 = arith.constant 0 : i32
    %c0_i32_0 = arith.constant 0 : i32
    %c0_i32_1 = arith.constant 0 : i32
    return %c0_i32, %c0_i32_0 : i32, i32
  }
  func.func @transform_3(%arg0: i32) -> (i32, i32) {
    %c0_i32 = arith.constant 0 : i32
    %c0_i32_0 = arith.constant 0 : i32
    %c0_i32_1 = arith.constant 0 : i32
    return %c0_i32, %c0_i32_0 : i32, i32
  }
  func.func @transform_4(%arg0: i32) -> (i32, i32) {
    %c0_i32 = arith.constant 0 : i32
    %c0_i32_0 = arith.constant 0 : i32
    %c0_i32_1 = arith.constant 0 : i32
    return %c0_i32, %c0_i32_0 : i32, i32
  }
  func.func @transform_5(%arg0: i32) -> (i32, i32) {
    %c0_i32 = arith.constant 0 : i32
    %c0_i32_0 = arith.constant 0 : i32
    %c0_i32_1 = arith.constant 0 : i32
    return %c0_i32, %c0_i32_0 : i32, i32
  }
  func.func @transform_6(%arg0: i32) -> (i32, i32) {
    %c0_i32 = arith.constant 0 : i32
    %c0_i32_0 = arith.constant 0 : i32
    %c0_i32_1 = arith.constant 0 : i32
    return %c0_i32, %c0_i32_0 : i32, i32
  }
  func.func @transform_7(%arg0: i32) -> (i32, i32, i32) {
    %c0_i32 = arith.constant 0 : i32
    %c0_i32_0 = arith.constant 0 : i32
    %c0_i32_1 = arith.constant 0 : i32
    %c0_i32_2 = arith.constant 0 : i32
    return %c0_i32, %c0_i32_0, %c0_i32_1 : i32, i32, i32
  }
  func.func @transform_8(%arg0: i32) -> (i32, i32, i32) {
    %c0_i32 = arith.constant 0 : i32
    %c0_i32_0 = arith.constant 0 : i32
    %c0_i32_1 = arith.constant 0 : i32
    %c0_i32_2 = arith.constant 0 : i32
    return %c0_i32, %c0_i32_0, %c0_i32_1 : i32, i32, i32
  }
  func.func @transform_9(%arg0: i32) -> (i32, i32, i32) {
    %c0_i32 = arith.constant 0 : i32
    %c0_i32_0 = arith.constant 0 : i32
    %c0_i32_1 = arith.constant 0 : i32
    %c0_i32_2 = arith.constant 0 : i32
    return %c0_i32, %c0_i32_0, %c0_i32_1 : i32, i32, i32
  }
  func.func @transform_10(%arg0: i32) -> (i32, i32, i32) {
    %c0_i32 = arith.constant 0 : i32
    %c0_i32_0 = arith.constant 0 : i32
    %c0_i32_1 = arith.constant 0 : i32
    %c0_i32_2 = arith.constant 0 : i32
    return %c0_i32, %c0_i32_0, %c0_i32_1 : i32, i32, i32
  }
  func.func @transform_11(%arg0: i32) -> (i32, i32, i32) {
    %c0_i32 = arith.constant 0 : i32
    %c0_i32_0 = arith.constant 0 : i32
    %c0_i32_1 = arith.constant 0 : i32
    %c0_i32_2 = arith.constant 0 : i32
    return %c0_i32, %c0_i32_0, %c0_i32_1 : i32, i32, i32
  }
  func.func @transform_12(%arg0: i32) -> (i32, i32, i32) {
    %c0_i32 = arith.constant 0 : i32
    %c0_i32_0 = arith.constant 0 : i32
    %c0_i32_1 = arith.constant 0 : i32
    %c0_i32_2 = arith.constant 0 : i32
    return %c0_i32, %c0_i32_0, %c0_i32_1 : i32, i32, i32
  }
  func.func @transform_13(%arg0: i32) -> (i32, i32) {
    %c0_i32 = arith.constant 0 : i32
    %c0_i32_0 = arith.constant 0 : i32
    %c0_i32_1 = arith.constant 0 : i32
    return %c0_i32, %c0_i32_0 : i32, i32
  }
  func.func @transform_14(%arg0: i32) -> (i32, i32) {
    %c0_i32 = arith.constant 0 : i32
    %c0_i32_0 = arith.constant 0 : i32
    %c0_i32_1 = arith.constant 0 : i32
    return %c0_i32, %c0_i32_0 : i32, i32
  }
  func.func @transform_15(%arg0: i32) -> (i32, i32) {
    %c0_i32 = arith.constant 0 : i32
    %c0_i32_0 = arith.constant 0 : i32
    %c0_i32_1 = arith.constant 0 : i32
    return %c0_i32, %c0_i32_0 : i32, i32
  }
}

</mosaic_0001>

<llo_original>
// kernel: forward.1
$region0: #{forward.1}
  #allocation0 [shape = 'u32[]', space=smem, size = 0x4, offset = 0x4, fixed_abs, tag = 'smem constant byte address 0x4 - core index']
  #allocation1 [shape = 'u32[72,128]{1,0:T(1,128)}', space=vmem, size = 0x9000, scoped, tag = 'internal scratch']
  #allocation2 [shape = 'f32[8,128]{1,0:T(8,128)}', space=vmem, size = 0x1000, scoped, tag = 'scratch operand']
  %s0 = inlined_call_operand.vmem [shape: f32[8,128], index: 0, kind: input, shape index: {}]
  %s1 = inlined_call_operand.vmem [shape: s32[8,1], index: 1, kind: input, shape index: {}]
  %s2 = inlined_call_operand.vmem [shape: s32[1,8], index: 2, kind: input, shape index: {}]
  %s3 = inlined_call_operand.vmem [shape: s32[8,1], index: 3, kind: input, shape index: {}]
  %s4 = inlined_call_operand.vmem [shape: s32[1,8], index: 4, kind: input, shape index: {}]
  %s5 = inlined_call_operand.vmem [shape: f32[8,256], index: 5, kind: input, shape index: {}]
  %s6 = inlined_call_operand.vmem [shape: f32[8,256], index: 6, kind: input, shape index: {}]
  %s7 = inlined_call_operand.vmem [shape: f32[2,1,128], index: 7, kind: input, shape index: {}]
  %s8 = inlined_call_operand.hbm [shape: bf16[2,128,640], index: 8, kind: input, shape index: {}]
  %s9 = inlined_call_operand.hbm [shape: bf16[2,128,128], index: 9, kind: input, shape index: {}]
  %s10 = inlined_call_operand.vmem [shape: f32[2,1,128], index: 10, kind: input, shape index: {}]
  %s11 = inlined_call_operand.hbm [shape: bf16[2,128,512], index: 11, kind: input, shape index: {}]
  %s12 = inlined_call_operand.hbm [shape: bf16[2,256,128], index: 12, kind: input, shape index: {}]
  %s13 = inlined_call_operand.hbm [shape: f32[1,128], index: 13, kind: input, shape index: {}]
  %s14 = inlined_call_operand.vmem [shape: bf16[128,128], index: 14, kind: input, shape index: {}]
  %s15 = inlined_call_operand.hbm [shape: f32[8,128], index: 15, kind: output, shape index: {}]
  %s16 = sld [smem:[#allocation0]]
  $region90: #{forward.1} parent=0
    _
  %s18 = ssub.s32 1, %s16
  %s19 = scalar_select 0, %s18, %s16
  $region1: #{forward.1} parent=0
    #allocation3 [shape = 'u8[327680]{0}', space=vmem, size = 0x50000, scoped, tag = 'input window, operand 8, single buffered']
    #allocation4 [shape = 's32[1]{0}', space=sflag, size = 0x4, scoped, tag = 'scoped memory for forward.1']
    #allocation5 [shape = 's32[1]{0}', space=sflag, size = 0x4, scoped, tag = 'scoped memory for forward.1']
    #allocation6 [shape = 'u8[65536]{0}', space=vmem, size = 0x10000, scoped, tag = 'input window, operand 9, single buffered']
    #allocation7 [shape = 's32[1]{0}', space=sflag, size = 0x4, scoped, tag = 'scoped memory for forward.1']
    #allocation8 [shape = 'u8[262144]{0}', space=vmem, size = 0x40000, scoped, tag = 'input window, operand 11, single buffered']
    #allocation9 [shape = 'u8[131072]{0}', space=vmem, size = 0x20000, scoped, tag = 'input window, operand 12, single buffered']
    #allocation10 [shape = 's32[1]{0}', space=sflag, size = 0x4, scoped, tag = 'scoped memory for forward.1']
    #allocation11 [shape = 'u8[512]{0}', space=vmem, size = 0x400, scoped, tag = 'input window, operand 13, single buffered']
    #allocation12 [shape = 'u8[4096]{0}', space=vmem, size = 0x1000, scoped, tag = 'output window, operand 0, single buffered']
    %20 = vsyncpa [#allocation4], 0
    %21 = vsyncpa [#allocation7], 0
    %22 = vsyncpa [#allocation10], 0
    %23 = vsyncpa [#allocation5], 0
    // Predicated region
    $region2: #{forward.1} parent=1 // pred_check
      _
    $region3: #{forward.1} parent=1 // pred_check_branch
      %25 = sbr.rel (0) target = $region5
    $region4: #{forward.1} parent=1 // pred_region
      _
    $region5: #{forward.1} parent=1 // pred_fallthru
      _
    // Predicated region
    $region6: #{forward.1} parent=1 // pred_check
      _
    $region7: #{forward.1} parent=1 // pred_check_branch
      %27 = sbr.rel (0) target = $region9
    $region8: #{forward.1} parent=1 // pred_region
      _
    $region9: #{forward.1} parent=1 // pred_fallthru
      _
    // Predicated region
    $region10: #{forward.1} parent=1 // pred_check
      _
    $region11: #{forward.1} parent=1 // pred_check_branch
      %29 = sbr.rel (0) target = $region13
    $region12: #{forward.1} parent=1 // pred_region
      _
    $region13: #{forward.1} parent=1 // pred_fallthru
      _
    // Predicated region
    $region14: #{forward.1} parent=1 // pred_check
      _
    $region15: #{forward.1} parent=1 // pred_check_branch
      %31 = sbr.rel (0) target = $region17
    $region16: #{forward.1} parent=1 // pred_region
      _
    $region17: #{forward.1} parent=1 // pred_fallthru
      _
    // Predicated region
    $region18: #{forward.1} parent=1 // pred_check
      _
    $region19: #{forward.1} parent=1 // pred_check_branch
      %33 = sbr.rel (0) target = $region21
    $region20: #{forward.1} parent=1 // pred_region
      _
    $region21: #{forward.1} parent=1 // pred_fallthru
      _
    // Predicated region
    $region22: #{forward.1} parent=1 // pred_check
      _
    $region23: #{forward.1} parent=1 // pred_check_branch
      %35 = sbr.rel (0) target = $region25
    $region24: #{forward.1} parent=1 // pred_region
      _
    $region25: #{forward.1} parent=1 // pred_fallthru
      _
    // Predicated region
    $region26: #{forward.1} parent=1 // pred_check
      _
    $region27: #{forward.1} parent=1 // pred_check_branch
      %37 = sbr.rel (0) target = $region29
    $region28: #{forward.1} parent=1 // pred_region
      _
    $region29: #{forward.1} parent=1 // pred_fallthru
      _
    // Predicated region
    $region30: #{forward.1} parent=1 // pred_check
      _
    $region31: #{forward.1} parent=1 // pred_check_branch
      %39 = sbr.rel (0) target = $region33
    $region32: #{forward.1} parent=1 // pred_region
      _
    $region33: #{forward.1} parent=1 // pred_fallthru
      _
    // Predicated region
    $region34: #{forward.1} parent=1 // pred_check
      _
    $region35: #{forward.1} parent=1 // pred_check_branch
      %41 = sbr.rel (0) target = $region37
    $region36: #{forward.1} parent=1 // pred_region
      %43 = vsyncadd [#allocation4], 0
      %s44 = sshll.u32 %s8, 4
      %s45 = int_to_ptr.hbm [resolvable:$true] %s44
      %s46 = sshll.u32 [#allocation3], 4
      %s47 = int_to_ptr.vmem [resolvable:$true] %s46
      %52 = dma.hbm_to_vmem [thread:$0]  %s45, 10240, %s47, [#allocation4], 320, 320, 20
    $region37: #{forward.1} parent=1 // pred_fallthru
      _
    // Predicated region
    $region38: #{forward.1} parent=1 // pred_check
      _
    $region39: #{forward.1} parent=1 // pred_check_branch
      %54 = sbr.rel (0) target = $region41
    $region40: #{forward.1} parent=1 // pred_region
      %56 = vsyncadd [#allocation7], 0
      %s57 = sshll.u32 %s9, 4
      %s58 = int_to_ptr.hbm [resolvable:$true] %s57
      %s59 = sshll.u32 [#allocation6], 4
      %s60 = int_to_ptr.vmem [resolvable:$true] %s59
      %65 = dma.hbm_to_vmem [thread:$0]  %s58, 2048, %s60, [#allocation7], 64, 64, 4
    $region41: #{forward.1} parent=1 // pred_fallthru
      _
    // Predicated region
    $region42: #{forward.1} parent=1 // pred_check
      _
    $region43: #{forward.1} parent=1 // pred_check_branch
      %67 = sbr.rel (0) target = $region45
    $region44: #{forward.1} parent=1 // pred_region
      _
    $region45: #{forward.1} parent=1 // pred_fallthru
      _
    // Predicated region
    $region46: #{forward.1} parent=1 // pred_check
      _
    $region47: #{forward.1} parent=1 // pred_check_branch
      %69 = sbr.rel (0) target = $region49
    $region48: #{forward.1} parent=1 // pred_region
      %71 = vsyncadd [#allocation7], 0
      %s72 = sshll.u32 %s11, 4
      %s73 = int_to_ptr.hbm [resolvable:$true] %s72
      %s74 = sshll.u32 [#allocation8], 4
      %s75 = int_to_ptr.vmem [resolvable:$true] %s74
      %80 = dma.hbm_to_vmem [thread:$0]  %s73, 8192, %s75, [#allocation7], 256, 256, 16
    $region49: #{forward.1} parent=1 // pred_fallthru
      _
    // Predicated region
    $region50: #{forward.1} parent=1 // pred_check
      _
    $region51: #{forward.1} parent=1 // pred_check_branch
      %82 = sbr.rel (0) target = $region53
    $region52: #{forward.1} parent=1 // pred_region
      %84 = vsyncadd [#allocation10], 0
      %s85 = sshll.u32 %s12, 4
      %s86 = int_to_ptr.hbm [resolvable:$true] %s85
      %s87 = sshll.u32 [#allocation9], 4
      %s88 = int_to_ptr.vmem [resolvable:$true] %s87
      %93 = dma.hbm_to_vmem [thread:$0]  %s86, 4096, %s88, [#allocation10], 64, 64, 4
    $region53: #{forward.1} parent=1 // pred_fallthru
      _
    // Predicated region
    $region54: #{forward.1} parent=1 // pred_check
      _
    $region55: #{forward.1} parent=1 // pred_check_branch
      %95 = sbr.rel (0) target = $region57
    $region56: #{forward.1} parent=1 // pred_region
      %97 = vsyncadd [#allocation10], 0
      %s99 = sshll.u32 %s13, 4
      %s100 = int_to_ptr.hbm [resolvable:$true] %s99
      %s101 = sshll.u32 [#allocation11], 4
      %s102 = int_to_ptr.vmem [resolvable:$true] %s101
      %104 = dma.hbm_to_vmem [thread:$0]  %s100, 16, %s102, [#allocation10]
    $region57: #{forward.1} parent=1 // pred_fallthru
      _
    // Predicated region
    $region58: #{forward.1} parent=1 // pred_check
      _
    $region59: #{forward.1} parent=1 // pred_check_branch
      %106 = sbr.rel (0) target = $region61
    $region60: #{forward.1} parent=1 // pred_region
      _
    $region61: #{forward.1} parent=1 // pred_fallthru
      _
    // Predicated region
    $region62: #{forward.1} parent=1 // pred_check
      _
    $region63: #{forward.1} parent=1 // pred_check_branch
      %108 = sbr.rel (0) target = $region65
    $region64: #{forward.1} parent=1 // pred_region
      %110 = dma.done [#allocation4], 10240
    $region65: #{forward.1} parent=1 // pred_fallthru
      _
    // Predicated region
    $region66: #{forward.1} parent=1 // pred_check
      _
    $region67: #{forward.1} parent=1 // pred_check_branch
      %112 = sbr.rel (0) target = $region69
    $region68: #{forward.1} parent=1 // pred_region
      %114 = dma.done [#allocation7], 2048
    $region69: #{forward.1} parent=1 // pred_fallthru
      _
    // Predicated region
    $region70: #{forward.1} parent=1 // pred_check
      _
    $region71: #{forward.1} parent=1 // pred_check_branch
      %116 = sbr.rel (0) target = $region73
    $region72: #{forward.1} parent=1 // pred_region
      %118 = dma.done [#allocation7], 8192
    $region73: #{forward.1} parent=1 // pred_fallthru
      _
    // Predicated region
    $region74: #{forward.1} parent=1 // pred_check
      _
    $region75: #{forward.1} parent=1 // pred_check_branch
      %120 = sbr.rel (0) target = $region77
    $region76: #{forward.1} parent=1 // pred_region
      %122 = dma.done [#allocation10], 4096
    $region77: #{forward.1} parent=1 // pred_fallthru
      _
    // Predicated region
    $region78: #{forward.1} parent=1 // pred_check
      _
    $region79: #{forward.1} parent=1 // pred_check_branch
      %124 = sbr.rel (0) target = $region81
    $region80: #{forward.1} parent=1 // pred_region
      %126 = dma.done [#allocation10], 16
    $region81: #{forward.1} parent=1 // pred_fallthru
      _
    %v128 = vld [vmem:[%s3] sm:$0xff]
    %v129 = vld [vmem:[%s4] sm:$0x1]
    %130 = vset.pattern.permute.xlu0 0
    %131 = vperm.xlu0 %130, %v128
    %v132 = vpop.permute.xlu0 %131
    %v133 = vperm.slane %v129, 0
    %vm134 = vcmp.ge.s32.totalorder %v132, %v133
    %v135 = vld [vmem:[%s1] sm:$0xff]
    %v136 = vld [vmem:[%s2] sm:$0x1]
    %137 = vset.pattern.permute.xlu0 0
    %138 = vperm.xlu0 %137, %v135
    %v139 = vpop.permute.xlu0 %138
    %v140 = vperm.slane %v136, 0
    %vm141 = vcmp.eq.s32.totalorder %v139, %v140
    %vm142 = vmand %vm134, %vm141
    %v143 = vsel %vm142, 0.0, -1e+09
    %v144 = vld [vmem:[%s5] sm:$0xff]
    %v145 = vld [vmem:[%s5 + $0x8] sm:$0xff]
    %v146 = vld [vmem:[%s6] sm:$0xff]
    %v147 = vld [vmem:[%s6 + $0x8] sm:$0xff]
    %v148 = vld [vmem:[%s0] sm:$0xff]
    %v149 = vld [vmem:[%s7] sm:$0x1]
    %v150 = vmul.f32 %v148, %v148
    %151 = vadd.xlane.f32.xlu0 %v150
    %v152 = vpop.xlane.xlu0 %151
    %v153 = vrcp.pop 128.0
    %v154 = vmul.f32 128.0, %v153
    %v155 = vsub.f32 1.0, %v154
    %v156 = vmul.f32 %v153, %v155
    %v157 = vadd.f32 %v153, %v156
    %vm158 = vweird.f32 %v153
    %v159 = vsel %vm158, %v153, %v157
    %v160 = vmul.f32 %v152, %v159
    %v161 = vadd.f32 %v160, 1e-05
    %v162 = vrsqrt.pop %v161
    %v163 = vmul.f32 %v162, %v161
    %v164 = vmul.f32 %v163, %v162
    %v165 = vmul.f32 0.5, %v164
    %v166 = vsub.f32 1.5, %v165
    %v167 = vmul.f32 %v162, %v166
    %vm168 = vweird.f32 %v161
    %vm169 = vweird.f32 %v162
    %vm170 = vmor %vm168, %vm169
    %v171 = vsel %vm170, %v162, %v167
    %v172 = vmul.f32 %v148, %v171
    %v174 = vperm.slane %v149, 0
    %v176 = vmul.f32 %v172, %v174
    %v177 = vpack.c.bf16 %v176, %v176
    %v178 = vld [vmem:[#allocation3] sm:$0xff]
    %v179 = vld [vmem:[#allocation3 + $0x8] sm:$0xff]
    %v180 = vld [vmem:[#allocation3 + $0x10] sm:$0xf]
    %v181 = vld [vmem:[#allocation3 + $0x14] sm:$0xff]
    %v182 = vld [vmem:[#allocation3 + $0x1c] sm:$0xff]
    %v183 = vld [vmem:[#allocation3 + $0x24] sm:$0xf]
    %v184 = vld [vmem:[#allocation3 + $0x28] sm:$0xff]
    %v185 = vld [vmem:[#allocation3 + $0x30] sm:$0xff]
    %v186 = vld [vmem:[#allocation3 + $0x38] sm:$0xf]
    %v187 = vld [vmem:[#allocation3 + $0x3c] sm:$0xff]
    %v188 = vld [vmem:[#allocation3 + $0x44] sm:$0xff]
    %v189 = vld [vmem:[#allocation3 + $0x4c] sm:$0xf]
    %v190 = vld [vmem:[#allocation3 + $0x50] sm:$0xff]
    %v191 = vld [vmem:[#allocation3 + $0x58] sm:$0xff]
    %v192 = vld [vmem:[#allocation3 + $0x60] sm:$0xf]
    %v193 = vld [vmem:[#allocation3 + $0x64] sm:$0xff]
    %v194 = vld [vmem:[#allocation3 + $0x6c] sm:$0xff]
    %v195 = vld [vmem:[#allocation3 + $0x74] sm:$0xf]
    %v196 = vld [vmem:[#allocation3 + $0x78] sm:$0xff]
    %v197 = vld [vmem:[#allocation3 + $0x80] sm:$0xff]
    %v198 = vld [vmem:[#allocation3 + $0x88] sm:$0xf]
    %v199 = vld [vmem:[#allocation3 + $0x8c] sm:$0xff]
    %v200 = vld [vmem:[#allocation3 + $0x94] sm:$0xff]
    %v201 = vld [vmem:[#allocation3 + $0x9c] sm:$0xf]
    %v202 = vld [vmem:[#allocation3 + $0xa0] sm:$0xff]
    %v203 = vld [vmem:[#allocation3 + $0xa8] sm:$0xff]
    %v204 = vld [vmem:[#allocation3 + $0xb0] sm:$0xf]
    %v205 = vld [vmem:[#allocation3 + $0xb4] sm:$0xff]
    %v206 = vld [vmem:[#allocation3 + $0xbc] sm:$0xff]
    %v207 = vld [vmem:[#allocation3 + $0xc4] sm:$0xf]
    %v208 = vld [vmem:[#allocation3 + $0xc8] sm:$0xff]
    %v209 = vld [vmem:[#allocation3 + $0xd0] sm:$0xff]
    %v210 = vld [vmem:[#allocation3 + $0xd8] sm:$0xf]
    %v211 = vld [vmem:[#allocation3 + $0xdc] sm:$0xff]
    %v212 = vld [vmem:[#allocation3 + $0xe4] sm:$0xff]
    %v213 = vld [vmem:[#allocation3 + $0xec] sm:$0xf]
    %v214 = vld [vmem:[#allocation3 + $0xf0] sm:$0xff]
    %v215 = vld [vmem:[#allocation3 + $0xf8] sm:$0xff]
    %v216 = vld [vmem:[#allocation3 + $0x100] sm:$0xf]
    %v217 = vld [vmem:[#allocation3 + $0x104] sm:$0xff]
    %v218 = vld [vmem:[#allocation3 + $0x10c] sm:$0xff]
    %v219 = vld [vmem:[#allocation3 + $0x114] sm:$0xf]
    %v220 = vld [vmem:[#allocation3 + $0x118] sm:$0xff]
    %v221 = vld [vmem:[#allocation3 + $0x120] sm:$0xff]
    %v222 = vld [vmem:[#allocation3 + $0x128] sm:$0xf]
    %v223 = vld [vmem:[#allocation3 + $0x12c] sm:$0xff]
    %v224 = vld [vmem:[#allocation3 + $0x134] sm:$0xff]
    %v225 = vld [vmem:[#allocation3 + $0x13c] sm:$0xf]
    %v274 = vunpack.c.l.b16 %v178
    %v275 = vunpack.c.h.b16 %v178
    %v276 = vunpack.c.l.b16 %v179
    %v277 = vunpack.c.h.b16 %v179
    %v278 = vunpack.c.l.b16 %v180
    %v279 = vunpack.c.l.b16 %v181
    %v280 = vunpack.c.h.b16 %v181
    %v281 = vunpack.c.l.b16 %v182
    %v282 = vunpack.c.h.b16 %v182
    %v283 = vunpack.c.l.b16 %v183
    %v284 = vunpack.c.l.b16 %v184
    %v285 = vunpack.c.h.b16 %v184
    %v286 = vunpack.c.l.b16 %v185
    %v287 = vunpack.c.h.b16 %v185
    %v288 = vunpack.c.l.b16 %v186
    %v289 = vunpack.c.l.b16 %v187
    %v290 = vunpack.c.h.b16 %v187
    %v291 = vunpack.c.l.b16 %v188
    %v292 = vunpack.c.h.b16 %v188
    %v293 = vunpack.c.l.b16 %v189
    %v294 = vunpack.c.l.b16 %v190
    %v295 = vunpack.c.h.b16 %v190
    %v296 = vunpack.c.l.b16 %v191
    %v297 = vunpack.c.h.b16 %v191
    %v298 = vunpack.c.l.b16 %v192
    %v299 = vunpack.c.l.b16 %v193
    %v300 = vunpack.c.h.b16 %v193
    %v301 = vunpack.c.l.b16 %v194
    %v302 = vunpack.c.h.b16 %v194
    %v303 = vunpack.c.l.b16 %v195
    %v304 = vunpack.c.l.b16 %v196
    %v305 = vunpack.c.h.b16 %v196
    %v306 = vunpack.c.l.b16 %v197
    %v307 = vunpack.c.h.b16 %v197
    %v308 = vunpack.c.l.b16 %v198
    %v309 = vunpack.c.l.b16 %v199
    %v310 = vunpack.c.h.b16 %v199
    %v311 = vunpack.c.l.b16 %v200
    %v312 = vunpack.c.h.b16 %v200
    %v313 = vunpack.c.l.b16 %v201
    %v314 = vunpack.c.l.b16 %v202
    %v315 = vunpack.c.h.b16 %v202
    %v316 = vunpack.c.l.b16 %v203
    %v317 = vunpack.c.h.b16 %v203
    %v318 = vunpack.c.l.b16 %v204
    %v319 = vunpack.c.l.b16 %v205
    %v320 = vunpack.c.h.b16 %v205
    %v321 = vunpack.c.l.b16 %v206
    %v322 = vunpack.c.h.b16 %v206
    %v323 = vunpack.c.l.b16 %v207
    %v324 = vunpack.c.l.b16 %v208
    %v325 = vunpack.c.h.b16 %v208
    %v326 = vunpack.c.l.b16 %v209
    %v327 = vunpack.c.h.b16 %v209
    %v328 = vunpack.c.l.b16 %v210
    %v329 = vunpack.c.l.b16 %v211
    %v330 = vunpack.c.h.b16 %v211
    %v331 = vunpack.c.l.b16 %v212
    %v332 = vunpack.c.h.b16 %v212
    %v333 = vunpack.c.l.b16 %v213
    %v334 = vunpack.c.l.b16 %v214
    %v335 = vunpack.c.h.b16 %v214
    %v336 = vunpack.c.l.b16 %v215
    %v337 = vunpack.c.h.b16 %v215
    %v338 = vunpack.c.l.b16 %v216
    %v339 = vunpack.c.l.b16 %v217
    %v340 = vunpack.c.h.b16 %v217
    %v341 = vunpack.c.l.b16 %v218
    %v342 = vunpack.c.h.b16 %v218
    %v343 = vunpack.c.l.b16 %v219
    %v344 = vunpack.c.l.b16 %v220
    %v345 = vunpack.c.h.b16 %v220
    %v346 = vunpack.c.l.b16 %v221
    %v347 = vunpack.c.h.b16 %v221
    %v348 = vunpack.c.l.b16 %v222
    %v349 = vunpack.c.l.b16 %v223
    %v350 = vunpack.c.h.b16 %v223
    %v351 = vunpack.c.l.b16 %v224
    %v352 = vunpack.c.h.b16 %v224
    %v353 = vunpack.c.l.b16 %v225
    %v354 = vpack.c.b16 %v279, %v274
    %v355 = vpack.c.b16 %v280, %v275
    %v356 = vpack.c.b16 %v281, %v276
    %v357 = vpack.c.b16 %v282, %v277
    %v358 = vpack.c.b16 %v283, %v278
    %v359 = vpack.c.b16 %v289, %v284
    %v360 = vpack.c.b16 %v290, %v285
    %v361 = vpack.c.b16 %v291, %v286
    %v362 = vpack.c.b16 %v292, %v287
    %v363 = vpack.c.b16 %v293, %v288
    %v364 = vpack.c.b16 %v299, %v294
    %v365 = vpack.c.b16 %v300, %v295
    %v366 = vpack.c.b16 %v301, %v296
    %v367 = vpack.c.b16 %v302, %v297
    %v368 = vpack.c.b16 %v303, %v298
    %v369 = vpack.c.b16 %v309, %v304
    %v370 = vpack.c.b16 %v310, %v305
    %v371 = vpack.c.b16 %v311, %v306
    %v372 = vpack.c.b16 %v312, %v307
    %v373 = vpack.c.b16 %v313, %v308
    %v374 = vpack.c.b16 %v319, %v314
    %v375 = vpack.c.b16 %v320, %v315
    %v376 = vpack.c.b16 %v321, %v316
    %v377 = vpack.c.b16 %v322, %v317
    %v378 = vpack.c.b16 %v323, %v318
    %v379 = vpack.c.b16 %v329, %v324
    %v380 = vpack.c.b16 %v330, %v325
    %v381 = vpack.c.b16 %v331, %v326
    %v382 = vpack.c.b16 %v332, %v327
    %v383 = vpack.c.b16 %v333, %v328
    %v384 = vpack.c.b16 %v339, %v334
    %v385 = vpack.c.b16 %v340, %v335
    %v386 = vpack.c.b16 %v341, %v336
    %v387 = vpack.c.b16 %v342, %v337
    %v388 = vpack.c.b16 %v343, %v338
    %v389 = vpack.c.b16 %v349, %v344
    %v390 = vpack.c.b16 %v350, %v345
    %v391 = vpack.c.b16 %v351, %v346
    %v392 = vpack.c.b16 %v352, %v347
    %v393 = vpack.c.b16 %v353, %v348
    %434 = vmatpush.bf16.msra.mxu0 %v389
    %435 = vmatpush.bf16.msra.mxu0 %v384
    %436 = vmatpush.bf16.msra.mxu0 %v379
    %437 = vmatpush.bf16.msra.mxu0 %v374
    %438 = vmatpush.bf16.msra.mxu0 %v369
    %439 = vmatpush.bf16.msra.mxu0 %v364
    %440 = vmatpush.bf16.msra.mxu0 %v359
    %441 = vmatpush.bf16.msra.mxu0 %v354
    %442 = vmatmul.bf16.gmra.mxu0 %v177
    %v443 = vpop.f32.mrf.mxu0
    %v444 = vadd.f32 0.0, %v443
    %v445 = vpop.f32.mrf.mxu0
    %446 = vdwg.mxu0
    %447 = vmatpush.bf16.msra.mxu0 %v390
    %448 = vmatpush.bf16.msra.mxu0 %v385
    %449 = vmatpush.bf16.msra.mxu0 %v380
    %450 = vmatpush.bf16.msra.mxu0 %v375
    %451 = vmatpush.bf16.msra.mxu0 %v370
    %452 = vmatpush.bf16.msra.mxu0 %v365
    %453 = vmatpush.bf16.msra.mxu0 %v360
    %454 = vmatpush.bf16.msra.mxu0 %v355
    %455 = vmatmul.bf16.gmra.mxu0 %v177
    %v456 = vpop.f32.mrf.mxu0
    %v457 = vadd.f32 0.0, %v456
    %v458 = vpop.f32.mrf.mxu0
    %459 = vdwg.mxu0
    %460 = vmatpush.bf16.msra.mxu0 %v391
    %461 = vmatpush.bf16.msra.mxu0 %v386
    %462 = vmatpush.bf16.msra.mxu0 %v381
    %463 = vmatpush.bf16.msra.mxu0 %v376
    %464 = vmatpush.bf16.msra.mxu0 %v371
    %465 = vmatpush.bf16.msra.mxu0 %v366
    %466 = vmatpush.bf16.msra.mxu0 %v361
    %467 = vmatpush.bf16.msra.mxu0 %v356
    %468 = vmatmul.bf16.gmra.mxu0 %v177
    %v469 = vpop.f32.mrf.mxu0
    %v470 = vadd.f32 0.0, %v469
    %v471 = vpop.f32.mrf.mxu0
    %472 = vdwg.mxu0
    %473 = vmatpush.bf16.msra.mxu0 %v392
    %474 = vmatpush.bf16.msra.mxu0 %v387
    %475 = vmatpush.bf16.msra.mxu0 %v382
    %476 = vmatpush.bf16.msra.mxu0 %v377
    %477 = vmatpush.bf16.msra.mxu0 %v372
    %478 = vmatpush.bf16.msra.mxu0 %v367
    %479 = vmatpush.bf16.msra.mxu0 %v362
    %480 = vmatpush.bf16.msra.mxu0 %v357
    %481 = vmatmul.bf16.gmra.mxu0 %v177
    %v482 = vpop.f32.mrf.mxu0
    %v483 = vadd.f32 0.0, %v482
    %v484 = vpop.f32.mrf.mxu0
    %485 = vdwg.mxu0
    %486 = vmatpush.bf16.msra.mxu0 %v393
    %487 = vmatpush.bf16.msra.mxu0 %v388
    %488 = vmatpush.bf16.msra.mxu0 %v383
    %489 = vmatpush.bf16.msra.mxu0 %v378
    %490 = vmatpush.bf16.msra.mxu0 %v373
    %491 = vmatpush.bf16.msra.mxu0 %v368
    %492 = vmatpush.bf16.msra.mxu0 %v363
    %493 = vmatpush.bf16.msra.mxu0 %v358
    %494 = vmatmul.bf16.gmra.mxu0 %v177
    %v495 = vpop.f32.mrf.mxu0
    %v496 = vadd.f32 0.0, %v495
    %v497 = vpop.f32.mrf.mxu0
    %498 = vdwg.mxu0
    %v499 = vmul.f32 %v444, %v144
    %v500 = vmul.f32 %v457, %v145
    %v501 = vmul.f32 %v470, %v146
    %v502 = vmul.f32 %v483, %v147
    %v503 = vadd.f32 %v499, %v501
    %v504 = vadd.f32 %v500, %v502
    %v505 = vpack.c.bf16 %v503, %v503
    %506 = vxpose.xlu0.b32.start [1/16] %v504, 128
    %507 = vxpose.xlu0.b32.cont [2/16] 0.0, 128
    %508 = vxpose.xlu0.b32.cont [3/16] 0.0, 128
    %509 = vxpose.xlu0.b32.cont [4/16] 0.0, 128
    %510 = vxpose.xlu0.b32.cont [5/16] 0.0, 128
    %511 = vxpose.xlu0.b32.cont [6/16] 0.0, 128
    %512 = vxpose.xlu0.b32.cont [7/16] 0.0, 128
    %513 = vxpose.xlu0.b32.cont [8/16] 0.0, 128
    %514 = vxpose.xlu0.b32.cont [9/16] 0.0, 128
    %515 = vxpose.xlu0.b32.cont [10/16] 0.0, 128
    %516 = vxpose.xlu0.b32.cont [11/16] 0.0, 128
    %517 = vxpose.xlu0.b32.cont [12/16] 0.0, 128
    %518 = vxpose.xlu0.b32.cont [13/16] 0.0, 128
    %519 = vxpose.xlu0.b32.cont [14/16] 0.0, 128
    %520 = vxpose.xlu0.b32.cont [15/16] 0.0, 128
    %521 = vxpose.xlu0.b32.end [16/16] 0.0, 128
    %v522 = vpop.trf.xlu0
    %v523 = vpop.trf.xlu0
    %v524 = vpop.trf.xlu0
    %v525 = vpop.trf.xlu0
    %v526 = vpop.trf.xlu0
    %v527 = vpop.trf.xlu0
    %v528 = vpop.trf.xlu0
    %v529 = vpop.trf.xlu0
    %v530 = vpop.trf.xlu0
    %v531 = vpop.trf.xlu0
    %v532 = vpop.trf.xlu0
    %v533 = vpop.trf.xlu0
    %v534 = vpop.trf.xlu0
    %v535 = vpop.trf.xlu0
    %v536 = vpop.trf.xlu0
    %v537 = vpop.trf.xlu0
    %v538 = vpack.c.bf16 %v522, %v522
    %v539 = vpack.c.bf16 %v523, %v523
    %v540 = vpack.c.bf16 %v524, %v524
    %v541 = vpack.c.bf16 %v525, %v525
    %v542 = vpack.c.bf16 %v526, %v526
    %v543 = vpack.c.bf16 %v527, %v527
    %v544 = vpack.c.bf16 %v528, %v528
    %v545 = vpack.c.bf16 %v529, %v529
    %v546 = vpack.c.bf16 %v530, %v530
    %v547 = vpack.c.bf16 %v531, %v531
    %v548 = vpack.c.bf16 %v532, %v532
    %v549 = vpack.c.bf16 %v533, %v533
    %v550 = vpack.c.bf16 %v534, %v534
    %v551 = vpack.c.bf16 %v535, %v535
    %v552 = vpack.c.bf16 %v536, %v536
    %v553 = vpack.c.bf16 %v537, %v537
    %v554 = vpack.c.bf16 %v496, %v496
    %v559 = vunpack.c.l.b16 %v538
    %v560 = vunpack.c.l.b16 %v539
    %v561 = vunpack.c.l.b16 %v540
    %v562 = vunpack.c.l.b16 %v541
    %v563 = vpack.c.b16 %v560, %v559
    %v564 = vpack.c.b16 %v562, %v561
    %vm567 = vcmask 261120
    %v569 = vsel %vm567, %v505, 0
    %571 = vmatpush.bf16.msra.mxu0 0
    %572 = vmatpush.bf16.msra.mxu0 0
    %573 = vmatpush.bf16.msra.mxu0 0
    %574 = vmatpush.bf16.msra.mxu0 0
    %575 = vmatpush.bf16.msra.mxu0 0
    %576 = vmatpush.bf16.msra.mxu0 0
    %577 = vmatpush.bf16.msra.mxu0 %v564
    %578 = vmatpush.bf16.msra.mxu0 %v563
    %579 = vmatmul.bf16.gmra.mxu0 %v569
    %v580 = vpop.f32.mrf.mxu0
    %v581 = vadd.f32 0.0, %v580
    %v582 = vpop.f32.mrf.mxu0
    %583 = vdwg.mxu0
    %v584 = vmul.f32 %v581, 0.17677669
    %v585 = vadd.f32 %v584, %v143
    %vm586 = vcmask 64512
    %v587 = vsel %vm586, %v585, -inf
    %588 = vmax.xlane.f32.xlu0 %v587
    %v589 = vpop.xlane.xlu0 %588
    %v590 = vsub.f32 %v585, %v589
    %v591 = vmul.f32 %v590, 1.442695
    %v592 = vpow.pop %v591
    %v593 = vsel %vm586, %v592, 0.0
    %594 = vadd.xlane.f32.xlu0 %v593
    %v595 = vpop.xlane.xlu0 %594
    %v596 = vrcp.pop %v595
    %v597 = vmul.f32 %v595, %v596
    %v598 = vsub.f32 1.0, %v597
    %v599 = vmul.f32 %v596, %v598
    %v600 = vadd.f32 %v596, %v599
    %vm601 = vweird.f32 %v595
    %vm602 = vweird.f32 %v596
    %vm603 = vmor %vm601, %vm602
    %v604 = vsel %vm603, %v596, %v600
    %v605 = vand.u32 2147483647, %v595
    %vm606 = vcmp.eq.f32.partialorder %v605, 8.507059e+37
    %v607 = vand.u32 %v595, 2147483648
    %v608 = vor.u32 1.1754944e-38, %v607
    %v609 = vsel %vm606, %v608, %v604
    %v610 = vmul.f32 %v592, %v609
    %v611 = vpack.c.bf16 %v610, %v610
    %v613 = vsel %vm586, %v611, 0
    %vm615 = vcmask 1043456
    %v617 = vsel %vm615, %v554, 0
    %619 = vmatpush.bf16.msra.mxu0 0
    %620 = vmatpush.bf16.msra.mxu0 0
    %621 = vmatpush.bf16.msra.mxu0 0
    %622 = vmatpush.bf16.msra.mxu0 0
    %623 = vmatpush.bf16.msra.mxu0 0
    %624 = vmatpush.bf16.msra.mxu0 0
    %625 = vmatpush.bf16.msra.mxu0 0
    %626 = vmatpush.bf16.msra.mxu0 %v617
    %627 = vmatmul.bf16.gmra.mxu0 %v613
    %v628 = vpop.f32.mrf.mxu0
    %v629 = vadd.f32 0.0, %v628
    %v630 = vpop.f32.mrf.mxu0
    %631 = vdwg.mxu0
    %632 = vst.msk [vmem:[#allocation2] sm:$0xff] %vm567, %v629
    %v634 = vunpack.c.l.b16 %v505
    %v635 = vpack.c.b16 %v634, %v634
    %636 = vrot.lane.b32.xlu0 %v635, 96
    %v637 = vpop.permute.xlu0 %636
    %v642 = vunpack.c.l.b16 %v542
    %v643 = vunpack.c.l.b16 %v543
    %v644 = vunpack.c.l.b16 %v544
    %v645 = vunpack.c.l.b16 %v545
    %v646 = vpack.c.b16 %v643, %v642
    %v647 = vpack.c.b16 %v645, %v644
    %v651 = vsel %vm567, %v637, 0
    %653 = vmatpush.bf16.msra.mxu0 0
    %654 = vmatpush.bf16.msra.mxu0 0
    %655 = vmatpush.bf16.msra.mxu0 0
    %656 = vmatpush.bf16.msra.mxu0 0
    %657 = vmatpush.bf16.msra.mxu0 0
    %658 = vmatpush.bf16.msra.mxu0 0
    %659 = vmatpush.bf16.msra.mxu0 %v647
    %660 = vmatpush.bf16.msra.mxu0 %v646
    %661 = vmatmul.bf16.gmra.mxu0 %v651
    %v662 = vpop.f32.mrf.mxu0
    %v663 = vadd.f32 0.0, %v662
    %v664 = vpop.f32.mrf.mxu0
    %665 = vdwg.mxu0
    %v666 = vmul.f32 %v663, 0.17677669
    %v667 = vadd.f32 %v666, %v143
    %v668 = vsel %vm586, %v667, -inf
    %669 = vmax.xlane.f32.xlu0 %v668
    %v670 = vpop.xlane.xlu0 %669
    %v671 = vsub.f32 %v667, %v670
    %v672 = vmul.f32 %v671, 1.442695
    %v673 = vpow.pop %v672
    %v674 = vsel %vm586, %v673, 0.0
    %675 = vadd.xlane.f32.xlu0 %v674
    %v676 = vpop.xlane.xlu0 %675
    %v677 = vrcp.pop %v676
    %v678 = vmul.f32 %v676, %v677
    %v679 = vsub.f32 1.0, %v678
    %v680 = vmul.f32 %v677, %v679
    %v681 = vadd.f32 %v677, %v680
    %vm682 = vweird.f32 %v676
    %vm683 = vweird.f32 %v677
    %vm684 = vmor %vm682, %vm683
    %v685 = vsel %vm684, %v677, %v681
    %v686 = vand.u32 2147483647, %v676
    %vm687 = vcmp.eq.f32.partialorder %v686, 8.507059e+37
    %v688 = vand.u32 %v676, 2147483648
    %v689 = vor.u32 1.1754944e-38, %v688
    %v690 = vsel %vm687, %v689, %v685
    %v691 = vmul.f32 %v673, %v690
    %v692 = vpack.c.bf16 %v691, %v691
    %v694 = vunpack.c.l.b16 %v554
    %v695 = vpack.c.b16 %v694, %v694
    %696 = vrot.lane.b32.xlu0 %v695, 96
    %v697 = vpop.permute.xlu0 %696
    %v699 = vsel %vm586, %v692, 0
    %v702 = vsel %vm615, %v697, 0
    %704 = vmatpush.bf16.msra.mxu0 0
    %705 = vmatpush.bf16.msra.mxu0 0
    %706 = vmatpush.bf16.msra.mxu0 0
    %707 = vmatpush.bf16.msra.mxu0 0
    %708 = vmatpush.bf16.msra.mxu0 0
    %709 = vmatpush.bf16.msra.mxu0 0
    %710 = vmatpush.bf16.msra.mxu0 0
    %711 = vmatpush.bf16.msra.mxu0 %v702
    %712 = vmatmul.bf16.gmra.mxu0 %v699
    %v713 = vpop.f32.mrf.mxu0
    %v714 = vadd.f32 0.0, %v713
    %v715 = vpop.f32.mrf.mxu0
    %716 = vdwg.mxu0
    %718 = vrot.lane.b32.xlu0 %v714, 32
    %v719 = vpop.permute.xlu0 %718
    %vm721 = vcmask 523520
    %722 = vst.msk [vmem:[#allocation2] sm:$0xff] %vm721, %v719
    %723 = vrot.lane.b32.xlu0 %v635, 64
    %v724 = vpop.permute.xlu0 %723
    %v729 = vunpack.c.l.b16 %v546
    %v730 = vunpack.c.l.b16 %v547
    %v731 = vunpack.c.l.b16 %v548
    %v732 = vunpack.c.l.b16 %v549
    %v733 = vpack.c.b16 %v730, %v729
    %v734 = vpack.c.b16 %v732, %v731
    %v738 = vsel %vm567, %v724, 0
    %740 = vmatpush.bf16.msra.mxu0 0
    %741 = vmatpush.bf16.msra.mxu0 0
    %742 = vmatpush.bf16.msra.mxu0 0
    %743 = vmatpush.bf16.msra.mxu0 0
    %744 = vmatpush.bf16.msra.mxu0 0
    %745 = vmatpush.bf16.msra.mxu0 0
    %746 = vmatpush.bf16.msra.mxu0 %v734
    %747 = vmatpush.bf16.msra.mxu0 %v733
    %748 = vmatmul.bf16.gmra.mxu0 %v738
    %v749 = vpop.f32.mrf.mxu0
    %v750 = vadd.f32 0.0, %v749
    %v751 = vpop.f32.mrf.mxu0
    %752 = vdwg.mxu0
    %v753 = vmul.f32 %v750, 0.17677669
    %v754 = vadd.f32 %v753, %v143
    %v755 = vsel %vm586, %v754, -inf
    %756 = vmax.xlane.f32.xlu0 %v755
    %v757 = vpop.xlane.xlu0 %756
    %v758 = vsub.f32 %v754, %v757
    %v759 = vmul.f32 %v758, 1.442695
    %v760 = vpow.pop %v759
    %v761 = vsel %vm586, %v760, 0.0
    %762 = vadd.xlane.f32.xlu0 %v761
    %v763 = vpop.xlane.xlu0 %762
    %v764 = vrcp.pop %v763
    %v765 = vmul.f32 %v763, %v764
    %v766 = vsub.f32 1.0, %v765
    %v767 = vmul.f32 %v764, %v766
    %v768 = vadd.f32 %v764, %v767
    %vm769 = vweird.f32 %v763
    %vm770 = vweird.f32 %v764
    %vm771 = vmor %vm769, %vm770
    %v772 = vsel %vm771, %v764, %v768
    %v773 = vand.u32 2147483647, %v763
    %vm774 = vcmp.eq.f32.partialorder %v773, 8.507059e+37
    %v775 = vand.u32 %v763, 2147483648
    %v776 = vor.u32 1.1754944e-38, %v775
    %v777 = vsel %vm774, %v776, %v772
    %v778 = vmul.f32 %v760, %v777
    %v779 = vpack.c.bf16 %v778, %v778
    %780 = vrot.lane.b32.xlu0 %v695, 64
    %v781 = vpop.permute.xlu0 %780
    %v783 = vsel %vm586, %v779, 0
    %v786 = vsel %vm615, %v781, 0
    %788 = vmatpush.bf16.msra.mxu0 0
    %789 = vmatpush.bf16.msra.mxu0 0
    %790 = vmatpush.bf16.msra.mxu0 0
    %791 = vmatpush.bf16.msra.mxu0 0
    %792 = vmatpush.bf16.msra.mxu0 0
    %793 = vmatpush.bf16.msra.mxu0 0
    %794 = vmatpush.bf16.msra.mxu0 0
    %795 = vmatpush.bf16.msra.mxu0 %v786
    %796 = vmatmul.bf16.gmra.mxu0 %v783
    %v797 = vpop.f32.mrf.mxu0
    %v798 = vadd.f32 0.0, %v797
    %v799 = vpop.f32.mrf.mxu0
    %800 = vdwg.mxu0
    %802 = vrot.lane.b32.xlu0 %v798, 64
    %v803 = vpop.permute.xlu0 %802
    %vm805 = vcmask 785920
    %806 = vst.msk [vmem:[#allocation2] sm:$0xff] %vm805, %v803
    %807 = vrot.lane.b32.xlu0 %v635, 32
    %v808 = vpop.permute.xlu0 %807
    %v813 = vunpack.c.l.b16 %v550
    %v814 = vunpack.c.l.b16 %v551
    %v815 = vunpack.c.l.b16 %v552
    %v816 = vunpack.c.l.b16 %v553
    %v817 = vpack.c.b16 %v814, %v813
    %v818 = vpack.c.b16 %v816, %v815
    %v822 = vsel %vm567, %v808, 0
    %824 = vmatpush.bf16.msra.mxu0 0
    %825 = vmatpush.bf16.msra.mxu0 0
    %826 = vmatpush.bf16.msra.mxu0 0
    %827 = vmatpush.bf16.msra.mxu0 0
    %828 = vmatpush.bf16.msra.mxu0 0
    %829 = vmatpush.bf16.msra.mxu0 0
    %830 = vmatpush.bf16.msra.mxu0 %v818
    %831 = vmatpush.bf16.msra.mxu0 %v817
    %832 = vmatmul.bf16.gmra.mxu0 %v822
    %v833 = vpop.f32.mrf.mxu0
    %v834 = vadd.f32 0.0, %v833
    %v835 = vpop.f32.mrf.mxu0
    %836 = vdwg.mxu0
    %v837 = vmul.f32 %v834, 0.17677669
    %v838 = vadd.f32 %v837, %v143
    %v839 = vsel %vm586, %v838, -inf
    %840 = vmax.xlane.f32.xlu0 %v839
    %v841 = vpop.xlane.xlu0 %840
    %v842 = vsub.f32 %v838, %v841
    %v843 = vmul.f32 %v842, 1.442695
    %v844 = vpow.pop %v843
    %v845 = vsel %vm586, %v844, 0.0
    %846 = vadd.xlane.f32.xlu0 %v845
    %v847 = vpop.xlane.xlu0 %846
    %v848 = vrcp.pop %v847
    %v849 = vmul.f32 %v847, %v848
    %v850 = vsub.f32 1.0, %v849
    %v851 = vmul.f32 %v848, %v850
    %v852 = vadd.f32 %v848, %v851
    %vm853 = vweird.f32 %v847
    %vm854 = vweird.f32 %v848
    %vm855 = vmor %vm853, %vm854
    %v856 = vsel %vm855, %v848, %v852
    %v857 = vand.u32 2147483647, %v847
    %vm858 = vcmp.eq.f32.partialorder %v857, 8.507059e+37
    %v859 = vand.u32 %v847, 2147483648
    %v860 = vor.u32 1.1754944e-38, %v859
    %v861 = vsel %vm858, %v860, %v856
    %v862 = vmul.f32 %v844, %v861
    %v863 = vpack.c.bf16 %v862, %v862
    %864 = vrot.lane.b32.xlu0 %v695, 32
    %v865 = vpop.permute.xlu0 %864
    %v867 = vsel %vm586, %v863, 0
    %v870 = vsel %vm615, %v865, 0
    %872 = vmatpush.bf16.msra.mxu0 0
    %873 = vmatpush.bf16.msra.mxu0 0
    %874 = vmatpush.bf16.msra.mxu0 0
    %875 = vmatpush.bf16.msra.mxu0 0
    %876 = vmatpush.bf16.msra.mxu0 0
    %877 = vmatpush.bf16.msra.mxu0 0
    %878 = vmatpush.bf16.msra.mxu0 0
    %879 = vmatpush.bf16.msra.mxu0 %v870
    %880 = vmatmul.bf16.gmra.mxu0 %v867
    %v881 = vpop.f32.mrf.mxu0
    %v882 = vadd.f32 0.0, %v881
    %v883 = vpop.f32.mrf.mxu0
    %884 = vdwg.mxu0
    %886 = vrot.lane.b32.xlu0 %v882, 96
    %v887 = vpop.permute.xlu0 %886
    %vm889 = vcmask 1048320
    %890 = vst.msk [vmem:[#allocation2] sm:$0xff] %vm889, %v887
    %v891 = vld [vmem:[#allocation2] sm:$0xff]
    %v892 = vpack.c.bf16 %v891, %v891
    %v893 = vld [vmem:[#allocation6] sm:$0xf]
    %v894 = vld [vmem:[#allocation6 + $0x4] sm:$0xf]
    %v895 = vld [vmem:[#allocation6 + $0x8] sm:$0xf]
    %v896 = vld [vmem:[#allocation6 + $0xc] sm:$0xf]
    %v897 = vld [vmem:[#allocation6 + $0x10] sm:$0xf]
    %v898 = vld [vmem:[#allocation6 + $0x14] sm:$0xf]
    %v899 = vld [vmem:[#allocation6 + $0x18] sm:$0xf]
    %v900 = vld [vmem:[#allocation6 + $0x1c] sm:$0xf]
    %v901 = vld [vmem:[#allocation6 + $0x20] sm:$0xf]
    %v902 = vld [vmem:[#allocation6 + $0x24] sm:$0xf]
    %v903 = vld [vmem:[#allocation6 + $0x28] sm:$0xf]
    %v904 = vld [vmem:[#allocation6 + $0x2c] sm:$0xf]
    %v905 = vld [vmem:[#allocation6 + $0x30] sm:$0xf]
    %v906 = vld [vmem:[#allocation6 + $0x34] sm:$0xf]
    %v907 = vld [vmem:[#allocation6 + $0x38] sm:$0xf]
    %v908 = vld [vmem:[#allocation6 + $0x3c] sm:$0xf]
    %v925 = vunpack.c.l.b16 %v893
    %v926 = vunpack.c.l.b16 %v894
    %v927 = vunpack.c.l.b16 %v895
    %v928 = vunpack.c.l.b16 %v896
    %v929 = vunpack.c.l.b16 %v897
    %v930 = vunpack.c.l.b16 %v898
    %v931 = vunpack.c.l.b16 %v899
    %v932 = vunpack.c.l.b16 %v900
    %v933 = vunpack.c.l.b16 %v901
    %v934 = vunpack.c.l.b16 %v902
    %v935 = vunpack.c.l.b16 %v903
    %v936 = vunpack.c.l.b16 %v904
    %v937 = vunpack.c.l.b16 %v905
    %v938 = vunpack.c.l.b16 %v906
    %v939 = vunpack.c.l.b16 %v907
    %v940 = vunpack.c.l.b16 %v908
    %v941 = vpack.c.b16 %v926, %v925
    %v942 = vpack.c.b16 %v928, %v927
    %v943 = vpack.c.b16 %v930, %v929
    %v944 = vpack.c.b16 %v932, %v931
    %v945 = vpack.c.b16 %v934, %v933
    %v946 = vpack.c.b16 %v936, %v935
    %v947 = vpack.c.b16 %v938, %v937
    %v948 = vpack.c.b16 %v940, %v939
    %957 = vmatpush.bf16.msra.mxu0 %v948
    %958 = vmatpush.bf16.msra.mxu0 %v947
    %959 = vmatpush.bf16.msra.mxu0 %v946
    %960 = vmatpush.bf16.msra.mxu0 %v945
    %961 = vmatpush.bf16.msra.mxu0 %v944
    %962 = vmatpush.bf16.msra.mxu0 %v943
    %963 = vmatpush.bf16.msra.mxu0 %v942
    %964 = vmatpush.bf16.msra.mxu0 %v941
    %965 = vmatmul.bf16.gmra.mxu0 %v892
    %v966 = vpop.f32.mrf.mxu0
    %v967 = vadd.f32 0.0, %v966
    %v968 = vpop.f32.mrf.mxu0
    %969 = vdwg.mxu0
    %v970 = vadd.f32 %v148, %v967
    %v971 = vld [vmem:[%s10] sm:$0x1]
    %v972 = vmul.f32 %v970, %v970
    %973 = vadd.xlane.f32.xlu0 %v972
    %v974 = vpop.xlane.xlu0 %973
    %v975 = vmul.f32 %v974, %v159
    %v976 = vadd.f32 %v975, 1e-05
    %v977 = vrsqrt.pop %v976
    %v978 = vmul.f32 %v977, %v976
    %v979 = vmul.f32 %v978, %v977
    %v980 = vmul.f32 0.5, %v979
    %v981 = vsub.f32 1.5, %v980
    %v982 = vmul.f32 %v977, %v981
    %vm983 = vweird.f32 %v976
    %vm984 = vweird.f32 %v977
    %vm985 = vmor %vm983, %vm984
    %v986 = vsel %vm985, %v977, %v982
    %v987 = vmul.f32 %v970, %v986
    %v989 = vperm.slane %v971, 0
    %v991 = vmul.f32 %v987, %v989
    %v992 = vpack.c.bf16 %v991, %v991
    %v993 = vld [vmem:[#allocation8] sm:$0xff]
    %v994 = vld [vmem:[#allocation8 + $0x8] sm:$0xff]
    %v995 = vld [vmem:[#allocation8 + $0x10] sm:$0xff]
    %v996 = vld [vmem:[#allocation8 + $0x18] sm:$0xff]
    %v997 = vld [vmem:[#allocation8 + $0x20] sm:$0xff]
    %v998 = vld [vmem:[#allocation8 + $0x28] sm:$0xff]
    %v999 = vld [vmem:[#allocation8 + $0x30] sm:$0xff]
    %v1000 = vld [vmem:[#allocation8 + $0x38] sm:$0xff]
    %v1001 = vld [vmem:[#allocation8 + $0x40] sm:$0xff]
    %v1002 = vld [vmem:[#allocation8 + $0x48] sm:$0xff]
    %v1003 = vld [vmem:[#allocation8 + $0x50] sm:$0xff]
    %v1004 = vld [vmem:[#allocation8 + $0x58] sm:$0xff]
    %v1005 = vld [vmem:[#allocation8 + $0x60] sm:$0xff]
    %v1006 = vld [vmem:[#allocation8 + $0x68] sm:$0xff]
    %v1007 = vld [vmem:[#allocation8 + $0x70] sm:$0xff]
    %v1008 = vld [vmem:[#allocation8 + $0x78] sm:$0xff]
    %v1009 = vld [vmem:[#allocation8 + $0x80] sm:$0xff]
    %v1010 = vld [vmem:[#allocation8 + $0x88] sm:$0xff]
    %v1011 = vld [vmem:[#allocation8 + $0x90] sm:$0xff]
    %v1012 = vld [vmem:[#allocation8 + $0x98] sm:$0xff]
    %v1013 = vld [vmem:[#allocation8 + $0xa0] sm:$0xff]
    %v1014 = vld [vmem:[#allocation8 + $0xa8] sm:$0xff]
    %v1015 = vld [vmem:[#allocation8 + $0xb0] sm:$0xff]
    %v1016 = vld [vmem:[#allocation8 + $0xb8] sm:$0xff]
    %v1017 = vld [vmem:[#allocation8 + $0xc0] sm:$0xff]
    %v1018 = vld [vmem:[#allocation8 + $0xc8] sm:$0xff]
    %v1019 = vld [vmem:[#allocation8 + $0xd0] sm:$0xff]
    %v1020 = vld [vmem:[#allocation8 + $0xd8] sm:$0xff]
    %v1021 = vld [vmem:[#allocation8 + $0xe0] sm:$0xff]
    %v1022 = vld [vmem:[#allocation8 + $0xe8] sm:$0xff]
    %v1023 = vld [vmem:[#allocation8 + $0xf0] sm:$0xff]
    %v1024 = vld [vmem:[#allocation8 + $0xf8] sm:$0xff]
    %v1057 = vunpack.c.l.b16 %v993
    %v1058 = vunpack.c.h.b16 %v993
    %v1059 = vunpack.c.l.b16 %v994
    %v1060 = vunpack.c.h.b16 %v994
    %v1061 = vunpack.c.l.b16 %v995
    %v1062 = vunpack.c.h.b16 %v995
    %v1063 = vunpack.c.l.b16 %v996
    %v1064 = vunpack.c.h.b16 %v996
    %v1065 = vunpack.c.l.b16 %v997
    %v1066 = vunpack.c.h.b16 %v997
    %v1067 = vunpack.c.l.b16 %v998
    %v1068 = vunpack.c.h.b16 %v998
    %v1069 = vunpack.c.l.b16 %v999
    %v1070 = vunpack.c.h.b16 %v999
    %v1071 = vunpack.c.l.b16 %v1000
    %v1072 = vunpack.c.h.b16 %v1000
    %v1073 = vunpack.c.l.b16 %v1001
    %v1074 = vunpack.c.h.b16 %v1001
    %v1075 = vunpack.c.l.b16 %v1002
    %v1076 = vunpack.c.h.b16 %v1002
    %v1077 = vunpack.c.l.b16 %v1003
    %v1078 = vunpack.c.h.b16 %v1003
    %v1079 = vunpack.c.l.b16 %v1004
    %v1080 = vunpack.c.h.b16 %v1004
    %v1081 = vunpack.c.l.b16 %v1005
    %v1082 = vunpack.c.h.b16 %v1005
    %v1083 = vunpack.c.l.b16 %v1006
    %v1084 = vunpack.c.h.b16 %v1006
    %v1085 = vunpack.c.l.b16 %v1007
    %v1086 = vunpack.c.h.b16 %v1007
    %v1087 = vunpack.c.l.b16 %v1008
    %v1088 = vunpack.c.h.b16 %v1008
    %v1089 = vunpack.c.l.b16 %v1009
    %v1090 = vunpack.c.h.b16 %v1009
    %v1091 = vunpack.c.l.b16 %v1010
    %v1092 = vunpack.c.h.b16 %v1010
    %v1093 = vunpack.c.l.b16 %v1011
    %v1094 = vunpack.c.h.b16 %v1011
    %v1095 = vunpack.c.l.b16 %v1012
    %v1096 = vunpack.c.h.b16 %v1012
    %v1097 = vunpack.c.l.b16 %v1013
    %v1098 = vunpack.c.h.b16 %v1013
    %v1099 = vunpack.c.l.b16 %v1014
    %v1100 = vunpack.c.h.b16 %v1014
    %v1101 = vunpack.c.l.b16 %v1015
    %v1102 = vunpack.c.h.b16 %v1015
    %v1103 = vunpack.c.l.b16 %v1016
    %v1104 = vunpack.c.h.b16 %v1016
    %v1105 = vunpack.c.l.b16 %v1017
    %v1106 = vunpack.c.h.b16 %v1017
    %v1107 = vunpack.c.l.b16 %v1018
    %v1108 = vunpack.c.h.b16 %v1018
    %v1109 = vunpack.c.l.b16 %v1019
    %v1110 = vunpack.c.h.b16 %v1019
    %v1111 = vunpack.c.l.b16 %v1020
    %v1112 = vunpack.c.h.b16 %v1020
    %v1113 = vunpack.c.l.b16 %v1021
    %v1114 = vunpack.c.h.b16 %v1021
    %v1115 = vunpack.c.l.b16 %v1022
    %v1116 = vunpack.c.h.b16 %v1022
    %v1117 = vunpack.c.l.b16 %v1023
    %v1118 = vunpack.c.h.b16 %v1023
    %v1119 = vunpack.c.l.b16 %v1024
    %v1120 = vunpack.c.h.b16 %v1024
    %v1121 = vpack.c.b16 %v1061, %v1057
    %v1122 = vpack.c.b16 %v1062, %v1058
    %v1123 = vpack.c.b16 %v1063, %v1059
    %v1124 = vpack.c.b16 %v1064, %v1060
    %v1125 = vpack.c.b16 %v1069, %v1065
    %v1126 = vpack.c.b16 %v1070, %v1066
    %v1127 = vpack.c.b16 %v1071, %v1067
    %v1128 = vpack.c.b16 %v1072, %v1068
    %v1129 = vpack.c.b16 %v1077, %v1073
    %v1130 = vpack.c.b16 %v1078, %v1074
    %v1131 = vpack.c.b16 %v1079, %v1075
    %v1132 = vpack.c.b16 %v1080, %v1076
    %v1133 = vpack.c.b16 %v1085, %v1081
    %v1134 = vpack.c.b16 %v1086, %v1082
    %v1135 = vpack.c.b16 %v1087, %v1083
    %v1136 = vpack.c.b16 %v1088, %v1084
    %v1137 = vpack.c.b16 %v1093, %v1089
    %v1138 = vpack.c.b16 %v1094, %v1090
    %v1139 = vpack.c.b16 %v1095, %v1091
    %v1140 = vpack.c.b16 %v1096, %v1092
    %v1141 = vpack.c.b16 %v1101, %v1097
    %v1142 = vpack.c.b16 %v1102, %v1098
    %v1143 = vpack.c.b16 %v1103, %v1099
    %v1144 = vpack.c.b16 %v1104, %v1100
    %v1145 = vpack.c.b16 %v1109, %v1105
    %v1146 = vpack.c.b16 %v1110, %v1106
    %v1147 = vpack.c.b16 %v1111, %v1107
    %v1148 = vpack.c.b16 %v1112, %v1108
    %v1149 = vpack.c.b16 %v1117, %v1113
    %v1150 = vpack.c.b16 %v1118, %v1114
    %v1151 = vpack.c.b16 %v1119, %v1115
    %v1152 = vpack.c.b16 %v1120, %v1116
    %1185 = vmatpush.bf16.msra.mxu0 %v1149
    %1186 = vmatpush.bf16.msra.mxu0 %v1145
    %1187 = vmatpush.bf16.msra.mxu0 %v1141
    %1188 = vmatpush.bf16.msra.mxu0 %v1137
    %1189 = vmatpush.bf16.msra.mxu0 %v1133
    %1190 = vmatpush.bf16.msra.mxu0 %v1129
    %1191 = vmatpush.bf16.msra.mxu0 %v1125
    %1192 = vmatpush.bf16.msra.mxu0 %v1121
    %1193 = vmatmul.bf16.gmra.mxu0 %v992
    %v1194 = vpop.f32.mrf.mxu0
    %v1195 = vadd.f32 0.0, %v1194
    %v1196 = vpop.f32.mrf.mxu0
    %1197 = vdwg.mxu0
    %1198 = vmatpush.bf16.msra.mxu0 %v1150
    %1199 = vmatpush.bf16.msra.mxu0 %v1146
    %1200 = vmatpush.bf16.msra.mxu0 %v1142
    %1201 = vmatpush.bf16.msra.mxu0 %v1138
    %1202 = vmatpush.bf16.msra.mxu0 %v1134
    %1203 = vmatpush.bf16.msra.mxu0 %v1130
    %1204 = vmatpush.bf16.msra.mxu0 %v1126
    %1205 = vmatpush.bf16.msra.mxu0 %v1122
    %1206 = vmatmul.bf16.gmra.mxu0 %v992
    %v1207 = vpop.f32.mrf.mxu0
    %v1208 = vadd.f32 0.0, %v1207
    %v1209 = vpop.f32.mrf.mxu0
    %1210 = vdwg.mxu0
    %1211 = vmatpush.bf16.msra.mxu0 %v1151
    %1212 = vmatpush.bf16.msra.mxu0 %v1147
    %1213 = vmatpush.bf16.msra.mxu0 %v1143
    %1214 = vmatpush.bf16.msra.mxu0 %v1139
    %1215 = vmatpush.bf16.msra.mxu0 %v1135
    %1216 = vmatpush.bf16.msra.mxu0 %v1131
    %1217 = vmatpush.bf16.msra.mxu0 %v1127
    %1218 = vmatpush.bf16.msra.mxu0 %v1123
    %1219 = vmatmul.bf16.gmra.mxu0 %v992
    %v1220 = vpop.f32.mrf.mxu0
    %v1221 = vadd.f32 0.0, %v1220
    %v1222 = vpop.f32.mrf.mxu0
    %1223 = vdwg.mxu0
    %1224 = vmatpush.bf16.msra.mxu0 %v1152
    %1225 = vmatpush.bf16.msra.mxu0 %v1148
    %1226 = vmatpush.bf16.msra.mxu0 %v1144
    %1227 = vmatpush.bf16.msra.mxu0 %v1140
    %1228 = vmatpush.bf16.msra.mxu0 %v1136
    %1229 = vmatpush.bf16.msra.mxu0 %v1132
    %1230 = vmatpush.bf16.msra.mxu0 %v1128
    %1231 = vmatpush.bf16.msra.mxu0 %v1124
    %1232 = vmatmul.bf16.gmra.mxu0 %v992
    %v1233 = vpop.f32.mrf.mxu0
    %v1234 = vadd.f32 0.0, %v1233
    %v1235 = vpop.f32.mrf.mxu0
    %1236 = vdwg.mxu0
    %v1237 = vxor.u32 %v1195, 2147483648
    %v1238 = vxor.u32 %v1208, 2147483648
    %v1239 = vmul.f32 %v1237, 1.442695
    %v1240 = vpow.pop %v1239
    %v1241 = vmul.f32 %v1238, 1.442695
    %v1242 = vpow.pop %v1241
    %v1243 = vadd.f32 %v1240, 1.0
    %v1244 = vadd.f32 %v1242, 1.0
    %v1245 = vrcp.pop %v1243
    %v1246 = vmul.f32 %v1243, %v1245
    %v1247 = vsub.f32 1.0, %v1246
    %v1248 = vmul.f32 %v1245, %v1247
    %v1249 = vadd.f32 %v1245, %v1248
    %vm1250 = vweird.f32 %v1243
    %vm1251 = vweird.f32 %v1245
    %vm1252 = vmor %vm1250, %vm1251
    %v1253 = vsel %vm1252, %v1245, %v1249
    %v1254 = vand.u32 2147483647, %v1243
    %vm1255 = vcmp.eq.f32.partialorder %v1254, 8.507059e+37
    %v1256 = vand.u32 %v1243, 2147483648
    %v1257 = vor.u32 1.1754944e-38, %v1256
    %v1258 = vsel %vm1255, %v1257, %v1253
    %v1259 = vmul.f32 1.0, %v1258
    %v1260 = vrcp.pop %v1244
    %v1261 = vmul.f32 %v1244, %v1260
    %v1262 = vsub.f32 1.0, %v1261
    %v1263 = vmul.f32 %v1260, %v1262
    %v1264 = vadd.f32 %v1260, %v1263
    %vm1265 = vweird.f32 %v1244
    %vm1266 = vweird.f32 %v1260
    %vm1267 = vmor %vm1265, %vm1266
    %v1268 = vsel %vm1267, %v1260, %v1264
    %v1269 = vand.u32 2147483647, %v1244
    %vm1270 = vcmp.eq.f32.partialorder %v1269, 8.507059e+37
    %v1271 = vand.u32 %v1244, 2147483648
    %v1272 = vor.u32 1.1754944e-38, %v1271
    %v1273 = vsel %vm1270, %v1272, %v1268
    %v1274 = vmul.f32 1.0, %v1273
    %v1275 = vmul.f32 %v1195, %v1259
    %v1276 = vmul.f32 %v1208, %v1274
    %v1277 = vmul.f32 %v1275, %v1221
    %v1278 = vmul.f32 %v1276, %v1234
    %v1279 = vpack.c.bf16 %v1277, %v1277
    %v1280 = vpack.c.bf16 %v1278, %v1278
    %v1281 = vld [vmem:[#allocation9] sm:$0xf]
    %v1282 = vld [vmem:[#allocation9 + $0x4] sm:$0xf]
    %v1283 = vld [vmem:[#allocation9 + $0x8] sm:$0xf]
    %v1284 = vld [vmem:[#allocation9 + $0xc] sm:$0xf]
    %v1285 = vld [vmem:[#allocation9 + $0x10] sm:$0xf]
    %v1286 = vld [vmem:[#allocation9 + $0x14] sm:$0xf]
    %v1287 = vld [vmem:[#allocation9 + $0x18] sm:$0xf]
    %v1288 = vld [vmem:[#allocation9 + $0x1c] sm:$0xf]
    %v1289 = vld [vmem:[#allocation9 + $0x20] sm:$0xf]
    %v1290 = vld [vmem:[#allocation9 + $0x24] sm:$0xf]
    %v1291 = vld [vmem:[#allocation9 + $0x28] sm:$0xf]
    %v1292 = vld [vmem:[#allocation9 + $0x2c] sm:$0xf]
    %v1293 = vld [vmem:[#allocation9 + $0x30] sm:$0xf]
    %v1294 = vld [vmem:[#allocation9 + $0x34] sm:$0xf]
    %v1295 = vld [vmem:[#allocation9 + $0x38] sm:$0xf]
    %v1296 = vld [vmem:[#allocation9 + $0x3c] sm:$0xf]
    %v1297 = vld [vmem:[#allocation9 + $0x40] sm:$0xf]
    %v1298 = vld [vmem:[#allocation9 + $0x44] sm:$0xf]
    %v1299 = vld [vmem:[#allocation9 + $0x48] sm:$0xf]
    %v1300 = vld [vmem:[#allocation9 + $0x4c] sm:$0xf]
    %v1301 = vld [vmem:[#allocation9 + $0x50] sm:$0xf]
    %v1302 = vld [vmem:[#allocation9 + $0x54] sm:$0xf]
    %v1303 = vld [vmem:[#allocation9 + $0x58] sm:$0xf]
    %v1304 = vld [vmem:[#allocation9 + $0x5c] sm:$0xf]
    %v1305 = vld [vmem:[#allocation9 + $0x60] sm:$0xf]
    %v1306 = vld [vmem:[#allocation9 + $0x64] sm:$0xf]
    %v1307 = vld [vmem:[#allocation9 + $0x68] sm:$0xf]
    %v1308 = vld [vmem:[#allocation9 + $0x6c] sm:$0xf]
    %v1309 = vld [vmem:[#allocation9 + $0x70] sm:$0xf]
    %v1310 = vld [vmem:[#allocation9 + $0x74] sm:$0xf]
    %v1311 = vld [vmem:[#allocation9 + $0x78] sm:$0xf]
    %v1312 = vld [vmem:[#allocation9 + $0x7c] sm:$0xf]
    %v1345 = vunpack.c.l.b16 %v1281
    %v1346 = vunpack.c.l.b16 %v1282
    %v1347 = vunpack.c.l.b16 %v1283
    %v1348 = vunpack.c.l.b16 %v1284
    %v1349 = vunpack.c.l.b16 %v1285
    %v1350 = vunpack.c.l.b16 %v1286
    %v1351 = vunpack.c.l.b16 %v1287
    %v1352 = vunpack.c.l.b16 %v1288
    %v1353 = vunpack.c.l.b16 %v1289
    %v1354 = vunpack.c.l.b16 %v1290
    %v1355 = vunpack.c.l.b16 %v1291
    %v1356 = vunpack.c.l.b16 %v1292
    %v1357 = vunpack.c.l.b16 %v1293
    %v1358 = vunpack.c.l.b16 %v1294
    %v1359 = vunpack.c.l.b16 %v1295
    %v1360 = vunpack.c.l.b16 %v1296
    %v1361 = vunpack.c.l.b16 %v1297
    %v1362 = vunpack.c.l.b16 %v1298
    %v1363 = vunpack.c.l.b16 %v1299
    %v1364 = vunpack.c.l.b16 %v1300
    %v1365 = vunpack.c.l.b16 %v1301
    %v1366 = vunpack.c.l.b16 %v1302
    %v1367 = vunpack.c.l.b16 %v1303
    %v1368 = vunpack.c.l.b16 %v1304
    %v1369 = vunpack.c.l.b16 %v1305
    %v1370 = vunpack.c.l.b16 %v1306
    %v1371 = vunpack.c.l.b16 %v1307
    %v1372 = vunpack.c.l.b16 %v1308
    %v1373 = vunpack.c.l.b16 %v1309
    %v1374 = vunpack.c.l.b16 %v1310
    %v1375 = vunpack.c.l.b16 %v1311
    %v1376 = vunpack.c.l.b16 %v1312
    %v1377 = vpack.c.b16 %v1346, %v1345
    %v1378 = vpack.c.b16 %v1348, %v1347
    %v1379 = vpack.c.b16 %v1350, %v1349
    %v1380 = vpack.c.b16 %v1352, %v1351
    %v1381 = vpack.c.b16 %v1354, %v1353
    %v1382 = vpack.c.b16 %v1356, %v1355
    %v1383 = vpack.c.b16 %v1358, %v1357
    %v1384 = vpack.c.b16 %v1360, %v1359
    %v1385 = vpack.c.b16 %v1362, %v1361
    %v1386 = vpack.c.b16 %v1364, %v1363
    %v1387 = vpack.c.b16 %v1366, %v1365
    %v1388 = vpack.c.b16 %v1368, %v1367
    %v1389 = vpack.c.b16 %v1370, %v1369
    %v1390 = vpack.c.b16 %v1372, %v1371
    %v1391 = vpack.c.b16 %v1374, %v1373
    %v1392 = vpack.c.b16 %v1376, %v1375
    %1409 = vmatpush.bf16.msra.mxu0 %v1384
    %1410 = vmatpush.bf16.msra.mxu0 %v1383
    %1411 = vmatpush.bf16.msra.mxu0 %v1382
    %1412 = vmatpush.bf16.msra.mxu0 %v1381
    %1413 = vmatpush.bf16.msra.mxu0 %v1380
    %1414 = vmatpush.bf16.msra.mxu0 %v1379
    %1415 = vmatpush.bf16.msra.mxu0 %v1378
    %1416 = vmatpush.bf16.msra.mxu0 %v1377
    %1417 = vmatmul.bf16.gmra.mxu0 %v1279
    %v1418 = vpop.f32.mrf.mxu0
    %v1419 = vadd.f32 0.0, %v1418
    %v1420 = vpop.f32.mrf.mxu0
    %1421 = vdwg.mxu0
    %1422 = vmatpush.bf16.msra.mxu0 %v1392
    %1423 = vmatpush.bf16.msra.mxu0 %v1391
    %1424 = vmatpush.bf16.msra.mxu0 %v1390
    %1425 = vmatpush.bf16.msra.mxu0 %v1389
    %1426 = vmatpush.bf16.msra.mxu0 %v1388
    %1427 = vmatpush.bf16.msra.mxu0 %v1387
    %1428 = vmatpush.bf16.msra.mxu0 %v1386
    %1429 = vmatpush.bf16.msra.mxu0 %v1385
    %1430 = vmatmul.bf16.gmra.mxu0 %v1280
    %v1431 = vpop.f32.mrf.mxu0
    %v1432 = vadd.f32 %v1419, %v1431
    %v1433 = vpop.f32.mrf.mxu0
    %1434 = vdwg.mxu0
    %v1435 = vadd.f32 %v970, %v1432
    %s1436 = scalar_lea.vmem %s7, 1
    %v1437 = vld [vmem:[%s1436] sm:$0x1]
    %v1438 = vmul.f32 %v1435, %v1435
    %1439 = vadd.xlane.f32.xlu0 %v1438
    %v1440 = vpop.xlane.xlu0 %1439
    %v1441 = vmul.f32 %v1440, %v159
    %v1442 = vadd.f32 %v1441, 1e-05
    %v1443 = vrsqrt.pop %v1442
    %v1444 = vmul.f32 %v1443, %v1442
    %v1445 = vmul.f32 %v1444, %v1443
    %v1446 = vmul.f32 0.5, %v1445
    %v1447 = vsub.f32 1.5, %v1446
    %v1448 = vmul.f32 %v1443, %v1447
    %vm1449 = vweird.f32 %v1442
    %vm1450 = vweird.f32 %v1443
    %vm1451 = vmor %vm1449, %vm1450
    %v1452 = vsel %vm1451, %v1443, %v1448
    %v1453 = vmul.f32 %v1435, %v1452
    %v1455 = vperm.slane %v1437, 0
    %v1457 = vmul.f32 %v1453, %v1455
    %v1458 = vpack.c.bf16 %v1457, %v1457
    %s1459 = scalar_lea.vmem [#allocation3], 320
    %v1460 = vld [vmem:[%s1459] sm:$0xff]
    %v1461 = vld [vmem:[%s1459 + $0x8] sm:$0xff]
    %v1462 = vld [vmem:[%s1459 + $0x10] sm:$0xf]
    %v1463 = vld [vmem:[%s1459 + $0x14] sm:$0xff]
    %v1464 = vld [vmem:[%s1459 + $0x1c] sm:$0xff]
    %v1465 = vld [vmem:[%s1459 + $0x24] sm:$0xf]
    %v1466 = vld [vmem:[%s1459 + $0x28] sm:$0xff]
    %v1467 = vld [vmem:[%s1459 + $0x30] sm:$0xff]
    %v1468 = vld [vmem:[%s1459 + $0x38] sm:$0xf]
    %v1469 = vld [vmem:[%s1459 + $0x3c] sm:$0xff]
    %v1470 = vld [vmem:[%s1459 + $0x44] sm:$0xff]
    %v1471 = vld [vmem:[%s1459 + $0x4c] sm:$0xf]
    %v1472 = vld [vmem:[%s1459 + $0x50] sm:$0xff]
    %v1473 = vld [vmem:[%s1459 + $0x58] sm:$0xff]
    %v1474 = vld [vmem:[%s1459 + $0x60] sm:$0xf]
    %v1475 = vld [vmem:[%s1459 + $0x64] sm:$0xff]
    %v1476 = vld [vmem:[%s1459 + $0x6c] sm:$0xff]
    %v1477 = vld [vmem:[%s1459 + $0x74] sm:$0xf]
    %v1478 = vld [vmem:[%s1459 + $0x78] sm:$0xff]
    %v1479 = vld [vmem:[%s1459 + $0x80] sm:$0xff]
    %v1480 = vld [vmem:[%s1459 + $0x88] sm:$0xf]
    %v1481 = vld [vmem:[%s1459 + $0x8c] sm:$0xff]
    %v1482 = vld [vmem:[%s1459 + $0x94] sm:$0xff]
    %v1483 = vld [vmem:[%s1459 + $0x9c] sm:$0xf]
    %v1484 = vld [vmem:[%s1459 + $0xa0] sm:$0xff]
    %v1485 = vld [vmem:[%s1459 + $0xa8] sm:$0xff]
    %v1486 = vld [vmem:[%s1459 + $0xb0] sm:$0xf]
    %v1487 = vld [vmem:[%s1459 + $0xb4] sm:$0xff]
    %v1488 = vld [vmem:[%s1459 + $0xbc] sm:$0xff]
    %v1489 = vld [vmem:[%s1459 + $0xc4] sm:$0xf]
    %v1490 = vld [vmem:[%s1459 + $0xc8] sm:$0xff]
    %v1491 = vld [vmem:[%s1459 + $0xd0] sm:$0xff]
    %v1492 = vld [vmem:[%s1459 + $0xd8] sm:$0xf]
    %v1493 = vld [vmem:[%s1459 + $0xdc] sm:$0xff]
    %v1494 = vld [vmem:[%s1459 + $0xe4] sm:$0xff]
    %v1495 = vld [vmem:[%s1459 + $0xec] sm:$0xf]
    %v1496 = vld [vmem:[%s1459 + $0xf0] sm:$0xff]
    %v1497 = vld [vmem:[%s1459 + $0xf8] sm:$0xff]
    %v1498 = vld [vmem:[%s1459 + $0x100] sm:$0xf]
    %v1499 = vld [vmem:[%s1459 + $0x104] sm:$0xff]
    %v1500 = vld [vmem:[%s1459 + $0x10c] sm:$0xff]
    %v1501 = vld [vmem:[%s1459 + $0x114] sm:$0xf]
    %v1502 = vld [vmem:[%s1459 + $0x118] sm:$0xff]
    %v1503 = vld [vmem:[%s1459 + $0x120] sm:$0xff]
    %v1504 = vld [vmem:[%s1459 + $0x128] sm:$0xf]
    %v1505 = vld [vmem:[%s1459 + $0x12c] sm:$0xff]
    %v1506 = vld [vmem:[%s1459 + $0x134] sm:$0xff]
    %v1507 = vld [vmem:[%s1459 + $0x13c] sm:$0xf]
    %v1556 = vunpack.c.l.b16 %v1460
    %v1557 = vunpack.c.h.b16 %v1460
    %v1558 = vunpack.c.l.b16 %v1461
    %v1559 = vunpack.c.h.b16 %v1461
    %v1560 = vunpack.c.l.b16 %v1462
    %v1561 = vunpack.c.l.b16 %v1463
    %v1562 = vunpack.c.h.b16 %v1463
    %v1563 = vunpack.c.l.b16 %v1464
    %v1564 = vunpack.c.h.b16 %v1464
    %v1565 = vunpack.c.l.b16 %v1465
    %v1566 = vunpack.c.l.b16 %v1466
    %v1567 = vunpack.c.h.b16 %v1466
    %v1568 = vunpack.c.l.b16 %v1467
    %v1569 = vunpack.c.h.b16 %v1467
    %v1570 = vunpack.c.l.b16 %v1468
    %v1571 = vunpack.c.l.b16 %v1469
    %v1572 = vunpack.c.h.b16 %v1469
    %v1573 = vunpack.c.l.b16 %v1470
    %v1574 = vunpack.c.h.b16 %v1470
    %v1575 = vunpack.c.l.b16 %v1471
    %v1576 = vunpack.c.l.b16 %v1472
    %v1577 = vunpack.c.h.b16 %v1472
    %v1578 = vunpack.c.l.b16 %v1473
    %v1579 = vunpack.c.h.b16 %v1473
    %v1580 = vunpack.c.l.b16 %v1474
    %v1581 = vunpack.c.l.b16 %v1475
    %v1582 = vunpack.c.h.b16 %v1475
    %v1583 = vunpack.c.l.b16 %v1476
    %v1584 = vunpack.c.h.b16 %v1476
    %v1585 = vunpack.c.l.b16 %v1477
    %v1586 = vunpack.c.l.b16 %v1478
    %v1587 = vunpack.c.h.b16 %v1478
    %v1588 = vunpack.c.l.b16 %v1479
    %v1589 = vunpack.c.h.b16 %v1479
    %v1590 = vunpack.c.l.b16 %v1480
    %v1591 = vunpack.c.l.b16 %v1481
    %v1592 = vunpack.c.h.b16 %v1481
    %v1593 = vunpack.c.l.b16 %v1482
    %v1594 = vunpack.c.h.b16 %v1482
    %v1595 = vunpack.c.l.b16 %v1483
    %v1596 = vunpack.c.l.b16 %v1484
    %v1597 = vunpack.c.h.b16 %v1484
    %v1598 = vunpack.c.l.b16 %v1485
    %v1599 = vunpack.c.h.b16 %v1485
    %v1600 = vunpack.c.l.b16 %v1486
    %v1601 = vunpack.c.l.b16 %v1487
    %v1602 = vunpack.c.h.b16 %v1487
    %v1603 = vunpack.c.l.b16 %v1488
    %v1604 = vunpack.c.h.b16 %v1488
    %v1605 = vunpack.c.l.b16 %v1489
    %v1606 = vunpack.c.l.b16 %v1490
    %v1607 = vunpack.c.h.b16 %v1490
    %v1608 = vunpack.c.l.b16 %v1491
    %v1609 = vunpack.c.h.b16 %v1491
    %v1610 = vunpack.c.l.b16 %v1492
    %v1611 = vunpack.c.l.b16 %v1493
    %v1612 = vunpack.c.h.b16 %v1493
    %v1613 = vunpack.c.l.b16 %v1494
    %v1614 = vunpack.c.h.b16 %v1494
    %v1615 = vunpack.c.l.b16 %v1495
    %v1616 = vunpack.c.l.b16 %v1496
    %v1617 = vunpack.c.h.b16 %v1496
    %v1618 = vunpack.c.l.b16 %v1497
    %v1619 = vunpack.c.h.b16 %v1497
    %v1620 = vunpack.c.l.b16 %v1498
    %v1621 = vunpack.c.l.b16 %v1499
    %v1622 = vunpack.c.h.b16 %v1499
    %v1623 = vunpack.c.l.b16 %v1500
    %v1624 = vunpack.c.h.b16 %v1500
    %v1625 = vunpack.c.l.b16 %v1501
    %v1626 = vunpack.c.l.b16 %v1502
    %v1627 = vunpack.c.h.b16 %v1502
    %v1628 = vunpack.c.l.b16 %v1503
    %v1629 = vunpack.c.h.b16 %v1503
    %v1630 = vunpack.c.l.b16 %v1504
    %v1631 = vunpack.c.l.b16 %v1505
    %v1632 = vunpack.c.h.b16 %v1505
    %v1633 = vunpack.c.l.b16 %v1506
    %v1634 = vunpack.c.h.b16 %v1506
    %v1635 = vunpack.c.l.b16 %v1507
    %v1636 = vpack.c.b16 %v1561, %v1556
    %v1637 = vpack.c.b16 %v1562, %v1557
    %v1638 = vpack.c.b16 %v1563, %v1558
    %v1639 = vpack.c.b16 %v1564, %v1559
    %v1640 = vpack.c.b16 %v1565, %v1560
    %v1641 = vpack.c.b16 %v1571, %v1566
    %v1642 = vpack.c.b16 %v1572, %v1567
    %v1643 = vpack.c.b16 %v1573, %v1568
    %v1644 = vpack.c.b16 %v1574, %v1569
    %v1645 = vpack.c.b16 %v1575, %v1570
    %v1646 = vpack.c.b16 %v1581, %v1576
    %v1647 = vpack.c.b16 %v1582, %v1577
    %v1648 = vpack.c.b16 %v1583, %v1578
    %v1649 = vpack.c.b16 %v1584, %v1579
    %v1650 = vpack.c.b16 %v1585, %v1580
    %v1651 = vpack.c.b16 %v1591, %v1586
    %v1652 = vpack.c.b16 %v1592, %v1587
    %v1653 = vpack.c.b16 %v1593, %v1588
    %v1654 = vpack.c.b16 %v1594, %v1589
    %v1655 = vpack.c.b16 %v1595, %v1590
    %v1656 = vpack.c.b16 %v1601, %v1596
    %v1657 = vpack.c.b16 %v1602, %v1597
    %v1658 = vpack.c.b16 %v1603, %v1598
    %v1659 = vpack.c.b16 %v1604, %v1599
    %v1660 = vpack.c.b16 %v1605, %v1600
    %v1661 = vpack.c.b16 %v1611, %v1606
    %v1662 = vpack.c.b16 %v1612, %v1607
    %v1663 = vpack.c.b16 %v1613, %v1608
    %v1664 = vpack.c.b16 %v1614, %v1609
    %v1665 = vpack.c.b16 %v1615, %v1610
    %v1666 = vpack.c.b16 %v1621, %v1616
    %v1667 = vpack.c.b16 %v1622, %v1617
    %v1668 = vpack.c.b16 %v1623, %v1618
    %v1669 = vpack.c.b16 %v1624, %v1619
    %v1670 = vpack.c.b16 %v1625, %v1620
    %v1671 = vpack.c.b16 %v1631, %v1626
    %v1672 = vpack.c.b16 %v1632, %v1627
    %v1673 = vpack.c.b16 %v1633, %v1628
    %v1674 = vpack.c.b16 %v1634, %v1629
    %v1675 = vpack.c.b16 %v1635, %v1630
    %1716 = vmatpush.bf16.msra.mxu0 %v1671
    %1717 = vmatpush.bf16.msra.mxu0 %v1666
    %1718 = vmatpush.bf16.msra.mxu0 %v1661
    %1719 = vmatpush.bf16.msra.mxu0 %v1656
    %1720 = vmatpush.bf16.msra.mxu0 %v1651
    %1721 = vmatpush.bf16.msra.mxu0 %v1646
    %1722 = vmatpush.bf16.msra.mxu0 %v1641
    %1723 = vmatpush.bf16.msra.mxu0 %v1636
    %1724 = vmatmul.bf16.gmra.mxu0 %v1458
    %v1725 = vpop.f32.mrf.mxu0
    %v1726 = vadd.f32 0.0, %v1725
    %v1727 = vpop.f32.mrf.mxu0
    %1728 = vdwg.mxu0
    %1729 = vmatpush.bf16.msra.mxu0 %v1672
    %1730 = vmatpush.bf16.msra.mxu0 %v1667
    %1731 = vmatpush.bf16.msra.mxu0 %v1662
    %1732 = vmatpush.bf16.msra.mxu0 %v1657
    %1733 = vmatpush.bf16.msra.mxu0 %v1652
    %1734 = vmatpush.bf16.msra.mxu0 %v1647
    %1735 = vmatpush.bf16.msra.mxu0 %v1642
    %1736 = vmatpush.bf16.msra.mxu0 %v1637
    %1737 = vmatmul.bf16.gmra.mxu0 %v1458
    %v1738 = vpop.f32.mrf.mxu0
    %v1739 = vadd.f32 0.0, %v1738
    %v1740 = vpop.f32.mrf.mxu0
    %1741 = vdwg.mxu0
    %1742 = vmatpush.bf16.msra.mxu0 %v1673
    %1743 = vmatpush.bf16.msra.mxu0 %v1668
    %1744 = vmatpush.bf16.msra.mxu0 %v1663
    %1745 = vmatpush.bf16.msra.mxu0 %v1658
    %1746 = vmatpush.bf16.msra.mxu0 %v1653
    %1747 = vmatpush.bf16.msra.mxu0 %v1648
    %1748 = vmatpush.bf16.msra.mxu0 %v1643
    %1749 = vmatpush.bf16.msra.mxu0 %v1638
    %1750 = vmatmul.bf16.gmra.mxu0 %v1458
    %v1751 = vpop.f32.mrf.mxu0
    %v1752 = vadd.f32 0.0, %v1751
    %v1753 = vpop.f32.mrf.mxu0
    %1754 = vdwg.mxu0
    %1755 = vmatpush.bf16.msra.mxu0 %v1674
    %1756 = vmatpush.bf16.msra.mxu0 %v1669
    %1757 = vmatpush.bf16.msra.mxu0 %v1664
    %1758 = vmatpush.bf16.msra.mxu0 %v1659
    %1759 = vmatpush.bf16.msra.mxu0 %v1654
    %1760 = vmatpush.bf16.msra.mxu0 %v1649
    %1761 = vmatpush.bf16.msra.mxu0 %v1644
    %1762 = vmatpush.bf16.msra.mxu0 %v1639
    %1763 = vmatmul.bf16.gmra.mxu0 %v1458
    %v1764 = vpop.f32.mrf.mxu0
    %v1765 = vadd.f32 0.0, %v1764
    %v1766 = vpop.f32.mrf.mxu0
    %1767 = vdwg.mxu0
    %1768 = vmatpush.bf16.msra.mxu0 %v1675
    %1769 = vmatpush.bf16.msra.mxu0 %v1670
    %1770 = vmatpush.bf16.msra.mxu0 %v1665
    %1771 = vmatpush.bf16.msra.mxu0 %v1660
    %1772 = vmatpush.bf16.msra.mxu0 %v1655
    %1773 = vmatpush.bf16.msra.mxu0 %v1650
    %1774 = vmatpush.bf16.msra.mxu0 %v1645
    %1775 = vmatpush.bf16.msra.mxu0 %v1640
    %1776 = vmatmul.bf16.gmra.mxu0 %v1458
    %v1777 = vpop.f32.mrf.mxu0
    %v1778 = vadd.f32 0.0, %v1777
    %v1779 = vpop.f32.mrf.mxu0
    %1780 = vdwg.mxu0
    %v1781 = vmul.f32 %v1726, %v144
    %v1782 = vmul.f32 %v1739, %v145
    %v1783 = vmul.f32 %v1752, %v146
    %v1784 = vmul.f32 %v1765, %v147
    %v1785 = vadd.f32 %v1781, %v1783
    %v1786 = vadd.f32 %v1782, %v1784
    %v1787 = vpack.c.bf16 %v1785, %v1785
    %1788 = vxpose.xlu0.b32.start [1/16] %v1786, 128
    %1789 = vxpose.xlu0.b32.cont [2/16] 0.0, 128
    %1790 = vxpose.xlu0.b32.cont [3/16] 0.0, 128
    %1791 = vxpose.xlu0.b32.cont [4/16] 0.0, 128
    %1792 = vxpose.xlu0.b32.cont [5/16] 0.0, 128
    %1793 = vxpose.xlu0.b32.cont [6/16] 0.0, 128
    %1794 = vxpose.xlu0.b32.cont [7/16] 0.0, 128
    %1795 = vxpose.xlu0.b32.cont [8/16] 0.0, 128
    %1796 = vxpose.xlu0.b32.cont [9/16] 0.0, 128
    %1797 = vxpose.xlu0.b32.cont [10/16] 0.0, 128
    %1798 = vxpose.xlu0.b32.cont [11/16] 0.0, 128
    %1799 = vxpose.xlu0.b32.cont [12/16] 0.0, 128
    %1800 = vxpose.xlu0.b32.cont [13/16] 0.0, 128
    %1801 = vxpose.xlu0.b32.cont [14/16] 0.0, 128
    %1802 = vxpose.xlu0.b32.cont [15/16] 0.0, 128
    %1803 = vxpose.xlu0.b32.end [16/16] 0.0, 128
    %v1804 = vpop.trf.xlu0
    %v1805 = vpop.trf.xlu0
    %v1806 = vpop.trf.xlu0
    %v1807 = vpop.trf.xlu0
    %v1808 = vpop.trf.xlu0
    %v1809 = vpop.trf.xlu0
    %v1810 = vpop.trf.xlu0
    %v1811 = vpop.trf.xlu0
    %v1812 = vpop.trf.xlu0
    %v1813 = vpop.trf.xlu0
    %v1814 = vpop.trf.xlu0
    %v1815 = vpop.trf.xlu0
    %v1816 = vpop.trf.xlu0
    %v1817 = vpop.trf.xlu0
    %v1818 = vpop.trf.xlu0
    %v1819 = vpop.trf.xlu0
    %v1820 = vpack.c.bf16 %v1804, %v1804
    %v1821 = vpack.c.bf16 %v1805, %v1805
    %v1822 = vpack.c.bf16 %v1806, %v1806
    %v1823 = vpack.c.bf16 %v1807, %v1807
    %v1824 = vpack.c.bf16 %v1808, %v1808
    %v1825 = vpack.c.bf16 %v1809, %v1809
    %v1826 = vpack.c.bf16 %v1810, %v1810
    %v1827 = vpack.c.bf16 %v1811, %v1811
    %v1828 = vpack.c.bf16 %v1812, %v1812
    %v1829 = vpack.c.bf16 %v1813, %v1813
    %v1830 = vpack.c.bf16 %v1814, %v1814
    %v1831 = vpack.c.bf16 %v1815, %v1815
    %v1832 = vpack.c.bf16 %v1816, %v1816
    %v1833 = vpack.c.bf16 %v1817, %v1817
    %v1834 = vpack.c.bf16 %v1818, %v1818
    %v1835 = vpack.c.bf16 %v1819, %v1819
    %v1836 = vpack.c.bf16 %v1778, %v1778
    %v1841 = vunpack.c.l.b16 %v1820
    %v1842 = vunpack.c.l.b16 %v1821
    %v1843 = vunpack.c.l.b16 %v1822
    %v1844 = vunpack.c.l.b16 %v1823
    %v1845 = vpack.c.b16 %v1842, %v1841
    %v1846 = vpack.c.b16 %v1844, %v1843
    %v1850 = vsel %vm567, %v1787, 0
    %1852 = vmatpush.bf16.msra.mxu0 0
    %1853 = vmatpush.bf16.msra.mxu0 0
    %1854 = vmatpush.bf16.msra.mxu0 0
    %1855 = vmatpush.bf16.msra.mxu0 0
    %1856 = vmatpush.bf16.msra.mxu0 0
    %1857 = vmatpush.bf16.msra.mxu0 0
    %1858 = vmatpush.bf16.msra.mxu0 %v1846
    %1859 = vmatpush.bf16.msra.mxu0 %v1845
    %1860 = vmatmul.bf16.gmra.mxu0 %v1850
    %v1861 = vpop.f32.mrf.mxu0
    %v1862 = vadd.f32 0.0, %v1861
    %v1863 = vpop.f32.mrf.mxu0
    %1864 = vdwg.mxu0
    %v1865 = vmul.f32 %v1862, 0.17677669
    %v1866 = vadd.f32 %v1865, %v143
    %v1867 = vsel %vm586, %v1866, -inf
    %1868 = vmax.xlane.f32.xlu0 %v1867
    %v1869 = vpop.xlane.xlu0 %1868
    %v1870 = vsub.f32 %v1866, %v1869
    %v1871 = vmul.f32 %v1870, 1.442695
    %v1872 = vpow.pop %v1871
    %v1873 = vsel %vm586, %v1872, 0.0
    %1874 = vadd.xlane.f32.xlu0 %v1873
    %v1875 = vpop.xlane.xlu0 %1874
    %v1876 = vrcp.pop %v1875
    %v1877 = vmul.f32 %v1875, %v1876
    %v1878 = vsub.f32 1.0, %v1877
    %v1879 = vmul.f32 %v1876, %v1878
    %v1880 = vadd.f32 %v1876, %v1879
    %vm1881 = vweird.f32 %v1875
    %vm1882 = vweird.f32 %v1876
    %vm1883 = vmor %vm1881, %vm1882
    %v1884 = vsel %vm1883, %v1876, %v1880
    %v1885 = vand.u32 2147483647, %v1875
    %vm1886 = vcmp.eq.f32.partialorder %v1885, 8.507059e+37
    %v1887 = vand.u32 %v1875, 2147483648
    %v1888 = vor.u32 1.1754944e-38, %v1887
    %v1889 = vsel %vm1886, %v1888, %v1884
    %v1890 = vmul.f32 %v1872, %v1889
    %v1891 = vpack.c.bf16 %v1890, %v1890
    %v1893 = vsel %vm586, %v1891, 0
    %v1896 = vsel %vm615, %v1836, 0
    %1898 = vmatpush.bf16.msra.mxu0 0
    %1899 = vmatpush.bf16.msra.mxu0 0
    %1900 = vmatpush.bf16.msra.mxu0 0
    %1901 = vmatpush.bf16.msra.mxu0 0
    %1902 = vmatpush.bf16.msra.mxu0 0
    %1903 = vmatpush.bf16.msra.mxu0 0
    %1904 = vmatpush.bf16.msra.mxu0 0
    %1905 = vmatpush.bf16.msra.mxu0 %v1896
    %1906 = vmatmul.bf16.gmra.mxu0 %v1893
    %v1907 = vpop.f32.mrf.mxu0
    %v1908 = vadd.f32 0.0, %v1907
    %v1909 = vpop.f32.mrf.mxu0
    %1910 = vdwg.mxu0
    %1911 = vst.msk [vmem:[#allocation2] sm:$0xff] %vm567, %v1908
    %v1913 = vunpack.c.l.b16 %v1787
    %v1914 = vpack.c.b16 %v1913, %v1913
    %1915 = vrot.lane.b32.xlu0 %v1914, 96
    %v1916 = vpop.permute.xlu0 %1915
    %v1921 = vunpack.c.l.b16 %v1824
    %v1922 = vunpack.c.l.b16 %v1825
    %v1923 = vunpack.c.l.b16 %v1826
    %v1924 = vunpack.c.l.b16 %v1827
    %v1925 = vpack.c.b16 %v1922, %v1921
    %v1926 = vpack.c.b16 %v1924, %v1923
    %v1930 = vsel %vm567, %v1916, 0
    %1932 = vmatpush.bf16.msra.mxu0 0
    %1933 = vmatpush.bf16.msra.mxu0 0
    %1934 = vmatpush.bf16.msra.mxu0 0
    %1935 = vmatpush.bf16.msra.mxu0 0
    %1936 = vmatpush.bf16.msra.mxu0 0
    %1937 = vmatpush.bf16.msra.mxu0 0
    %1938 = vmatpush.bf16.msra.mxu0 %v1926
    %1939 = vmatpush.bf16.msra.mxu0 %v1925
    %1940 = vmatmul.bf16.gmra.mxu0 %v1930
    %v1941 = vpop.f32.mrf.mxu0
    %v1942 = vadd.f32 0.0, %v1941
    %v1943 = vpop.f32.mrf.mxu0
    %1944 = vdwg.mxu0
    %v1945 = vmul.f32 %v1942, 0.17677669
    %v1946 = vadd.f32 %v1945, %v143
    %v1947 = vsel %vm586, %v1946, -inf
    %1948 = vmax.xlane.f32.xlu0 %v1947
    %v1949 = vpop.xlane.xlu0 %1948
    %v1950 = vsub.f32 %v1946, %v1949
    %v1951 = vmul.f32 %v1950, 1.442695
    %v1952 = vpow.pop %v1951
    %v1953 = vsel %vm586, %v1952, 0.0
    %1954 = vadd.xlane.f32.xlu0 %v1953
    %v1955 = vpop.xlane.xlu0 %1954
    %v1956 = vrcp.pop %v1955
    %v1957 = vmul.f32 %v1955, %v1956
    %v1958 = vsub.f32 1.0, %v1957
    %v1959 = vmul.f32 %v1956, %v1958
    %v1960 = vadd.f32 %v1956, %v1959
    %vm1961 = vweird.f32 %v1955
    %vm1962 = vweird.f32 %v1956
    %vm1963 = vmor %vm1961, %vm1962
    %v1964 = vsel %vm1963, %v1956, %v1960
    %v1965 = vand.u32 2147483647, %v1955
    %vm1966 = vcmp.eq.f32.partialorder %v1965, 8.507059e+37
    %v1967 = vand.u32 %v1955, 2147483648
    %v1968 = vor.u32 1.1754944e-38, %v1967
    %v1969 = vsel %vm1966, %v1968, %v1964
    %v1970 = vmul.f32 %v1952, %v1969
    %v1971 = vpack.c.bf16 %v1970, %v1970
    %v1973 = vunpack.c.l.b16 %v1836
    %v1974 = vpack.c.b16 %v1973, %v1973
    %1975 = vrot.lane.b32.xlu0 %v1974, 96
    %v1976 = vpop.permute.xlu0 %1975
    %v1978 = vsel %vm586, %v1971, 0
    %v1981 = vsel %vm615, %v1976, 0
    %1983 = vmatpush.bf16.msra.mxu0 0
    %1984 = vmatpush.bf16.msra.mxu0 0
    %1985 = vmatpush.bf16.msra.mxu0 0
    %1986 = vmatpush.bf16.msra.mxu0 0
    %1987 = vmatpush.bf16.msra.mxu0 0
    %1988 = vmatpush.bf16.msra.mxu0 0
    %1989 = vmatpush.bf16.msra.mxu0 0
    %1990 = vmatpush.bf16.msra.mxu0 %v1981
    %1991 = vmatmul.bf16.gmra.mxu0 %v1978
    %v1992 = vpop.f32.mrf.mxu0
    %v1993 = vadd.f32 0.0, %v1992
    %v1994 = vpop.f32.mrf.mxu0
    %1995 = vdwg.mxu0
    %1997 = vrot.lane.b32.xlu0 %v1993, 32
    %v1998 = vpop.permute.xlu0 %1997
    %2000 = vst.msk [vmem:[#allocation2] sm:$0xff] %vm721, %v1998
    %2001 = vrot.lane.b32.xlu0 %v1914, 64
    %v2002 = vpop.permute.xlu0 %2001
    %v2007 = vunpack.c.l.b16 %v1828
    %v2008 = vunpack.c.l.b16 %v1829
    %v2009 = vunpack.c.l.b16 %v1830
    %v2010 = vunpack.c.l.b16 %v1831
    %v2011 = vpack.c.b16 %v2008, %v2007
    %v2012 = vpack.c.b16 %v2010, %v2009
    %v2016 = vsel %vm567, %v2002, 0
    %2018 = vmatpush.bf16.msra.mxu0 0
    %2019 = vmatpush.bf16.msra.mxu0 0
    %2020 = vmatpush.bf16.msra.mxu0 0
    %2021 = vmatpush.bf16.msra.mxu0 0
    %2022 = vmatpush.bf16.msra.mxu0 0
    %2023 = vmatpush.bf16.msra.mxu0 0
    %2024 = vmatpush.bf16.msra.mxu0 %v2012
    %2025 = vmatpush.bf16.msra.mxu0 %v2011
    %2026 = vmatmul.bf16.gmra.mxu0 %v2016
    %v2027 = vpop.f32.mrf.mxu0
    %v2028 = vadd.f32 0.0, %v2027
    %v2029 = vpop.f32.mrf.mxu0
    %2030 = vdwg.mxu0
    %v2031 = vmul.f32 %v2028, 0.17677669
    %v2032 = vadd.f32 %v2031, %v143
    %v2033 = vsel %vm586, %v2032, -inf
    %2034 = vmax.xlane.f32.xlu0 %v2033
    %v2035 = vpop.xlane.xlu0 %2034
    %v2036 = vsub.f32 %v2032, %v2035
    %v2037 = vmul.f32 %v2036, 1.442695
    %v2038 = vpow.pop %v2037
    %v2039 = vsel %vm586, %v2038, 0.0
    %2040 = vadd.xlane.f32.xlu0 %v2039
    %v2041 = vpop.xlane.xlu0 %2040
    %v2042 = vrcp.pop %v2041
    %v2043 = vmul.f32 %v2041, %v2042
    %v2044 = vsub.f32 1.0, %v2043
    %v2045 = vmul.f32 %v2042, %v2044
    %v2046 = vadd.f32 %v2042, %v2045
    %vm2047 = vweird.f32 %v2041
    %vm2048 = vweird.f32 %v2042
    %vm2049 = vmor %vm2047, %vm2048
    %v2050 = vsel %vm2049, %v2042, %v2046
    %v2051 = vand.u32 2147483647, %v2041
    %vm2052 = vcmp.eq.f32.partialorder %v2051, 8.507059e+37
    %v2053 = vand.u32 %v2041, 2147483648
    %v2054 = vor.u32 1.1754944e-38, %v2053
    %v2055 = vsel %vm2052, %v2054, %v2050
    %v2056 = vmul.f32 %v2038, %v2055
    %v2057 = vpack.c.bf16 %v2056, %v2056
    %2058 = vrot.lane.b32.xlu0 %v1974, 64
    %v2059 = vpop.permute.xlu0 %2058
    %v2061 = vsel %vm586, %v2057, 0
    %v2064 = vsel %vm615, %v2059, 0
    %2066 = vmatpush.bf16.msra.mxu0 0
    %2067 = vmatpush.bf16.msra.mxu0 0
    %2068 = vmatpush.bf16.msra.mxu0 0
    %2069 = vmatpush.bf16.msra.mxu0 0
    %2070 = vmatpush.bf16.msra.mxu0 0
    %2071 = vmatpush.bf16.msra.mxu0 0
    %2072 = vmatpush.bf16.msra.mxu0 0
    %2073 = vmatpush.bf16.msra.mxu0 %v2064
    %2074 = vmatmul.bf16.gmra.mxu0 %v2061
    %v2075 = vpop.f32.mrf.mxu0
    %v2076 = vadd.f32 0.0, %v2075
    %v2077 = vpop.f32.mrf.mxu0
    %2078 = vdwg.mxu0
    %2080 = vrot.lane.b32.xlu0 %v2076, 64
    %v2081 = vpop.permute.xlu0 %2080
    %2083 = vst.msk [vmem:[#allocation2] sm:$0xff] %vm805, %v2081
    %2084 = vrot.lane.b32.xlu0 %v1914, 32
    %v2085 = vpop.permute.xlu0 %2084
    %v2090 = vunpack.c.l.b16 %v1832
    %v2091 = vunpack.c.l.b16 %v1833
    %v2092 = vunpack.c.l.b16 %v1834
    %v2093 = vunpack.c.l.b16 %v1835
    %v2094 = vpack.c.b16 %v2091, %v2090
    %v2095 = vpack.c.b16 %v2093, %v2092
    %v2099 = vsel %vm567, %v2085, 0
    %2101 = vmatpush.bf16.msra.mxu0 0
    %2102 = vmatpush.bf16.msra.mxu0 0
    %2103 = vmatpush.bf16.msra.mxu0 0
    %2104 = vmatpush.bf16.msra.mxu0 0
    %2105 = vmatpush.bf16.msra.mxu0 0
    %2106 = vmatpush.bf16.msra.mxu0 0
    %2107 = vmatpush.bf16.msra.mxu0 %v2095
    %2108 = vmatpush.bf16.msra.mxu0 %v2094
    %2109 = vmatmul.bf16.gmra.mxu0 %v2099
    %v2110 = vpop.f32.mrf.mxu0
    %v2111 = vadd.f32 0.0, %v2110
    %v2112 = vpop.f32.mrf.mxu0
    %2113 = vdwg.mxu0
    %v2114 = vmul.f32 %v2111, 0.17677669
    %v2115 = vadd.f32 %v2114, %v143
    %v2116 = vsel %vm586, %v2115, -inf
    %2117 = vmax.xlane.f32.xlu0 %v2116
    %v2118 = vpop.xlane.xlu0 %2117
    %v2119 = vsub.f32 %v2115, %v2118
    %v2120 = vmul.f32 %v2119, 1.442695
    %v2121 = vpow.pop %v2120
    %v2122 = vsel %vm586, %v2121, 0.0
    %2123 = vadd.xlane.f32.xlu0 %v2122
    %v2124 = vpop.xlane.xlu0 %2123
    %v2125 = vrcp.pop %v2124
    %v2126 = vmul.f32 %v2124, %v2125
    %v2127 = vsub.f32 1.0, %v2126
    %v2128 = vmul.f32 %v2125, %v2127
    %v2129 = vadd.f32 %v2125, %v2128
    %vm2130 = vweird.f32 %v2124
    %vm2131 = vweird.f32 %v2125
    %vm2132 = vmor %vm2130, %vm2131
    %v2133 = vsel %vm2132, %v2125, %v2129
    %v2134 = vand.u32 2147483647, %v2124
    %vm2135 = vcmp.eq.f32.partialorder %v2134, 8.507059e+37
    %v2136 = vand.u32 %v2124, 2147483648
    %v2137 = vor.u32 1.1754944e-38, %v2136
    %v2138 = vsel %vm2135, %v2137, %v2133
    %v2139 = vmul.f32 %v2121, %v2138
    %v2140 = vpack.c.bf16 %v2139, %v2139
    %2141 = vrot.lane.b32.xlu0 %v1974, 32
    %v2142 = vpop.permute.xlu0 %2141
    %v2144 = vsel %vm586, %v2140, 0
    %v2147 = vsel %vm615, %v2142, 0
    %2149 = vmatpush.bf16.msra.mxu0 0
    %2150 = vmatpush.bf16.msra.mxu0 0
    %2151 = vmatpush.bf16.msra.mxu0 0
    %2152 = vmatpush.bf16.msra.mxu0 0
    %2153 = vmatpush.bf16.msra.mxu0 0
    %2154 = vmatpush.bf16.msra.mxu0 0
    %2155 = vmatpush.bf16.msra.mxu0 0
    %2156 = vmatpush.bf16.msra.mxu0 %v2147
    %2157 = vmatmul.bf16.gmra.mxu0 %v2144
    %v2158 = vpop.f32.mrf.mxu0
    %v2159 = vadd.f32 0.0, %v2158
    %v2160 = vpop.f32.mrf.mxu0
    %2161 = vdwg.mxu0
    %2163 = vrot.lane.b32.xlu0 %v2159, 96
    %v2164 = vpop.permute.xlu0 %2163
    %2166 = vst.msk [vmem:[#allocation2] sm:$0xff] %vm889, %v2164
    %v2167 = vld [vmem:[#allocation2] sm:$0xff]
    %v2168 = vpack.c.bf16 %v2167, %v2167
    %s2169 = scalar_lea.vmem [#allocation6], 64
    %v2170 = vld [vmem:[%s2169] sm:$0xf]
    %v2171 = vld [vmem:[%s2169 + $0x4] sm:$0xf]
    %v2172 = vld [vmem:[%s2169 + $0x8] sm:$0xf]
    %v2173 = vld [vmem:[%s2169 + $0xc] sm:$0xf]
    %v2174 = vld [vmem:[%s2169 + $0x10] sm:$0xf]
    %v2175 = vld [vmem:[%s2169 + $0x14] sm:$0xf]
    %v2176 = vld [vmem:[%s2169 + $0x18] sm:$0xf]
    %v2177 = vld [vmem:[%s2169 + $0x1c] sm:$0xf]
    %v2178 = vld [vmem:[%s2169 + $0x20] sm:$0xf]
    %v2179 = vld [vmem:[%s2169 + $0x24] sm:$0xf]
    %v2180 = vld [vmem:[%s2169 + $0x28] sm:$0xf]
    %v2181 = vld [vmem:[%s2169 + $0x2c] sm:$0xf]
    %v2182 = vld [vmem:[%s2169 + $0x30] sm:$0xf]
    %v2183 = vld [vmem:[%s2169 + $0x34] sm:$0xf]
    %v2184 = vld [vmem:[%s2169 + $0x38] sm:$0xf]
    %v2185 = vld [vmem:[%s2169 + $0x3c] sm:$0xf]
    %v2202 = vunpack.c.l.b16 %v2170
    %v2203 = vunpack.c.l.b16 %v2171
    %v2204 = vunpack.c.l.b16 %v2172
    %v2205 = vunpack.c.l.b16 %v2173
    %v2206 = vunpack.c.l.b16 %v2174
    %v2207 = vunpack.c.l.b16 %v2175
    %v2208 = vunpack.c.l.b16 %v2176
    %v2209 = vunpack.c.l.b16 %v2177
    %v2210 = vunpack.c.l.b16 %v2178
    %v2211 = vunpack.c.l.b16 %v2179
    %v2212 = vunpack.c.l.b16 %v2180
    %v2213 = vunpack.c.l.b16 %v2181
    %v2214 = vunpack.c.l.b16 %v2182
    %v2215 = vunpack.c.l.b16 %v2183
    %v2216 = vunpack.c.l.b16 %v2184
    %v2217 = vunpack.c.l.b16 %v2185
    %v2218 = vpack.c.b16 %v2203, %v2202
    %v2219 = vpack.c.b16 %v2205, %v2204
    %v2220 = vpack.c.b16 %v2207, %v2206
    %v2221 = vpack.c.b16 %v2209, %v2208
    %v2222 = vpack.c.b16 %v2211, %v2210
    %v2223 = vpack.c.b16 %v2213, %v2212
    %v2224 = vpack.c.b16 %v2215, %v2214
    %v2225 = vpack.c.b16 %v2217, %v2216
    %2234 = vmatpush.bf16.msra.mxu0 %v2225
    %2235 = vmatpush.bf16.msra.mxu0 %v2224
    %2236 = vmatpush.bf16.msra.mxu0 %v2223
    %2237 = vmatpush.bf16.msra.mxu0 %v2222
    %2238 = vmatpush.bf16.msra.mxu0 %v2221
    %2239 = vmatpush.bf16.msra.mxu0 %v2220
    %2240 = vmatpush.bf16.msra.mxu0 %v2219
    %2241 = vmatpush.bf16.msra.mxu0 %v2218
    %2242 = vmatmul.bf16.gmra.mxu0 %v2168
    %v2243 = vpop.f32.mrf.mxu0
    %v2244 = vadd.f32 0.0, %v2243
    %v2245 = vpop.f32.mrf.mxu0
    %2246 = vdwg.mxu0
    %v2247 = vadd.f32 %v1435, %v2244
    %s2248 = scalar_lea.vmem %s10, 1
    %v2249 = vld [vmem:[%s2248] sm:$0x1]
    %v2250 = vmul.f32 %v2247, %v2247
    %2251 = vadd.xlane.f32.xlu0 %v2250
    %v2252 = vpop.xlane.xlu0 %2251
    %v2253 = vmul.f32 %v2252, %v159
    %v2254 = vadd.f32 %v2253, 1e-05
    %v2255 = vrsqrt.pop %v2254
    %v2256 = vmul.f32 %v2255, %v2254
    %v2257 = vmul.f32 %v2256, %v2255
    %v2258 = vmul.f32 0.5, %v2257
    %v2259 = vsub.f32 1.5, %v2258
    %v2260 = vmul.f32 %v2255, %v2259
    %vm2261 = vweird.f32 %v2254
    %vm2262 = vweird.f32 %v2255
    %vm2263 = vmor %vm2261, %vm2262
    %v2264 = vsel %vm2263, %v2255, %v2260
    %v2265 = vmul.f32 %v2247, %v2264
    %v2267 = vperm.slane %v2249, 0
    %v2269 = vmul.f32 %v2265, %v2267
    %v2270 = vpack.c.bf16 %v2269, %v2269
    %s2271 = scalar_lea.vmem [#allocation8], 256
    %v2272 = vld [vmem:[%s2271] sm:$0xff]
    %v2273 = vld [vmem:[%s2271 + $0x8] sm:$0xff]
    %v2274 = vld [vmem:[%s2271 + $0x10] sm:$0xff]
    %v2275 = vld [vmem:[%s2271 + $0x18] sm:$0xff]
    %v2276 = vld [vmem:[%s2271 + $0x20] sm:$0xff]
    %v2277 = vld [vmem:[%s2271 + $0x28] sm:$0xff]
    %v2278 = vld [vmem:[%s2271 + $0x30] sm:$0xff]
    %v2279 = vld [vmem:[%s2271 + $0x38] sm:$0xff]
    %v2280 = vld [vmem:[%s2271 + $0x40] sm:$0xff]
    %v2281 = vld [vmem:[%s2271 + $0x48] sm:$0xff]
    %v2282 = vld [vmem:[%s2271 + $0x50] sm:$0xff]
    %v2283 = vld [vmem:[%s2271 + $0x58] sm:$0xff]
    %v2284 = vld [vmem:[%s2271 + $0x60] sm:$0xff]
    %v2285 = vld [vmem:[%s2271 + $0x68] sm:$0xff]
    %v2286 = vld [vmem:[%s2271 + $0x70] sm:$0xff]
    %v2287 = vld [vmem:[%s2271 + $0x78] sm:$0xff]
    %v2288 = vld [vmem:[%s2271 + $0x80] sm:$0xff]
    %v2289 = vld [vmem:[%s2271 + $0x88] sm:$0xff]
    %v2290 = vld [vmem:[%s2271 + $0x90] sm:$0xff]
    %v2291 = vld [vmem:[%s2271 + $0x98] sm:$0xff]
    %v2292 = vld [vmem:[%s2271 + $0xa0] sm:$0xff]
    %v2293 = vld [vmem:[%s2271 + $0xa8] sm:$0xff]
    %v2294 = vld [vmem:[%s2271 + $0xb0] sm:$0xff]
    %v2295 = vld [vmem:[%s2271 + $0xb8] sm:$0xff]
    %v2296 = vld [vmem:[%s2271 + $0xc0] sm:$0xff]
    %v2297 = vld [vmem:[%s2271 + $0xc8] sm:$0xff]
    %v2298 = vld [vmem:[%s2271 + $0xd0] sm:$0xff]
    %v2299 = vld [vmem:[%s2271 + $0xd8] sm:$0xff]
    %v2300 = vld [vmem:[%s2271 + $0xe0] sm:$0xff]
    %v2301 = vld [vmem:[%s2271 + $0xe8] sm:$0xff]
    %v2302 = vld [vmem:[%s2271 + $0xf0] sm:$0xff]
    %v2303 = vld [vmem:[%s2271 + $0xf8] sm:$0xff]
    %v2336 = vunpack.c.l.b16 %v2272
    %v2337 = vunpack.c.h.b16 %v2272
    %v2338 = vunpack.c.l.b16 %v2273
    %v2339 = vunpack.c.h.b16 %v2273
    %v2340 = vunpack.c.l.b16 %v2274
    %v2341 = vunpack.c.h.b16 %v2274
    %v2342 = vunpack.c.l.b16 %v2275
    %v2343 = vunpack.c.h.b16 %v2275
    %v2344 = vunpack.c.l.b16 %v2276
    %v2345 = vunpack.c.h.b16 %v2276
    %v2346 = vunpack.c.l.b16 %v2277
    %v2347 = vunpack.c.h.b16 %v2277
    %v2348 = vunpack.c.l.b16 %v2278
    %v2349 = vunpack.c.h.b16 %v2278
    %v2350 = vunpack.c.l.b16 %v2279
    %v2351 = vunpack.c.h.b16 %v2279
    %v2352 = vunpack.c.l.b16 %v2280
    %v2353 = vunpack.c.h.b16 %v2280
    %v2354 = vunpack.c.l.b16 %v2281
    %v2355 = vunpack.c.h.b16 %v2281
    %v2356 = vunpack.c.l.b16 %v2282
    %v2357 = vunpack.c.h.b16 %v2282
    %v2358 = vunpack.c.l.b16 %v2283
    %v2359 = vunpack.c.h.b16 %v2283
    %v2360 = vunpack.c.l.b16 %v2284
    %v2361 = vunpack.c.h.b16 %v2284
    %v2362 = vunpack.c.l.b16 %v2285
    %v2363 = vunpack.c.h.b16 %v2285
    %v2364 = vunpack.c.l.b16 %v2286
    %v2365 = vunpack.c.h.b16 %v2286
    %v2366 = vunpack.c.l.b16 %v2287
    %v2367 = vunpack.c.h.b16 %v2287
    %v2368 = vunpack.c.l.b16 %v2288
    %v2369 = vunpack.c.h.b16 %v2288
    %v2370 = vunpack.c.l.b16 %v2289
    %v2371 = vunpack.c.h.b16 %v2289
    %v2372 = vunpack.c.l.b16 %v2290
    %v2373 = vunpack.c.h.b16 %v2290
    %v2374 = vunpack.c.l.b16 %v2291
    %v2375 = vunpack.c.h.b16 %v2291
    %v2376 = vunpack.c.l.b16 %v2292
    %v2377 = vunpack.c.h.b16 %v2292
    %v2378 = vunpack.c.l.b16 %v2293
    %v2379 = vunpack.c.h.b16 %v2293
    %v2380 = vunpack.c.l.b16 %v2294
    %v2381 = vunpack.c.h.b16 %v2294
    %v2382 = vunpack.c.l.b16 %v2295
    %v2383 = vunpack.c.h.b16 %v2295
    %v2384 = vunpack.c.l.b16 %v2296
    %v2385 = vunpack.c.h.b16 %v2296
    %v2386 = vunpack.c.l.b16 %v2297
    %v2387 = vunpack.c.h.b16 %v2297
    %v2388 = vunpack.c.l.b16 %v2298
    %v2389 = vunpack.c.h.b16 %v2298
    %v2390 = vunpack.c.l.b16 %v2299
    %v2391 = vunpack.c.h.b16 %v2299
    %v2392 = vunpack.c.l.b16 %v2300
    %v2393 = vunpack.c.h.b16 %v2300
    %v2394 = vunpack.c.l.b16 %v2301
    %v2395 = vunpack.c.h.b16 %v2301
    %v2396 = vunpack.c.l.b16 %v2302
    %v2397 = vunpack.c.h.b16 %v2302
    %v2398 = vunpack.c.l.b16 %v2303
    %v2399 = vunpack.c.h.b16 %v2303
    %v2400 = vpack.c.b16 %v2340, %v2336
    %v2401 = vpack.c.b16 %v2341, %v2337
    %v2402 = vpack.c.b16 %v2342, %v2338
    %v2403 = vpack.c.b16 %v2343, %v2339
    %v2404 = vpack.c.b16 %v2348, %v2344
    %v2405 = vpack.c.b16 %v2349, %v2345
    %v2406 = vpack.c.b16 %v2350, %v2346
    %v2407 = vpack.c.b16 %v2351, %v2347
    %v2408 = vpack.c.b16 %v2356, %v2352
    %v2409 = vpack.c.b16 %v2357, %v2353
    %v2410 = vpack.c.b16 %v2358, %v2354
    %v2411 = vpack.c.b16 %v2359, %v2355
    %v2412 = vpack.c.b16 %v2364, %v2360
    %v2413 = vpack.c.b16 %v2365, %v2361
    %v2414 = vpack.c.b16 %v2366, %v2362
    %v2415 = vpack.c.b16 %v2367, %v2363
    %v2416 = vpack.c.b16 %v2372, %v2368
    %v2417 = vpack.c.b16 %v2373, %v2369
    %v2418 = vpack.c.b16 %v2374, %v2370
    %v2419 = vpack.c.b16 %v2375, %v2371
    %v2420 = vpack.c.b16 %v2380, %v2376
    %v2421 = vpack.c.b16 %v2381, %v2377
    %v2422 = vpack.c.b16 %v2382, %v2378
    %v2423 = vpack.c.b16 %v2383, %v2379
    %v2424 = vpack.c.b16 %v2388, %v2384
    %v2425 = vpack.c.b16 %v2389, %v2385
    %v2426 = vpack.c.b16 %v2390, %v2386
    %v2427 = vpack.c.b16 %v2391, %v2387
    %v2428 = vpack.c.b16 %v2396, %v2392
    %v2429 = vpack.c.b16 %v2397, %v2393
    %v2430 = vpack.c.b16 %v2398, %v2394
    %v2431 = vpack.c.b16 %v2399, %v2395
    %2464 = vmatpush.bf16.msra.mxu0 %v2428
    %2465 = vmatpush.bf16.msra.mxu0 %v2424
    %2466 = vmatpush.bf16.msra.mxu0 %v2420
    %2467 = vmatpush.bf16.msra.mxu0 %v2416
    %2468 = vmatpush.bf16.msra.mxu0 %v2412
    %2469 = vmatpush.bf16.msra.mxu0 %v2408
    %2470 = vmatpush.bf16.msra.mxu0 %v2404
    %2471 = vmatpush.bf16.msra.mxu0 %v2400
    %2472 = vmatmul.bf16.gmra.mxu0 %v2270
    %v2473 = vpop.f32.mrf.mxu0
    %v2474 = vadd.f32 0.0, %v2473
    %v2475 = vpop.f32.mrf.mxu0
    %2476 = vdwg.mxu0
    %2477 = vmatpush.bf16.msra.mxu0 %v2429
    %2478 = vmatpush.bf16.msra.mxu0 %v2425
    %2479 = vmatpush.bf16.msra.mxu0 %v2421
    %2480 = vmatpush.bf16.msra.mxu0 %v2417
    %2481 = vmatpush.bf16.msra.mxu0 %v2413
    %2482 = vmatpush.bf16.msra.mxu0 %v2409
    %2483 = vmatpush.bf16.msra.mxu0 %v2405
    %2484 = vmatpush.bf16.msra.mxu0 %v2401
    %2485 = vmatmul.bf16.gmra.mxu0 %v2270
    %v2486 = vpop.f32.mrf.mxu0
    %v2487 = vadd.f32 0.0, %v2486
    %v2488 = vpop.f32.mrf.mxu0
    %2489 = vdwg.mxu0
    %2490 = vmatpush.bf16.msra.mxu0 %v2430
    %2491 = vmatpush.bf16.msra.mxu0 %v2426
    %2492 = vmatpush.bf16.msra.mxu0 %v2422
    %2493 = vmatpush.bf16.msra.mxu0 %v2418
    %2494 = vmatpush.bf16.msra.mxu0 %v2414
    %2495 = vmatpush.bf16.msra.mxu0 %v2410
    %2496 = vmatpush.bf16.msra.mxu0 %v2406
    %2497 = vmatpush.bf16.msra.mxu0 %v2402
    %2498 = vmatmul.bf16.gmra.mxu0 %v2270
    %v2499 = vpop.f32.mrf.mxu0
    %v2500 = vadd.f32 0.0, %v2499
    %v2501 = vpop.f32.mrf.mxu0
    %2502 = vdwg.mxu0
    %2503 = vmatpush.bf16.msra.mxu0 %v2431
    %2504 = vmatpush.bf16.msra.mxu0 %v2427
    %2505 = vmatpush.bf16.msra.mxu0 %v2423
    %2506 = vmatpush.bf16.msra.mxu0 %v2419
    %2507 = vmatpush.bf16.msra.mxu0 %v2415
    %2508 = vmatpush.bf16.msra.mxu0 %v2411
    %2509 = vmatpush.bf16.msra.mxu0 %v2407
    %2510 = vmatpush.bf16.msra.mxu0 %v2403
    %2511 = vmatmul.bf16.gmra.mxu0 %v2270
    %v2512 = vpop.f32.mrf.mxu0
    %v2513 = vadd.f32 0.0, %v2512
    %v2514 = vpop.f32.mrf.mxu0
    %2515 = vdwg.mxu0
    %v2516 = vxor.u32 %v2474, 2147483648
    %v2517 = vxor.u32 %v2487, 2147483648
    %v2518 = vmul.f32 %v2516, 1.442695
    %v2519 = vpow.pop %v2518
    %v2520 = vmul.f32 %v2517, 1.442695
    %v2521 = vpow.pop %v2520
    %v2522 = vadd.f32 %v2519, 1.0
    %v2523 = vadd.f32 %v2521, 1.0
    %v2524 = vrcp.pop %v2522
    %v2525 = vmul.f32 %v2522, %v2524
    %v2526 = vsub.f32 1.0, %v2525
    %v2527 = vmul.f32 %v2524, %v2526
    %v2528 = vadd.f32 %v2524, %v2527
    %vm2529 = vweird.f32 %v2522
    %vm2530 = vweird.f32 %v2524
    %vm2531 = vmor %vm2529, %vm2530
    %v2532 = vsel %vm2531, %v2524, %v2528
    %v2533 = vand.u32 2147483647, %v2522
    %vm2534 = vcmp.eq.f32.partialorder %v2533, 8.507059e+37
    %v2535 = vand.u32 %v2522, 2147483648
    %v2536 = vor.u32 1.1754944e-38, %v2535
    %v2537 = vsel %vm2534, %v2536, %v2532
    %v2538 = vmul.f32 1.0, %v2537
    %v2539 = vrcp.pop %v2523
    %v2540 = vmul.f32 %v2523, %v2539
    %v2541 = vsub.f32 1.0, %v2540
    %v2542 = vmul.f32 %v2539, %v2541
    %v2543 = vadd.f32 %v2539, %v2542
    %vm2544 = vweird.f32 %v2523
    %vm2545 = vweird.f32 %v2539
    %vm2546 = vmor %vm2544, %vm2545
    %v2547 = vsel %vm2546, %v2539, %v2543
    %v2548 = vand.u32 2147483647, %v2523
    %vm2549 = vcmp.eq.f32.partialorder %v2548, 8.507059e+37
    %v2550 = vand.u32 %v2523, 2147483648
    %v2551 = vor.u32 1.1754944e-38, %v2550
    %v2552 = vsel %vm2549, %v2551, %v2547
    %v2553 = vmul.f32 1.0, %v2552
    %v2554 = vmul.f32 %v2474, %v2538
    %v2555 = vmul.f32 %v2487, %v2553
    %v2556 = vmul.f32 %v2554, %v2500
    %v2557 = vmul.f32 %v2555, %v2513
    %v2558 = vpack.c.bf16 %v2556, %v2556
    %v2559 = vpack.c.bf16 %v2557, %v2557
    %s2560 = scalar_lea.vmem [#allocation9], 128
    %v2561 = vld [vmem:[%s2560] sm:$0xf]
    %v2562 = vld [vmem:[%s2560 + $0x4] sm:$0xf]
    %v2563 = vld [vmem:[%s2560 + $0x8] sm:$0xf]
    %v2564 = vld [vmem:[%s2560 + $0xc] sm:$0xf]
    %v2565 = vld [vmem:[%s2560 + $0x10] sm:$0xf]
    %v2566 = vld [vmem:[%s2560 + $0x14] sm:$0xf]
    %v2567 = vld [vmem:[%s2560 + $0x18] sm:$0xf]
    %v2568 = vld [vmem:[%s2560 + $0x1c] sm:$0xf]
    %v2569 = vld [vmem:[%s2560 + $0x20] sm:$0xf]
    %v2570 = vld [vmem:[%s2560 + $0x24] sm:$0xf]
    %v2571 = vld [vmem:[%s2560 + $0x28] sm:$0xf]
    %v2572 = vld [vmem:[%s2560 + $0x2c] sm:$0xf]
    %v2573 = vld [vmem:[%s2560 + $0x30] sm:$0xf]
    %v2574 = vld [vmem:[%s2560 + $0x34] sm:$0xf]
    %v2575 = vld [vmem:[%s2560 + $0x38] sm:$0xf]
    %v2576 = vld [vmem:[%s2560 + $0x3c] sm:$0xf]
    %v2577 = vld [vmem:[%s2560 + $0x40] sm:$0xf]
    %v2578 = vld [vmem:[%s2560 + $0x44] sm:$0xf]
    %v2579 = vld [vmem:[%s2560 + $0x48] sm:$0xf]
    %v2580 = vld [vmem:[%s2560 + $0x4c] sm:$0xf]
    %v2581 = vld [vmem:[%s2560 + $0x50] sm:$0xf]
    %v2582 = vld [vmem:[%s2560 + $0x54] sm:$0xf]
    %v2583 = vld [vmem:[%s2560 + $0x58] sm:$0xf]
    %v2584 = vld [vmem:[%s2560 + $0x5c] sm:$0xf]
    %v2585 = vld [vmem:[%s2560 + $0x60] sm:$0xf]
    %v2586 = vld [vmem:[%s2560 + $0x64] sm:$0xf]
    %v2587 = vld [vmem:[%s2560 + $0x68] sm:$0xf]
    %v2588 = vld [vmem:[%s2560 + $0x6c] sm:$0xf]
    %v2589 = vld [vmem:[%s2560 + $0x70] sm:$0xf]
    %v2590 = vld [vmem:[%s2560 + $0x74] sm:$0xf]
    %v2591 = vld [vmem:[%s2560 + $0x78] sm:$0xf]
    %v2592 = vld [vmem:[%s2560 + $0x7c] sm:$0xf]
    %v2625 = vunpack.c.l.b16 %v2561
    %v2626 = vunpack.c.l.b16 %v2562
    %v2627 = vunpack.c.l.b16 %v2563
    %v2628 = vunpack.c.l.b16 %v2564
    %v2629 = vunpack.c.l.b16 %v2565
    %v2630 = vunpack.c.l.b16 %v2566
    %v2631 = vunpack.c.l.b16 %v2567
    %v2632 = vunpack.c.l.b16 %v2568
    %v2633 = vunpack.c.l.b16 %v2569
    %v2634 = vunpack.c.l.b16 %v2570
    %v2635 = vunpack.c.l.b16 %v2571
    %v2636 = vunpack.c.l.b16 %v2572
    %v2637 = vunpack.c.l.b16 %v2573
    %v2638 = vunpack.c.l.b16 %v2574
    %v2639 = vunpack.c.l.b16 %v2575
    %v2640 = vunpack.c.l.b16 %v2576
    %v2641 = vunpack.c.l.b16 %v2577
    %v2642 = vunpack.c.l.b16 %v2578
    %v2643 = vunpack.c.l.b16 %v2579
    %v2644 = vunpack.c.l.b16 %v2580
    %v2645 = vunpack.c.l.b16 %v2581
    %v2646 = vunpack.c.l.b16 %v2582
    %v2647 = vunpack.c.l.b16 %v2583
    %v2648 = vunpack.c.l.b16 %v2584
    %v2649 = vunpack.c.l.b16 %v2585
    %v2650 = vunpack.c.l.b16 %v2586
    %v2651 = vunpack.c.l.b16 %v2587
    %v2652 = vunpack.c.l.b16 %v2588
    %v2653 = vunpack.c.l.b16 %v2589
    %v2654 = vunpack.c.l.b16 %v2590
    %v2655 = vunpack.c.l.b16 %v2591
    %v2656 = vunpack.c.l.b16 %v2592
    %v2657 = vpack.c.b16 %v2626, %v2625
    %v2658 = vpack.c.b16 %v2628, %v2627
    %v2659 = vpack.c.b16 %v2630, %v2629
    %v2660 = vpack.c.b16 %v2632, %v2631
    %v2661 = vpack.c.b16 %v2634, %v2633
    %v2662 = vpack.c.b16 %v2636, %v2635
    %v2663 = vpack.c.b16 %v2638, %v2637
    %v2664 = vpack.c.b16 %v2640, %v2639
    %v2665 = vpack.c.b16 %v2642, %v2641
    %v2666 = vpack.c.b16 %v2644, %v2643
    %v2667 = vpack.c.b16 %v2646, %v2645
    %v2668 = vpack.c.b16 %v2648, %v2647
    %v2669 = vpack.c.b16 %v2650, %v2649
    %v2670 = vpack.c.b16 %v2652, %v2651
    %v2671 = vpack.c.b16 %v2654, %v2653
    %v2672 = vpack.c.b16 %v2656, %v2655
    %2689 = vmatpush.bf16.msra.mxu0 %v2664
    %2690 = vmatpush.bf16.msra.mxu0 %v2663
    %2691 = vmatpush.bf16.msra.mxu0 %v2662
    %2692 = vmatpush.bf16.msra.mxu0 %v2661
    %2693 = vmatpush.bf16.msra.mxu0 %v2660
    %2694 = vmatpush.bf16.msra.mxu0 %v2659
    %2695 = vmatpush.bf16.msra.mxu0 %v2658
    %2696 = vmatpush.bf16.msra.mxu0 %v2657
    %2697 = vmatmul.bf16.gmra.mxu0 %v2558
    %v2698 = vpop.f32.mrf.mxu0
    %v2699 = vadd.f32 0.0, %v2698
    %v2700 = vpop.f32.mrf.mxu0
    %2701 = vdwg.mxu0
    %2702 = vmatpush.bf16.msra.mxu0 %v2672
    %2703 = vmatpush.bf16.msra.mxu0 %v2671
    %2704 = vmatpush.bf16.msra.mxu0 %v2670
    %2705 = vmatpush.bf16.msra.mxu0 %v2669
    %2706 = vmatpush.bf16.msra.mxu0 %v2668
    %2707 = vmatpush.bf16.msra.mxu0 %v2667
    %2708 = vmatpush.bf16.msra.mxu0 %v2666
    %2709 = vmatpush.bf16.msra.mxu0 %v2665
    %2710 = vmatmul.bf16.gmra.mxu0 %v2559
    %v2711 = vpop.f32.mrf.mxu0
    %v2712 = vadd.f32 %v2699, %v2711
    %v2713 = vpop.f32.mrf.mxu0
    %2714 = vdwg.mxu0
    %v2715 = vadd.f32 %v2247, %v2712
    %v2716 = vld [vmem:[#allocation11] sm:$0x1]
    %v2717 = vmul.f32 %v2715, %v2715
    %2718 = vadd.xlane.f32.xlu0 %v2717
    %v2719 = vpop.xlane.xlu0 %2718
    %v2720 = vmul.f32 %v2719, %v159
    %v2721 = vadd.f32 %v2720, 1e-05
    %v2722 = vrsqrt.pop %v2721
    %v2723 = vmul.f32 %v2722, %v2721
    %v2724 = vmul.f32 %v2723, %v2722
    %v2725 = vmul.f32 0.5, %v2724
    %v2726 = vsub.f32 1.5, %v2725
    %v2727 = vmul.f32 %v2722, %v2726
    %vm2728 = vweird.f32 %v2721
    %vm2729 = vweird.f32 %v2722
    %vm2730 = vmor %vm2728, %vm2729
    %v2731 = vsel %vm2730, %v2722, %v2727
    %v2732 = vmul.f32 %v2715, %v2731
    %v2734 = vperm.slane %v2716, 0
    %v2736 = vmul.f32 %v2732, %v2734
    %v2737 = vpack.c.bf16 %v2736, %v2736
    %v2738 = vld [vmem:[%s14] sm:$0xf]
    %v2739 = vld [vmem:[%s14 + $0x4] sm:$0xf]
    %v2740 = vld [vmem:[%s14 + $0x8] sm:$0xf]
    %v2741 = vld [vmem:[%s14 + $0xc] sm:$0xf]
    %v2742 = vld [vmem:[%s14 + $0x10] sm:$0xf]
    %v2743 = vld [vmem:[%s14 + $0x14] sm:$0xf]
    %v2744 = vld [vmem:[%s14 + $0x18] sm:$0xf]
    %v2745 = vld [vmem:[%s14 + $0x1c] sm:$0xf]
    %v2746 = vld [vmem:[%s14 + $0x20] sm:$0xf]
    %v2747 = vld [vmem:[%s14 + $0x24] sm:$0xf]
    %v2748 = vld [vmem:[%s14 + $0x28] sm:$0xf]
    %v2749 = vld [vmem:[%s14 + $0x2c] sm:$0xf]
    %v2750 = vld [vmem:[%s14 + $0x30] sm:$0xf]
    %v2751 = vld [vmem:[%s14 + $0x34] sm:$0xf]
    %v2752 = vld [vmem:[%s14 + $0x38] sm:$0xf]
    %v2753 = vld [vmem:[%s14 + $0x3c] sm:$0xf]
    %v2770 = vunpack.c.l.b16 %v2738
    %v2771 = vunpack.c.l.b16 %v2739
    %v2772 = vunpack.c.l.b16 %v2740
    %v2773 = vunpack.c.l.b16 %v2741
    %v2774 = vunpack.c.l.b16 %v2742
    %v2775 = vunpack.c.l.b16 %v2743
    %v2776 = vunpack.c.l.b16 %v2744
    %v2777 = vunpack.c.l.b16 %v2745
    %v2778 = vunpack.c.l.b16 %v2746
    %v2779 = vunpack.c.l.b16 %v2747
    %v2780 = vunpack.c.l.b16 %v2748
    %v2781 = vunpack.c.l.b16 %v2749
    %v2782 = vunpack.c.l.b16 %v2750
    %v2783 = vunpack.c.l.b16 %v2751
    %v2784 = vunpack.c.l.b16 %v2752
    %v2785 = vunpack.c.l.b16 %v2753
    %v2786 = vpack.c.b16 %v2771, %v2770
    %v2787 = vpack.c.b16 %v2773, %v2772
    %v2788 = vpack.c.b16 %v2775, %v2774
    %v2789 = vpack.c.b16 %v2777, %v2776
    %v2790 = vpack.c.b16 %v2779, %v2778
    %v2791 = vpack.c.b16 %v2781, %v2780
    %v2792 = vpack.c.b16 %v2783, %v2782
    %v2793 = vpack.c.b16 %v2785, %v2784
    %2802 = vmatpush.bf16.msra.mxu0 %v2793
    %2803 = vmatpush.bf16.msra.mxu0 %v2792
    %2804 = vmatpush.bf16.msra.mxu0 %v2791
    %2805 = vmatpush.bf16.msra.mxu0 %v2790
    %2806 = vmatpush.bf16.msra.mxu0 %v2789
    %2807 = vmatpush.bf16.msra.mxu0 %v2788
    %2808 = vmatpush.bf16.msra.mxu0 %v2787
    %2809 = vmatpush.bf16.msra.mxu0 %v2786
    %2810 = vmatmul.bf16.gmra.mxu0 %v2737
    %v2811 = vpop.f32.mrf.mxu0
    %v2812 = vadd.f32 0.0, %v2811
    %v2813 = vpop.f32.mrf.mxu0
    %2814 = vdwg.mxu0
    %2815 = vst [vmem:[#allocation12] sm:$0xff] %v2812
    // Predicated region
    $region82: #{forward.1} parent=1 // pred_check
      _
    $region83: #{forward.1} parent=1 // pred_check_branch
      %2817 = sbr.rel (0) target = $region85
    $region84: #{forward.1} parent=1 // pred_region
      %2819 = vsyncadd [#allocation5], 0
      %s2821 = sshll.u32 [#allocation12], 4
      %s2822 = int_to_ptr.vmem [resolvable:$true] %s2821
      %s2823 = sshll.u32 %s15, 4
      %s2824 = int_to_ptr.hbm [resolvable:$true] %s2823
      %2826 = dma.vmem_to_hbm [thread:$0]  %s2822, 128, %s2824, [#allocation5]
    $region85: #{forward.1} parent=1 // pred_fallthru
      _
    // Predicated region
    $region86: #{forward.1} parent=1 // pred_check
      _
    $region87: #{forward.1} parent=1 // pred_check_branch
      %2828 = sbr.rel (0) target = $region89
    $region88: #{forward.1} parent=1 // pred_region
      %2830 = dma.done [#allocation5], 128
    $region89: #{forward.1} parent=1 // pred_fallthru
      _
    %2831 = vsyncpa [#allocation4], 1
    %2832 = vsyncpa [#allocation7], 1
    %2833 = vsyncpa [#allocation10], 1
    %2834 = vsyncpa [#allocation5], 1

</llo_original>
